<compile_context>
chip_gen: v7x
topology: tpu7x:2x2x1
jax: 0.10.0
libtpu: 0.0.40
codegen_flags: <defaults>
</compile_context>

<pallas_src>
import functools

import jax
import jax.numpy as jnp
from jax.experimental import pallas as pl
from jax.experimental.pallas import tpu as pltpu

STEM_CH = 32          # efficientnet_b1 stem channels
HEAD_CH = 1280        # efficientnet_b1 num_features (classifier in_features)
HIDDEN = 512
NUM_CLASSES = 7
BN_EPS = 1e-5
LN_EPS = 1e-5


# ---------------------------------------------------------------------------
# Fused kernel: stem conv -> head conv -> global avg pool -> classifier head
#   grid = (N, HW // tile_hw); pooled sum accumulated in VMEM scratch across j.
# ---------------------------------------------------------------------------
def _fused_fernet_kernel(patches_ref, w_stem_ref, stem_shift_ref,
                         w_head_ref, head_shift_ref,
                         w1_ref, b1_ref, g_ref, beta_ref, w2_ref, b2_ref,
                         o_ref, acc_ref, *, inv_hw):
    j = pl.program_id(1)

    @pl.when(j == 0)
    def _init():
        acc_ref[...] = jnp.zeros_like(acc_ref)

    # --- conv_stem: im2col matmul (bf16 operands, f32 accumulate) + BN shift + SiLU ---
    x = patches_ref[0]                                              # (tile_hw, 27) bf16
    stem = jnp.dot(x, w_stem_ref[...], preferred_element_type=jnp.float32)
    stem = stem + stem_shift_ref[...]
    stem = stem * jax.nn.sigmoid(stem)                              # SiLU (f32)

    # TODO(synk): efficientnet_b1 MBConv block stack omitted (see header comment).

    # --- conv_head: 1x1 conv == matmul + BN shift + SiLU; stays entirely in VMEM ---
    feat = jnp.dot(stem.astype(jnp.bfloat16), w_head_ref[...],
                   preferred_element_type=jnp.float32)              # (tile_hw, 1280) f32
    feat = feat + head_shift_ref[...]
    feat = feat * jax.nn.sigmoid(feat)

    # --- global average pool: accumulate per-tile sum into f32 scratch ---
    acc_ref[...] += jnp.sum(feat, axis=0, keepdims=True)            # (1, 1280)

    # --- finalize on the last HW tile: classifier head on the pooled vector ---
    @pl.when(j == pl.num_programs(1) - 1)
    def _finalize():
        pooled = acc_ref[...] * inv_hw                              # (1, 1280) f32
        # Dropout(0.4): identity in eval mode.
        h = jnp.dot(pooled.astype(jnp.bfloat16), w1_ref[...],
                    preferred_element_type=jnp.float32) + b1_ref[...]
        # exact (erf-based) GELU, matching torch.nn.GELU() default
        h = 0.5 * h * (1.0 + jax.lax.erf(h * 0.7071067811865476))
        # LayerNorm(512), eps=1e-5
        mu = jnp.mean(h, axis=-1, keepdims=True)
        var = jnp.mean(jnp.square(h - mu), axis=-1, keepdims=True)
        h = (h - mu) * jax.lax.rsqrt(var + LN_EPS) * g_ref[...] + beta_ref[...]
        logits = jnp.dot(h, w2_ref[...], preferred_element_type=jnp.float32) + b2_ref[...]
        o_ref[0] = logits.astype(o_ref.dtype)


def fused_fernet(patches, w_stem, stem_shift, w_head, head_shift,
                 w1, b1, gamma, beta, w2, b2, *, tile_hw):
    n, hw, k9 = patches.shape
    assert hw % tile_hw == 0, "HW must be divisible by tile_hw"
    grid = (n, hw // tile_hw)

    kernel = functools.partial(_fused_fernet_kernel, inv_hw=1.0 / hw)
    rep = lambda i, j: (0, 0)   # weights / biases: resident, same block every step

    out = pl.pallas_call(
        kernel,
        out_shape=jax.ShapeDtypeStruct((n, 1, NUM_CLASSES), jnp.float32),
        grid=grid,
        in_specs=[
            pl.BlockSpec((1, tile_hw, k9), lambda i, j: (i, j, 0)),   # im2col patches
            pl.BlockSpec((k9, STEM_CH), rep),                          # stem weight (BN folded)
            pl.BlockSpec((1, STEM_CH), rep),                           # stem BN shift
            pl.BlockSpec((STEM_CH, HEAD_CH), rep),                     # head weight (BN folded)
            pl.BlockSpec((1, HEAD_CH), rep),                           # head BN shift
            pl.BlockSpec((HEAD_CH, HIDDEN), rep),                      # classifier w1
            pl.BlockSpec((1, HIDDEN), rep),                            # b1
            pl.BlockSpec((1, HIDDEN), rep),                            # LN gamma
            pl.BlockSpec((1, HIDDEN), rep),                            # LN beta
            pl.BlockSpec((HIDDEN, NUM_CLASSES), rep),                  # classifier w2
            pl.BlockSpec((1, NUM_CLASSES), rep),                       # b2
        ],
        out_specs=pl.BlockSpec((1, 1, NUM_CLASSES), lambda i, j: (i, 0, 0)),
        scratch_shapes=[pltpu.VMEM((1, HEAD_CH), jnp.float32)],        # pooled-sum accumulator
        compiler_params=pltpu.CompilerParams(
            dimension_semantics=("parallel", "arbitrary")),
    )(patches, w_stem, stem_shift, w_head, head_shift, w1, b1, gamma, beta, w2, b2)
    return out.reshape(n, NUM_CLASSES)


# ---------------------------------------------------------------------------
# Parameters (deterministic synthetic init)
# ---------------------------------------------------------------------------
def init_params(key):
    ks = jax.random.split(key, 4)
    p = {}
    # conv_stem: PyTorch weight layout (Cout, Cin, kh, kw), bias-free conv + BN
    p["w_stem"] = jax.random.normal(ks[0], (STEM_CH, 3, 3, 3), jnp.float32) * 0.1
    # BN(eval) with gamma=1, beta=0, running_mean=0, running_var=1
    bn_scale = 1.0 / jnp.sqrt(1.0 + BN_EPS)
    p["stem_scale"] = jnp.full((STEM_CH,), bn_scale, jnp.float32)
    p["stem_shift"] = jnp.zeros((1, STEM_CH), jnp.float32)

    # conv_head: 1x1 pointwise conv -> 1280 (here from stem channels, see TODO above)
    p["w_head"] = jax.random.normal(ks[1], (STEM_CH, HEAD_CH), jnp.float32) * 0.1
    p["head_scale"] = jnp.full((HEAD_CH,), bn_scale, jnp.float32)
    p["head_shift"] = jnp.zeros((1, HEAD_CH), jnp.float32)

    # custom classifier: Linear(1280,512) -> GELU -> LayerNorm(512) -> Linear(512,7)
    p["w1"] = jax.random.normal(ks[2], (HEAD_CH, HIDDEN), jnp.float32) * 0.02
    p["b1"] = jnp.zeros((1, HIDDEN), jnp.float32)
    p["ln_gamma"] = jnp.ones((1, HIDDEN), jnp.float32)
    p["ln_beta"] = jnp.zeros((1, HIDDEN), jnp.float32)
    p["w2"] = jax.random.normal(ks[3], (HIDDEN, NUM_CLASSES), jnp.float32) * 0.02
    p["b2"] = jnp.zeros((1, NUM_CLASSES), jnp.float32)
    return p


# ---------------------------------------------------------------------------
# Forward (glue: layout transform + im2col + BN-scale folding; all compute in the kernel)
# ---------------------------------------------------------------------------
def enhanced_fernet_forward(x_nchw, params):
    n, cin, h, w = x_nchw.shape
    x = jnp.transpose(x_nchw, (0, 2, 3, 1))               # NCHW -> NHWC

    # --- im2col glue for the 3x3 stride-2 pad-1 stem conv ---
    ho, wo = h // 2, w // 2
    hw = ho * wo
    xp = jnp.pad(x, ((0, 0), (1, 1), (1, 1), (0, 0)))
    cols = []
    for dy in range(3):
        for dx in range(3):
            cols.append(xp[:, dy:dy + 2 * ho - 1:2, dx:dx + 2 * wo - 1:2, :])
    patches = jnp.concatenate(cols, axis=-1).reshape(n, hw, 9 * cin)
    patches = patches.astype(jnp.bfloat16)                 # halve HBM bytes for the big input

    # Fold BN(eval) scale into the conv weights (kernel only adds the shift), cast to bf16.
    w_stem = jnp.transpose(params["w_stem"], (2, 3, 1, 0)).reshape(9 * cin, STEM_CH)
    w_stem = (w_stem * params["stem_scale"][None, :]).astype(jnp.bfloat16)
    w_head = (params["w_head"] * params["head_scale"][None, :]).astype(jnp.bfloat16)
    w1 = params["w1"].astype(jnp.bfloat16)

    tile_hw = 128 if hw % 128 == 0 else hw
    return fused_fernet(patches, w_stem, params["stem_shift"],
                        w_head, params["head_shift"],
                        w1, params["b1"],
                        params["ln_gamma"], params["ln_beta"],
                        params["w2"], params["b2"], tile_hw=tile_hw)


if __name__ == "__main__":
    key = jax.random.PRNGKey(0)
    k_x, k_p = jax.random.split(key)
    x = jax.random.normal(k_x, (2, 3, 32, 32), jnp.float32)   # NCHW, like the PyTorch module
    params = init_params(k_p)

    fwd = jax.jit(enhanced_fernet_forward)
    logits = fwd(x, params)
    jax.block_until_ready(logits)
    assert logits.shape == (2, NUM_CLASSES)
    print("KERNEL_OK")
</pallas_src>

<mosaic_0001>
module attributes {stable_mosaic.version = 11 : i64} {
  func.func @_fused_fernet_kernel(%arg0: i32, %arg1: i32, %arg2: memref<1x128x27xbf16, #tpu.memory_space<vmem>>, %arg3: memref<27x32xbf16, #tpu.memory_space<vmem>>, %arg4: memref<1x32xf32, #tpu.memory_space<vmem>>, %arg5: memref<32x1280xbf16, #tpu.memory_space<vmem>>, %arg6: memref<1x1280xf32, #tpu.memory_space<vmem>>, %arg7: memref<1280x512xbf16, #tpu.memory_space<vmem>>, %arg8: memref<1x512xf32, #tpu.memory_space<vmem>>, %arg9: memref<1x512xf32, #tpu.memory_space<vmem>>, %arg10: memref<1x512xf32, #tpu.memory_space<vmem>>, %arg11: memref<512x7xf32, #tpu.memory_space<vmem>>, %arg12: memref<1x7xf32, #tpu.memory_space<vmem>>, %arg13: memref<1x1x7xf32, #tpu.memory_space<vmem>>, %arg14: memref<1x1280xf32, #tpu.memory_space<vmem>>) attributes {dimension_semantics = [#tpu.dimension_semantics<parallel>, #tpu.dimension_semantics<arbitrary>], iteration_bounds = array<i64: 2, 2>, scalar_prefetch = 0 : i64, scratch_operands = 1 : i64, tpu.core_type = #tpu.core_type<tc>, window_params = [{transform_indices = @transform_0, window_bounds = array<i64: 1, 128, 27>}, {pipeline_mode = #tpu.pipeline_mode<synchronous>, transform_indices = @transform_1, window_bounds = array<i64: 27, 32>}, {pipeline_mode = #tpu.pipeline_mode<synchronous>, transform_indices = @transform_2, window_bounds = array<i64: 1, 32>}, {pipeline_mode = #tpu.pipeline_mode<synchronous>, transform_indices = @transform_3, window_bounds = array<i64: 32, 1280>}, {pipeline_mode = #tpu.pipeline_mode<synchronous>, transform_indices = @transform_4, window_bounds = array<i64: 1, 1280>}, {pipeline_mode = #tpu.pipeline_mode<synchronous>, transform_indices = @transform_5, window_bounds = array<i64: 1280, 512>}, {pipeline_mode = #tpu.pipeline_mode<synchronous>, transform_indices = @transform_6, window_bounds = array<i64: 1, 512>}, {pipeline_mode = #tpu.pipeline_mode<synchronous>, transform_indices = @transform_7, window_bounds = array<i64: 1, 512>}, {pipeline_mode = #tpu.pipeline_mode<synchronous>, transform_indices = @transform_8, window_bounds = array<i64: 1, 512>}, {pipeline_mode = #tpu.pipeline_mode<synchronous>, transform_indices = @transform_9, window_bounds = array<i64: 512, 7>}, {pipeline_mode = #tpu.pipeline_mode<synchronous>, transform_indices = @transform_10, window_bounds = array<i64: 1, 7>}, {transform_indices = @transform_11, window_bounds = array<i64: 1, 1, 7>}]} {
    %c0_i32 = arith.constant 0 : i32
    %0 = arith.cmpi eq, %arg1, %c0_i32 : i32
    %1 = arith.extui %0 : i1 to i32
    %c0_i32_0 = arith.constant 0 : i32
    %2 = arith.cmpi ne, %1, %c0_i32_0 : i32
    scf.if %2 {
      %cst_20 = arith.constant 0.000000e+00 : f32
      %36 = vector.broadcast %cst_20 : f32 to vector<1x1280xf32>
      %c0_21 = arith.constant 0 : index
      %c0_22 = arith.constant 0 : index
      %37 = vector.load %arg14[%c0_21, %c0_22] : memref<1x1280xf32, #tpu.memory_space<vmem>>, vector<1x1280xf32>
      tpu.vector_store %arg14[%c0_21, %c0_22], %36 {strides = array<i32>} : memref<1x1280xf32, #tpu.memory_space<vmem>>, vector<1x1280xf32>,
    } else {
    }
    %c0 = arith.constant 0 : index
    %c0_1 = arith.constant 0 : index
    %c0_2 = arith.constant 0 : index
    %3 = vector.load %arg2[%c0, %c0_1, %c0_2] : memref<1x128x27xbf16, #tpu.memory_space<vmem>>, vector<1x128x27xbf16>
    %4 = vector.shape_cast %3 : vector<1x128x27xbf16> to vector<128x27xbf16>
    %c0_3 = arith.constant 0 : index
    %c0_4 = arith.constant 0 : index
    %5 = vector.load %arg3[%c0_3, %c0_4] : memref<27x32xbf16, #tpu.memory_space<vmem>>, vector<27x32xbf16>
    %cst = arith.constant dense<0.000000e+00> : vector<128x32xf32>
    %6 = tpu.matmul %4, %5, %cst {dimension_numbers = #tpu.dot_dimension_numbers<[1], [0], [0], [1], [0, 0, 1, 1], [], []>} : vector<128x27xbf16>, vector<27x32xbf16>, vector<128x32xf32> -> vector<128x32xf32>
    %c0_5 = arith.constant 0 : index
    %c0_6 = arith.constant 0 : index
    %7 = vector.load %arg4[%c0_5, %c0_6] : memref<1x32xf32, #tpu.memory_space<vmem>>, vector<1x32xf32>
    %8 = vector.broadcast %7 : vector<1x32xf32> to vector<128x32xf32>
    %9 = arith.addf %6, %8 : vector<128x32xf32>
    %10 = arith.negf %9 : vector<128x32xf32>
    %11 = math.exp %10 : vector<128x32xf32>
    %cst_7 = arith.constant 1.000000e+00 : f32
    %12 = vector.broadcast %cst_7 : f32 to vector<128x32xf32>
    %13 = arith.addf %12, %11 : vector<128x32xf32>
    %14 = arith.divf %12, %13 : vector<128x32xf32>
    %15 = arith.mulf %9, %14 : vector<128x32xf32>
    %16 = arith.truncf %15 : vector<128x32xf32> to vector<128x32xbf16>
    %c0_8 = arith.constant 0 : index
    %c0_9 = arith.constant 0 : index
    %17 = vector.load %arg5[%c0_8, %c0_9] : memref<32x1280xbf16, #tpu.memory_space<vmem>>, vector<32x1280xbf16>
    %cst_10 = arith.constant dense<0.000000e+00> : vector<128x1280xf32>
    %18 = tpu.matmul %16, %17, %cst_10 {dimension_numbers = #tpu.dot_dimension_numbers<[1], [0], [0], [1], [0, 0, 1, 1], [], []>} : vector<128x32xbf16>, vector<32x1280xbf16>, vector<128x1280xf32> -> vector<128x1280xf32>
    %c0_11 = arith.constant 0 : index
    %c0_12 = arith.constant 0 : index
    %19 = vector.load %arg6[%c0_11, %c0_12] : memref<1x1280xf32, #tpu.memory_space<vmem>>, vector<1x1280xf32>
    %20 = vector.broadcast %19 : vector<1x1280xf32> to vector<128x1280xf32>
    %21 = arith.addf %18, %20 : vector<128x1280xf32>
    %22 = arith.negf %21 : vector<128x1280xf32>
    %23 = math.exp %22 : vector<128x1280xf32>
    %cst_13 = arith.constant 1.000000e+00 : f32
    %24 = vector.broadcast %cst_13 : f32 to vector<128x1280xf32>
    %25 = arith.addf %24, %23 : vector<128x1280xf32>
    %26 = arith.divf %24, %25 : vector<128x1280xf32>
    %27 = arith.mulf %21, %26 : vector<128x1280xf32>
    %c0_14 = arith.constant 0 : index
    %c0_15 = arith.constant 0 : index
    %28 = vector.load %arg14[%c0_14, %c0_15] : memref<1x1280xf32, #tpu.memory_space<vmem>>, vector<1x1280xf32>
    %cst_16 = arith.constant dense<0.000000e+00> : vector<1280xf32>
    %29 = vector.multi_reduction <add>, %27, %cst_16 [0] : vector<128x1280xf32> to vector<1280xf32>
    %30 = vector.shape_cast %29 : vector<1280xf32> to vector<1x1280xf32>
    %31 = arith.addf %28, %30 : vector<1x1280xf32>
    %c0_17 = arith.constant 0 : index
    %c0_18 = arith.constant 0 : index
    %32 = vector.load %arg14[%c0_17, %c0_18] : memref<1x1280xf32, #tpu.memory_space<vmem>>, vector<1x1280xf32>
    tpu.vector_store %arg14[%c0_17, %c0_18], %31 {strides = array<i32>} : memref<1x1280xf32, #tpu.memory_space<vmem>>, vector<1x1280xf32>,
    %c1_i32 = arith.constant 1 : i32
    %33 = arith.cmpi eq, %arg1, %c1_i32 : i32
    %34 = arith.extui %33 : i1 to i32
    %c0_i32_19 = arith.constant 0 : i32
    %35 = arith.cmpi ne, %34, %c0_i32_19 : i32
    scf.if %35 {
      %c0_20 = arith.constant 0 : index
      %c0_21 = arith.constant 0 : index
      %36 = vector.load %arg14[%c0_20, %c0_21] : memref<1x1280xf32, #tpu.memory_space<vmem>>, vector<1x1280xf32>
      %cst_22 = arith.constant 3.906250e-03 : f32
      %37 = vector.broadcast %cst_22 : f32 to vector<1x1280xf32>
      %38 = arith.mulf %36, %37 : vector<1x1280xf32>
      %39 = arith.truncf %38 : vector<1x1280xf32> to vector<1x1280xbf16>
      %c0_23 = arith.constant 0 : index
      %c0_24 = arith.constant 0 : index
      %40 = vector.load %arg7[%c0_23, %c0_24] : memref<1280x512xbf16, #tpu.memory_space<vmem>>, vector<1280x512xbf16>
      %cst_25 = arith.constant dense<0.000000e+00> : vector<1x512xf32>
      %41 = tpu.matmul %39, %40, %cst_25 {dimension_numbers = #tpu.dot_dimension_numbers<[1], [0], [0], [1], [0, 0, 1, 1], [], []>} : vector<1x1280xbf16>, vector<1280x512xbf16>, vector<1x512xf32> -> vector<1x512xf32>
      %c0_26 = arith.constant 0 : index
      %c0_27 = arith.constant 0 : index
      %42 = vector.load %arg8[%c0_26, %c0_27] : memref<1x512xf32, #tpu.memory_space<vmem>>, vector<1x512xf32>
      %43 = arith.addf %41, %42 : vector<1x512xf32>
      %cst_28 = arith.constant 5.000000e-01 : f32
      %44 = vector.broadcast %cst_28 : f32 to vector<1x512xf32>
      %45 = arith.mulf %44, %43 : vector<1x512xf32>
      %cst_29 = arith.constant 0.707106769 : f32
      %46 = vector.broadcast %cst_29 : f32 to vector<1x512xf32>
      %47 = arith.mulf %43, %46 : vector<1x512xf32>
      %48 = math.erf %47 : vector<1x512xf32>
      %cst_30 = arith.constant 1.000000e+00 : f32
      %49 = vector.broadcast %cst_30 : f32 to vector<1x512xf32>
      %50 = arith.addf %49, %48 : vector<1x512xf32>
      %51 = arith.mulf %45, %50 : vector<1x512xf32>
      %cst_31 = arith.constant dense<0.000000e+00> : vector<1xf32>
      %52 = vector.multi_reduction <add>, %51, %cst_31 [1] : vector<1x512xf32> to vector<1xf32>
      %53 = vector.shape_cast %52 : vector<1xf32> to vector<1x1xf32>
      %cst_32 = arith.constant 5.120000e+02 : f32
      %54 = vector.broadcast %cst_32 : f32 to vector<1x1xf32>
      %55 = arith.divf %53, %54 : vector<1x1xf32>
      %56 = vector.broadcast %55 : vector<1x1xf32> to vector<1x512xf32>
      %57 = arith.subf %51, %56 : vector<1x512xf32>
      %58 = arith.mulf %57, %57 : vector<1x512xf32>
      %cst_33 = arith.constant dense<0.000000e+00> : vector<1xf32>
      %59 = vector.multi_reduction <add>, %58, %cst_33 [1] : vector<1x512xf32> to vector<1xf32>
      %60 = vector.shape_cast %59 : vector<1xf32> to vector<1x1xf32>
      %cst_34 = arith.constant 5.120000e+02 : f32
      %61 = vector.broadcast %cst_34 : f32 to vector<1x1xf32>
      %62 = arith.divf %60, %61 : vector<1x1xf32>
      %63 = vector.broadcast %55 : vector<1x1xf32> to vector<1x512xf32>
      %64 = arith.subf %51, %63 : vector<1x512xf32>
      %cst_35 = arith.constant 9.99999974E-6 : f32
      %65 = vector.broadcast %cst_35 : f32 to vector<1x1xf32>
      %66 = arith.addf %62, %65 : vector<1x1xf32>
      %67 = math.rsqrt %66 : vector<1x1xf32>
      %68 = vector.broadcast %67 : vector<1x1xf32> to vector<1x512xf32>
      %69 = arith.mulf %64, %68 : vector<1x512xf32>
      %c0_36 = arith.constant 0 : index
      %c0_37 = arith.constant 0 : index
      %70 = vector.load %arg9[%c0_36, %c0_37] : memref<1x512xf32, #tpu.memory_space<vmem>>, vector<1x512xf32>
      %71 = arith.mulf %69, %70 : vector<1x512xf32>
      %c0_38 = arith.constant 0 : index
      %c0_39 = arith.constant 0 : index
      %72 = vector.load %arg10[%c0_38, %c0_39] : memref<1x512xf32, #tpu.memory_space<vmem>>, vector<1x512xf32>
      %73 = arith.addf %71, %72 : vector<1x512xf32>
      %c0_40 = arith.constant 0 : index
      %c0_41 = arith.constant 0 : index
      %74 = vector.load %arg11[%c0_40, %c0_41] : memref<512x7xf32, #tpu.memory_space<vmem>>, vector<512x7xf32>
      %cst_42 = arith.constant dense<0.000000e+00> : vector<1x7xf32>
      %75 = tpu.matmul %73, %74, %cst_42 {dimension_numbers = #tpu.dot_dimension_numbers<[1], [0], [0], [1], [0, 0, 1, 1], [], []>} : vector<1x512xf32>, vector<512x7xf32>, vector<1x7xf32> -> vector<1x7xf32>
      %c0_43 = arith.constant 0 : index
      %c0_44 = arith.constant 0 : index
      %76 = vector.load %arg12[%c0_43, %c0_44] : memref<1x7xf32, #tpu.memory_space<vmem>>, vector<1x7xf32>
      %77 = arith.addf %75, %76 : vector<1x7xf32>
      %c0_45 = arith.constant 0 : index
      %c0_46 = arith.constant 0 : index
      %c0_47 = arith.constant 0 : index
      %78 = vector.load %arg13[%c0_45, %c0_46, %c0_47] : memref<1x1x7xf32, #tpu.memory_space<vmem>>, vector<1x1x7xf32>
      %79 = vector.shape_cast %78 : vector<1x1x7xf32> to vector<1x7xf32>
      %80 = vector.shape_cast %77 : vector<1x7xf32> to vector<1x1x7xf32>
      tpu.vector_store %arg13[%c0_45, %c0_46, %c0_47], %80 {strides = array<i32>} : memref<1x1x7xf32, #tpu.memory_space<vmem>>, vector<1x1x7xf32>,
    } else {
    }
    return
  }
  func.func @transform_0(%arg0: i32, %arg1: i32) -> (i32, i32, i32) {
    %c0_i32 = arith.constant 0 : i32
    %c0_i32_0 = arith.constant 0 : i32
    return %arg0, %arg1, %c0_i32 : i32, i32, i32
  }
  func.func @transform_1(%arg0: i32, %arg1: i32) -> (i32, i32) {
    %c0_i32 = arith.constant 0 : i32
    %c0_i32_0 = arith.constant 0 : i32
    %c0_i32_1 = arith.constant 0 : i32
    return %c0_i32, %c0_i32_0 : i32, i32
  }
  func.func @transform_2(%arg0: i32, %arg1: i32) -> (i32, i32) {
    %c0_i32 = arith.constant 0 : i32
    %c0_i32_0 = arith.constant 0 : i32
    %c0_i32_1 = arith.constant 0 : i32
    return %c0_i32, %c0_i32_0 : i32, i32
  }
  func.func @transform_3(%arg0: i32, %arg1: i32) -> (i32, i32) {
    %c0_i32 = arith.constant 0 : i32
    %c0_i32_0 = arith.constant 0 : i32
    %c0_i32_1 = arith.constant 0 : i32
    return %c0_i32, %c0_i32_0 : i32, i32
  }
  func.func @transform_4(%arg0: i32, %arg1: i32) -> (i32, i32) {
    %c0_i32 = arith.constant 0 : i32
    %c0_i32_0 = arith.constant 0 : i32
    %c0_i32_1 = arith.constant 0 : i32
    return %c0_i32, %c0_i32_0 : i32, i32
  }
  func.func @transform_5(%arg0: i32, %arg1: i32) -> (i32, i32) {
    %c0_i32 = arith.constant 0 : i32
    %c0_i32_0 = arith.constant 0 : i32
    %c0_i32_1 = arith.constant 0 : i32
    return %c0_i32, %c0_i32_0 : i32, i32
  }
  func.func @transform_6(%arg0: i32, %arg1: i32) -> (i32, i32) {
    %c0_i32 = arith.constant 0 : i32
    %c0_i32_0 = arith.constant 0 : i32
    %c0_i32_1 = arith.constant 0 : i32
    return %c0_i32, %c0_i32_0 : i32, i32
  }
  func.func @transform_7(%arg0: i32, %arg1: i32) -> (i32, i32) {
    %c0_i32 = arith.constant 0 : i32
    %c0_i32_0 = arith.constant 0 : i32
    %c0_i32_1 = arith.constant 0 : i32
    return %c0_i32, %c0_i32_0 : i32, i32
  }
  func.func @transform_8(%arg0: i32, %arg1: i32) -> (i32, i32) {
    %c0_i32 = arith.constant 0 : i32
    %c0_i32_0 = arith.constant 0 : i32
    %c0_i32_1 = arith.constant 0 : i32
    return %c0_i32, %c0_i32_0 : i32, i32
  }
  func.func @transform_9(%arg0: i32, %arg1: i32) -> (i32, i32) {
    %c0_i32 = arith.constant 0 : i32
    %c0_i32_0 = arith.constant 0 : i32
    %c0_i32_1 = arith.constant 0 : i32
    return %c0_i32, %c0_i32_0 : i32, i32
  }
  func.func @transform_10(%arg0: i32, %arg1: i32) -> (i32, i32) {
    %c0_i32 = arith.constant 0 : i32
    %c0_i32_0 = arith.constant 0 : i32
    %c0_i32_1 = arith.constant 0 : i32
    return %c0_i32, %c0_i32_0 : i32, i32
  }
  func.func @transform_11(%arg0: i32, %arg1: i32) -> (i32, i32, i32) {
    %c0_i32 = arith.constant 0 : i32
    %c0_i32_0 = arith.constant 0 : i32
    %c0_i32_1 = arith.constant 0 : i32
    return %arg0, %c0_i32, %c0_i32_0 : i32, i32, i32
  }
}

</mosaic_0001>

<llo_original>
// kernel: enhanced_fernet_forward.1
$region0: #{enhanced_fernet_forward.1}
  #allocation0 [shape = 'u32[]', space=smem, size = 0x4, offset = 0x4, fixed_abs, tag = 'smem constant byte address 0x4 - core index']
  #allocation1 [shape = 'u32[144,128]{1,0:T(1,128)}', space=vmem, size = 0x12000, scoped, tag = 'internal scratch']
  #allocation2 [shape = 'f32[1,1280]{1,0:T(1,128)}', space=vmem, size = 0x1400, scoped, tag = 'scratch operand']
  %s0 = inlined_call_operand.vmem [shape: bf16[2,256,27], index: 0, kind: input, shape index: {}]
  %s1 = inlined_call_operand.vmem [shape: bf16[27,32], index: 1, kind: input, shape index: {}]
  %s2 = inlined_call_operand.vmem [shape: f32[1,32], index: 2, kind: input, shape index: {}]
  %s3 = inlined_call_operand.vmem [shape: bf16[32,1280], index: 3, kind: input, shape index: {}]
  %s4 = inlined_call_operand.vmem [shape: f32[1,1280], index: 4, kind: input, shape index: {}]
  %s5 = inlined_call_operand.vmem [shape: bf16[1280,512], index: 5, kind: input, shape index: {}]
  %s6 = inlined_call_operand.vmem [shape: f32[1,512], index: 6, kind: input, shape index: {}]
  %s7 = inlined_call_operand.vmem [shape: f32[1,512], index: 7, kind: input, shape index: {}]
  %s8 = inlined_call_operand.vmem [shape: f32[1,512], index: 8, kind: input, shape index: {}]
  %s9 = inlined_call_operand.vmem [shape: f32[512,7], index: 9, kind: input, shape index: {}]
  %s10 = inlined_call_operand.vmem [shape: f32[1,7], index: 10, kind: input, shape index: {}]
  %s11 = inlined_call_operand.hbm [shape: f32[2,1,7], index: 11, kind: output, shape index: {}]
  %s12 = sld [smem:[#allocation0]]
  $region85: #{enhanced_fernet_forward.1} parent=0
    _
  %s14 = ssub.s32 1, %s12
  %s15 = scalar_select 0, %s14, %s12
  $region1: #{enhanced_fernet_forward.1} parent=0
    #allocation3 [shape = 'u8[1024]{0}', space=vmem, size = 0x400, scoped, tag = 'output window, operand 0']
    #allocation4 [shape = 's32[2]{0}', space=sflag, size = 0x8, scoped, tag = 'scoped memory for enhanced_fernet_forward.1']
    %16 = vsyncpa [#allocation4], 0
    %s17 = scalar_lea.sflag [#allocation4], 1
    %18 = vsyncpa %s17, 0
    loop: start=0, step=1, limit=6
    $region2: #{enhanced_fernet_forward.1} parent=1 // loop_pre_header
      _
    $region3: #{enhanced_fernet_forward.1} parent=1 // loop_header
      %s20 = sphi 0, %s24
      %p21 = scmp.ge.s32.totalorder %s20, 6
      %s27 = sphi 0, %s39
      %s28 = sphi 0, %s35
      %s29 = sphi 0, %s27
      %s30 = sphi 0, %s28
      %s31 = sphi 0, %s29
      %s32 = sphi 0, %s30
      %s44 = sphi 0, %s46
      %s47 = sphi 0, %s44
      %s48 = sphi 0, %s47
      %s64 = sphi 0, %s48
      %s68 = sphi 0, %s68
      %s70 = sphi 0, %s68
      %s71 = sphi 0, %s70
      %s85 = sphi 0, %s71
      %s89 = sphi 0, %s89
      %s91 = sphi 0, %s89
      %s92 = sphi 0, %s91
      %s106 = sphi 0, %s92
      %s110 = sphi 0, %s110
      %s112 = sphi 0, %s110
      %s113 = sphi 0, %s112
      %s127 = sphi 0, %s113
      %s131 = sphi 0, %s131
      %s133 = sphi 0, %s131
      %s134 = sphi 0, %s133
      %s148 = sphi 0, %s134
      %s152 = sphi 0, %s152
      %s154 = sphi 0, %s152
      %s155 = sphi 0, %s154
      %s169 = sphi 0, %s155
      %s173 = sphi 0, %s173
      %s175 = sphi 0, %s173
      %s176 = sphi 0, %s175
      %s190 = sphi 0, %s176
      %s194 = sphi 0, %s194
      %s196 = sphi 0, %s194
      %s197 = sphi 0, %s196
      %s211 = sphi 0, %s197
      %s215 = sphi 0, %s215
      %s217 = sphi 0, %s215
      %s218 = sphi 0, %s217
      %s232 = sphi 0, %s218
      %s236 = sphi 0, %s236
      %s238 = sphi 0, %s236
      %s239 = sphi 0, %s238
      %s253 = sphi 0, %s239
      %s257 = sphi 0, %s257
      %s259 = sphi 0, %s257
      %s260 = sphi 0, %s259
      %s274 = sphi 0, %s260
      %s280 = sphi 0, %s282
      %s283 = sphi 0, %s280
      %s284 = sphi 0, %s283
      %s300 = sphi 0, %s284
    $region4: #{enhanced_fernet_forward.1} parent=1 // loop_header_branch
      %23 = sbr.rel (%p21) target = $region8
    $region5: #{enhanced_fernet_forward.1} parent=1 // loop_body
      %s25 = ssub.s32 %s20, 1
      %s26 = ssub.s32 %s20, 2
      %s33 = sadd.s32 1, %s28
      %p34 = scmp.ge.s32.totalorder %s33, 2
      %s35 = scalar_select %p34, 0, %s33
      %s36 = sadd.s32 1, %s27
      %s37 = scalar_select %p34, %s36, %s27
      %p38 = scmp.ge.s32.totalorder %s37, 2
      %s39 = scalar_select %p38, 0, %s37
      %s40 = ssub.s32 %s27, %s39
      %s41 = ssub.s32 %s28, %s35
      %s42 = sor.u32 %s40, %s41
      %p43 = scmp.eq.s32.totalorder %s42, 0
      %s45 = sadd.s32 %s44, 1
      %s46 = scalar_select %p43, %s44, %s45
      %p49 = pneg %p43
      %p50 = scmp.eq.s32.totalorder %s20, 3
      %p51 = por %p49, %p50
      %p52 = scmp.ne.s32.totalorder %s44, %s47
      %p53 = scmp.eq.s32.totalorder %s20, 0
      %p54 = por %p52, %p53
      %p55 = scmp.ne.s32.totalorder %s44, %s47
      %p56 = scmp.eq.s32.totalorder %s25, 3
      %p57 = por %p55, %p56
      %p58 = scmp.ne.s32.totalorder %s47, %s48
      %p59 = scmp.eq.s32.totalorder %s25, 0
      %p60 = por %p58, %p59
      %p61 = scmp.ne.s32.totalorder %s47, %s48
      %p62 = scmp.eq.s32.totalorder %s26, 3
      %p63 = por %p61, %p62
      %p65 = scmp.ne.s32.totalorder %s48, %s64
      %p66 = scmp.eq.s32.totalorder %s26, 0
      %p67 = por %p65, %p66
      %s69 = sadd.s32 %s68, 1
      %p72 = scmp.eq.s32.totalorder %s20, 3
      %p73 = scmp.ne.s32.totalorder %s68, %s70
      %p74 = scmp.eq.s32.totalorder %s20, 0
      %p75 = por %p73, %p74
      %p76 = scmp.ne.s32.totalorder %s68, %s70
      %p77 = scmp.eq.s32.totalorder %s25, 3
      %p78 = por %p76, %p77
      %p79 = scmp.ne.s32.totalorder %s70, %s71
      %p80 = scmp.eq.s32.totalorder %s25, 0
      %p81 = por %p79, %p80
      %p82 = scmp.ne.s32.totalorder %s70, %s71
      %p83 = scmp.eq.s32.totalorder %s26, 3
      %p84 = por %p82, %p83
      %p86 = scmp.ne.s32.totalorder %s71, %s85
      %p87 = scmp.eq.s32.totalorder %s26, 0
      %p88 = por %p86, %p87
      %s90 = sadd.s32 %s89, 1
      %p93 = scmp.eq.s32.totalorder %s20, 3
      %p94 = scmp.ne.s32.totalorder %s89, %s91
      %p95 = scmp.eq.s32.totalorder %s20, 0
      %p96 = por %p94, %p95
      %p97 = scmp.ne.s32.totalorder %s89, %s91
      %p98 = scmp.eq.s32.totalorder %s25, 3
      %p99 = por %p97, %p98
      %p100 = scmp.ne.s32.totalorder %s91, %s92
      %p101 = scmp.eq.s32.totalorder %s25, 0
      %p102 = por %p100, %p101
      %p103 = scmp.ne.s32.totalorder %s91, %s92
      %p104 = scmp.eq.s32.totalorder %s26, 3
      %p105 = por %p103, %p104
      %p107 = scmp.ne.s32.totalorder %s92, %s106
      %p108 = scmp.eq.s32.totalorder %s26, 0
      %p109 = por %p107, %p108
      %s111 = sadd.s32 %s110, 1
      %p114 = scmp.eq.s32.totalorder %s20, 3
      %p115 = scmp.ne.s32.totalorder %s110, %s112
      %p116 = scmp.eq.s32.totalorder %s20, 0
      %p117 = por %p115, %p116
      %p118 = scmp.ne.s32.totalorder %s110, %s112
      %p119 = scmp.eq.s32.totalorder %s25, 3
      %p120 = por %p118, %p119
      %p121 = scmp.ne.s32.totalorder %s112, %s113
      %p122 = scmp.eq.s32.totalorder %s25, 0
      %p123 = por %p121, %p122
      %p124 = scmp.ne.s32.totalorder %s112, %s113
      %p125 = scmp.eq.s32.totalorder %s26, 3
      %p126 = por %p124, %p125
      %p128 = scmp.ne.s32.totalorder %s113, %s127
      %p129 = scmp.eq.s32.totalorder %s26, 0
      %p130 = por %p128, %p129
      %s132 = sadd.s32 %s131, 1
      %p135 = scmp.eq.s32.totalorder %s20, 3
      %p136 = scmp.ne.s32.totalorder %s131, %s133
      %p137 = scmp.eq.s32.totalorder %s20, 0
      %p138 = por %p136, %p137
      %p139 = scmp.ne.s32.totalorder %s131, %s133
      %p140 = scmp.eq.s32.totalorder %s25, 3
      %p141 = por %p139, %p140
      %p142 = scmp.ne.s32.totalorder %s133, %s134
      %p143 = scmp.eq.s32.totalorder %s25, 0
      %p144 = por %p142, %p143
      %p145 = scmp.ne.s32.totalorder %s133, %s134
      %p146 = scmp.eq.s32.totalorder %s26, 3
      %p147 = por %p145, %p146
      %p149 = scmp.ne.s32.totalorder %s134, %s148
      %p150 = scmp.eq.s32.totalorder %s26, 0
      %p151 = por %p149, %p150
      %s153 = sadd.s32 %s152, 1
      %p156 = scmp.eq.s32.totalorder %s20, 3
      %p157 = scmp.ne.s32.totalorder %s152, %s154
      %p158 = scmp.eq.s32.totalorder %s20, 0
      %p159 = por %p157, %p158
      %p160 = scmp.ne.s32.totalorder %s152, %s154
      %p161 = scmp.eq.s32.totalorder %s25, 3
      %p162 = por %p160, %p161
      %p163 = scmp.ne.s32.totalorder %s154, %s155
      %p164 = scmp.eq.s32.totalorder %s25, 0
      %p165 = por %p163, %p164
      %p166 = scmp.ne.s32.totalorder %s154, %s155
      %p167 = scmp.eq.s32.totalorder %s26, 3
      %p168 = por %p166, %p167
      %p170 = scmp.ne.s32.totalorder %s155, %s169
      %p171 = scmp.eq.s32.totalorder %s26, 0
      %p172 = por %p170, %p171
      %s174 = sadd.s32 %s173, 1
      %p177 = scmp.eq.s32.totalorder %s20, 3
      %p178 = scmp.ne.s32.totalorder %s173, %s175
      %p179 = scmp.eq.s32.totalorder %s20, 0
      %p180 = por %p178, %p179
      %p181 = scmp.ne.s32.totalorder %s173, %s175
      %p182 = scmp.eq.s32.totalorder %s25, 3
      %p183 = por %p181, %p182
      %p184 = scmp.ne.s32.totalorder %s175, %s176
      %p185 = scmp.eq.s32.totalorder %s25, 0
      %p186 = por %p184, %p185
      %p187 = scmp.ne.s32.totalorder %s175, %s176
      %p188 = scmp.eq.s32.totalorder %s26, 3
      %p189 = por %p187, %p188
      %p191 = scmp.ne.s32.totalorder %s176, %s190
      %p192 = scmp.eq.s32.totalorder %s26, 0
      %p193 = por %p191, %p192
      %s195 = sadd.s32 %s194, 1
      %p198 = scmp.eq.s32.totalorder %s20, 3
      %p199 = scmp.ne.s32.totalorder %s194, %s196
      %p200 = scmp.eq.s32.totalorder %s20, 0
      %p201 = por %p199, %p200
      %p202 = scmp.ne.s32.totalorder %s194, %s196
      %p203 = scmp.eq.s32.totalorder %s25, 3
      %p204 = por %p202, %p203
      %p205 = scmp.ne.s32.totalorder %s196, %s197
      %p206 = scmp.eq.s32.totalorder %s25, 0
      %p207 = por %p205, %p206
      %p208 = scmp.ne.s32.totalorder %s196, %s197
      %p209 = scmp.eq.s32.totalorder %s26, 3
      %p210 = por %p208, %p209
      %p212 = scmp.ne.s32.totalorder %s197, %s211
      %p213 = scmp.eq.s32.totalorder %s26, 0
      %p214 = por %p212, %p213
      %s216 = sadd.s32 %s215, 1
      %p219 = scmp.eq.s32.totalorder %s20, 3
      %p220 = scmp.ne.s32.totalorder %s215, %s217
      %p221 = scmp.eq.s32.totalorder %s20, 0
      %p222 = por %p220, %p221
      %p223 = scmp.ne.s32.totalorder %s215, %s217
      %p224 = scmp.eq.s32.totalorder %s25, 3
      %p225 = por %p223, %p224
      %p226 = scmp.ne.s32.totalorder %s217, %s218
      %p227 = scmp.eq.s32.totalorder %s25, 0
      %p228 = por %p226, %p227
      %p229 = scmp.ne.s32.totalorder %s217, %s218
      %p230 = scmp.eq.s32.totalorder %s26, 3
      %p231 = por %p229, %p230
      %p233 = scmp.ne.s32.totalorder %s218, %s232
      %p234 = scmp.eq.s32.totalorder %s26, 0
      %p235 = por %p233, %p234
      %s237 = sadd.s32 %s236, 1
      %p240 = scmp.eq.s32.totalorder %s20, 3
      %p241 = scmp.ne.s32.totalorder %s236, %s238
      %p242 = scmp.eq.s32.totalorder %s20, 0
      %p243 = por %p241, %p242
      %p244 = scmp.ne.s32.totalorder %s236, %s238
      %p245 = scmp.eq.s32.totalorder %s25, 3
      %p246 = por %p244, %p245
      %p247 = scmp.ne.s32.totalorder %s238, %s239
      %p248 = scmp.eq.s32.totalorder %s25, 0
      %p249 = por %p247, %p248
      %p250 = scmp.ne.s32.totalorder %s238, %s239
      %p251 = scmp.eq.s32.totalorder %s26, 3
      %p252 = por %p250, %p251
      %p254 = scmp.ne.s32.totalorder %s239, %s253
      %p255 = scmp.eq.s32.totalorder %s26, 0
      %p256 = por %p254, %p255
      %s258 = sadd.s32 %s257, 1
      %p261 = scmp.eq.s32.totalorder %s20, 3
      %p262 = scmp.ne.s32.totalorder %s257, %s259
      %p263 = scmp.eq.s32.totalorder %s20, 0
      %p264 = por %p262, %p263
      %p265 = scmp.ne.s32.totalorder %s257, %s259
      %p266 = scmp.eq.s32.totalorder %s25, 3
      %p267 = por %p265, %p266
      %p268 = scmp.ne.s32.totalorder %s259, %s260
      %p269 = scmp.eq.s32.totalorder %s25, 0
      %p270 = por %p268, %p269
      %p271 = scmp.ne.s32.totalorder %s259, %s260
      %p272 = scmp.eq.s32.totalorder %s26, 3
      %p273 = por %p271, %p272
      %p275 = scmp.ne.s32.totalorder %s260, %s274
      %p276 = scmp.eq.s32.totalorder %s26, 0
      %p277 = por %p275, %p276
      %s278 = ssub.s32 %s27, %s39
      %p279 = scmp.eq.s32.totalorder %s278, 0
      %s281 = sadd.s32 %s280, 1
      %s282 = scalar_select %p279, %s280, %s281
      %p285 = pneg %p279
      %p286 = scmp.eq.s32.totalorder %s20, 3
      %p287 = por %p285, %p286
      %p288 = scmp.ne.s32.totalorder %s280, %s283
      %p289 = scmp.eq.s32.totalorder %s20, 0
      %p290 = por %p288, %p289
      %p291 = scmp.ne.s32.totalorder %s280, %s283
      %p292 = scmp.eq.s32.totalorder %s25, 3
      %p293 = por %p291, %p292
      %p294 = scmp.ne.s32.totalorder %s283, %s284
      %p295 = scmp.eq.s32.totalorder %s25, 0
      %p296 = por %p294, %p295
      %p297 = scmp.ne.s32.totalorder %s283, %s284
      %p298 = scmp.eq.s32.totalorder %s26, 3
      %p299 = por %p297, %p298
      %p301 = scmp.ne.s32.totalorder %s284, %s300
      %p302 = scmp.eq.s32.totalorder %s26, 0
      %p303 = por %p301, %p302
      %p304 = scmp.le.s32.totalorder 1, %s20
      %p305 = scmp.lt.s32.totalorder %s20, 5
      %p306 = pnand %p304, %p305
      %p307 = pneg %p306
      // Predicated region
      $region9: #{enhanced_fernet_forward.1} parent=5 // pred_check
        _
      $region10: #{enhanced_fernet_forward.1} parent=5 // pred_check_branch
        %309 = sbr.rel (%p306) target = $region12
      $region11: #{enhanced_fernet_forward.1} parent=5 // pred_region
        %s310 = ssub.s32 %s20, 1
        // Predicated region
        $region13: #{enhanced_fernet_forward.1} parent=11 // pred_check
          %p311 = pneg %p81
        $region14: #{enhanced_fernet_forward.1} parent=11 // pred_check_branch
          %313 = sbr.rel (%p311) target = $region16
        $region15: #{enhanced_fernet_forward.1} parent=11 // pred_region
          _
        $region16: #{enhanced_fernet_forward.1} parent=11 // pred_fallthru
          _
        // Predicated region
        $region17: #{enhanced_fernet_forward.1} parent=11 // pred_check
          %p314 = pneg %p102
        $region18: #{enhanced_fernet_forward.1} parent=11 // pred_check_branch
          %316 = sbr.rel (%p314) target = $region20
        $region19: #{enhanced_fernet_forward.1} parent=11 // pred_region
          _
        $region20: #{enhanced_fernet_forward.1} parent=11 // pred_fallthru
          _
        // Predicated region
        $region21: #{enhanced_fernet_forward.1} parent=11 // pred_check
          %p317 = pneg %p123
        $region22: #{enhanced_fernet_forward.1} parent=11 // pred_check_branch
          %319 = sbr.rel (%p317) target = $region24
        $region23: #{enhanced_fernet_forward.1} parent=11 // pred_region
          _
        $region24: #{enhanced_fernet_forward.1} parent=11 // pred_fallthru
          _
        // Predicated region
        $region25: #{enhanced_fernet_forward.1} parent=11 // pred_check
          %p320 = pneg %p144
        $region26: #{enhanced_fernet_forward.1} parent=11 // pred_check_branch
          %322 = sbr.rel (%p320) target = $region28
        $region27: #{enhanced_fernet_forward.1} parent=11 // pred_region
          _
        $region28: #{enhanced_fernet_forward.1} parent=11 // pred_fallthru
          _
        // Predicated region
        $region29: #{enhanced_fernet_forward.1} parent=11 // pred_check
          %p323 = pneg %p165
        $region30: #{enhanced_fernet_forward.1} parent=11 // pred_check_branch
          %325 = sbr.rel (%p323) target = $region32
        $region31: #{enhanced_fernet_forward.1} parent=11 // pred_region
          _
        $region32: #{enhanced_fernet_forward.1} parent=11 // pred_fallthru
          _
        // Predicated region
        $region33: #{enhanced_fernet_forward.1} parent=11 // pred_check
          %p326 = pneg %p186
        $region34: #{enhanced_fernet_forward.1} parent=11 // pred_check_branch
          %328 = sbr.rel (%p326) target = $region36
        $region35: #{enhanced_fernet_forward.1} parent=11 // pred_region
          _
        $region36: #{enhanced_fernet_forward.1} parent=11 // pred_fallthru
          _
        // Predicated region
        $region37: #{enhanced_fernet_forward.1} parent=11 // pred_check
          %p329 = pneg %p207
        $region38: #{enhanced_fernet_forward.1} parent=11 // pred_check_branch
          %331 = sbr.rel (%p329) target = $region40
        $region39: #{enhanced_fernet_forward.1} parent=11 // pred_region
          _
        $region40: #{enhanced_fernet_forward.1} parent=11 // pred_fallthru
          _
        // Predicated region
        $region41: #{enhanced_fernet_forward.1} parent=11 // pred_check
          %p332 = pneg %p228
        $region42: #{enhanced_fernet_forward.1} parent=11 // pred_check_branch
          %334 = sbr.rel (%p332) target = $region44
        $region43: #{enhanced_fernet_forward.1} parent=11 // pred_region
          _
        $region44: #{enhanced_fernet_forward.1} parent=11 // pred_fallthru
          _
        // Predicated region
        $region45: #{enhanced_fernet_forward.1} parent=11 // pred_check
          %p335 = pneg %p249
        $region46: #{enhanced_fernet_forward.1} parent=11 // pred_check_branch
          %337 = sbr.rel (%p335) target = $region48
        $region47: #{enhanced_fernet_forward.1} parent=11 // pred_region
          _
        $region48: #{enhanced_fernet_forward.1} parent=11 // pred_fallthru
          _
        // Predicated region
        $region49: #{enhanced_fernet_forward.1} parent=11 // pred_check
          %p338 = pneg %p270
        $region50: #{enhanced_fernet_forward.1} parent=11 // pred_check_branch
          %340 = sbr.rel (%p338) target = $region52
        $region51: #{enhanced_fernet_forward.1} parent=11 // pred_region
          _
        $region52: #{enhanced_fernet_forward.1} parent=11 // pred_fallthru
          _
      $region12: #{enhanced_fernet_forward.1} parent=5 // pred_fallthru
        _
      %p341 = scmp.lt.s32.totalorder %s20, 4
      // Predicated region
      $region53: #{enhanced_fernet_forward.1} parent=5 // pred_check
        %p342 = pneg %p341
      $region54: #{enhanced_fernet_forward.1} parent=5 // pred_check_branch
        %344 = sbr.rel (%p342) target = $region56
      $region55: #{enhanced_fernet_forward.1} parent=5 // pred_region
        // Predicated region
        $region57: #{enhanced_fernet_forward.1} parent=55 // pred_check
          %p345 = pneg %p54
        $region58: #{enhanced_fernet_forward.1} parent=55 // pred_check_branch
          %347 = sbr.rel (%p345) target = $region60
        $region59: #{enhanced_fernet_forward.1} parent=55 // pred_region
          %s348 = smul.u32 16, %s28
          %p349 = scmp.lt.s32.totalorder %s27, 1
          %s350 = scalar_select %p349, %s27, 1
          %p351 = scmp.lt.s32.totalorder %s348, 31
          %s352 = scalar_select %p351, %s348, 31
          %s353 = smul.addr %s350, 32
          %s354 = sadd.s32 %s352, %s353
          %s355 = smul.addr %s354, 4
          %s356 = scalar_lea.vmem %s0, %s355
          %s357 = smul.u32 16, %s28
        $region60: #{enhanced_fernet_forward.1} parent=55 // pred_fallthru
          _
      $region56: #{enhanced_fernet_forward.1} parent=5 // pred_fallthru
        _
      %p358 = scmp.le.s32.totalorder 1, %s20
      %p359 = scmp.lt.s32.totalorder %s20, 5
      %p360 = pnand %p358, %p359
      %p361 = pneg %p360
      // Predicated region
      $region61: #{enhanced_fernet_forward.1} parent=5 // pred_check
        _
      $region62: #{enhanced_fernet_forward.1} parent=5 // pred_check_branch
        %363 = sbr.rel (%p360) target = $region64
      $region63: #{enhanced_fernet_forward.1} parent=5 // pred_region
        %s364 = ssub.s32 %s20, 1
        %s365 = smul.u32 16, %s30
        %p366 = scmp.lt.s32.totalorder %s29, 1
        %s367 = scalar_select %p366, %s29, 1
        %p368 = scmp.lt.s32.totalorder %s365, 31
        %s369 = scalar_select %p368, %s365, 31
        %s370 = smul.addr %s367, 32
        %s371 = sadd.s32 %s369, %s370
        %s372 = smul.addr %s371, 4
        %s373 = scalar_lea.vmem %s0, %s372
        %p374 = pneg %p60
        %p375 = pneg %p57
        %p376 = pneg %p81
        %p377 = pneg %p78
        %p378 = pneg %p102
        %p379 = pneg %p99
        %p380 = pneg %p123
        %p381 = pneg %p120
        %p382 = pneg %p144
        %p383 = pneg %p141
        %p384 = pneg %p165
        %p385 = pneg %p162
        %p386 = pneg %p186
        %p387 = pneg %p183
        %p388 = pneg %p207
        %p389 = pneg %p204
        %p390 = pneg %p228
        %p391 = pneg %p225
        %p392 = pneg %p249
        %p393 = pneg %p246
        %p394 = pneg %p270
        %p395 = pneg %p267
        %p396 = pneg %p296
        %p397 = pneg %p293
        %s398 = sand.u32 %s283, 1
        %s399 = scalar_lea.sflag [#allocation4], %s398
        %s400 = sand.u32 %s283, 1
        %s401 = scalar_lea.vmem [#allocation3], %s400
        %s402 = smul.u32 16, %s30
        %p403 = scmp.lt.s32.totalorder %s29, 1
        %s404 = scalar_select %p403, %s29, 1
        %p405 = scmp.lt.s32.totalorder %s402, 31
        %s406 = scalar_select %p405, %s402, 31
        %s407 = smul.addr %s404, 32
        %s408 = sadd.s32 %s406, %s407
        %s409 = smul.addr %s408, 4
        %s410 = scalar_lea.vmem %s0, %s409
        %s411 = smul.u32 16, %s30
        %p413 = scmp.eq.s32.totalorder %s30, 0
        // Predicated region
        $region65: #{enhanced_fernet_forward.1} parent=63 // pred_check
          %p414 = pneg %p413
        $region66: #{enhanced_fernet_forward.1} parent=63 // pred_check_branch
          %416 = sbr.rel (%p414) target = $region68
        $region67: #{enhanced_fernet_forward.1} parent=63 // pred_region
          %417 = vst [vmem:[#allocation2] sm:$0xff] 0.0
          %v418 = vlaneseq
          %vm419 = vcmp.ge.s32.totalorder %v418, 0
          %vm420 = vcmp.lt.s32.totalorder %v418, 256
          %vm421 = vmand %vm419, %vm420
          %422 = vst.msk [vmem:[#allocation2 + $0x8] sm:$0x3] %vm421, 0.0
        $region68: #{enhanced_fernet_forward.1} parent=63 // pred_fallthru
          _
        %v423 = vld [vmem:[%s410] sm:$0xf]
        %v424 = vld [vmem:[%s410 + $0x4] sm:$0xf]
        %v425 = vld [vmem:[%s410 + $0x8] sm:$0xf]
        %v426 = vld [vmem:[%s410 + $0xc] sm:$0xf]
        %v427 = vld [vmem:[%s410 + $0x10] sm:$0xf]
        %v428 = vld [vmem:[%s410 + $0x14] sm:$0xf]
        %v429 = vld [vmem:[%s410 + $0x18] sm:$0xf]
        %v430 = vld [vmem:[%s410 + $0x1c] sm:$0xf]
        %v431 = vld [vmem:[%s410 + $0x20] sm:$0xf]
        %v432 = vld [vmem:[%s410 + $0x24] sm:$0xf]
        %v433 = vld [vmem:[%s410 + $0x28] sm:$0xf]
        %v434 = vld [vmem:[%s410 + $0x2c] sm:$0xf]
        %v435 = vld [vmem:[%s410 + $0x30] sm:$0xf]
        %v436 = vld [vmem:[%s410 + $0x34] sm:$0xf]
        %v437 = vld [vmem:[%s410 + $0x38] sm:$0xf]
        %v438 = vld [vmem:[%s410 + $0x3c] sm:$0xf]
        %v439 = vld [vmem:[%s1] sm:$0xf]
        %v440 = vld [vmem:[%s1 + $0x4] sm:$0xf]
        %v441 = vld [vmem:[%s1 + $0x8] sm:$0xf]
        %v442 = vld [vmem:[%s1 + $0xc] sm:$0x3]
        %v443 = vld [vmem:[%s2] sm:$0x1]
        %v445 = vlaneseq
        %v446 = vshrl.u32 %v445, 7
        %v447 = vsub.s32 0, %v446
        %v448 = vrot.slane %v443, %v447
        %v466 = vunpack.c.l.b16 %v423
        %v467 = vunpack.c.l.b16 %v424
        %v468 = vunpack.c.l.b16 %v425
        %v469 = vunpack.c.l.b16 %v426
        %v470 = vunpack.c.l.b16 %v427
        %v471 = vunpack.c.l.b16 %v428
        %v472 = vunpack.c.l.b16 %v429
        %v473 = vunpack.c.l.b16 %v430
        %v474 = vunpack.c.l.b16 %v431
        %v475 = vunpack.c.l.b16 %v432
        %v476 = vunpack.c.l.b16 %v433
        %v477 = vunpack.c.l.b16 %v434
        %v478 = vunpack.c.l.b16 %v435
        %v479 = vunpack.c.l.b16 %v436
        %v480 = vunpack.c.l.b16 %v437
        %v481 = vunpack.c.l.b16 %v438
        %v482 = vpack.c.b16 %v467, %v466
        %v483 = vpack.c.b16 %v469, %v468
        %v484 = vpack.c.b16 %v471, %v470
        %v485 = vpack.c.b16 %v473, %v472
        %v486 = vpack.c.b16 %v475, %v474
        %v487 = vpack.c.b16 %v477, %v476
        %v488 = vpack.c.b16 %v479, %v478
        %v489 = vpack.c.b16 %v481, %v480
        %v494 = vunpack.c.l.b16 %v439
        %v495 = vunpack.c.l.b16 %v440
        %v496 = vunpack.c.l.b16 %v441
        %v497 = vunpack.c.l.b16 %v442
        %v498 = vpack.c.b16 %v495, %v494
        %v499 = vpack.c.b16 %v497, %v496
        %vm501 = vcmask 220160
        %v503 = vsel %vm501, %v482, 0
        %v506 = vsel %vm501, %v483, 0
        %v509 = vsel %vm501, %v484, 0
        %v512 = vsel %vm501, %v485, 0
        %v515 = vsel %vm501, %v486, 0
        %v518 = vsel %vm501, %v487, 0
        %v521 = vsel %vm501, %v488, 0
        %v524 = vsel %vm501, %v489, 0
        %vm526 = vcmask 1044480
        %vm527 = vcmask 1045504
        %v528 = vsel %vm526, 4294967295, 65535
        %v529 = vsel %vm527, %v528, 0
        %v531 = vand.u32 %v499, %v529
        %533 = vmatprep.subr.bf16.mxu0 0
        %534 = vmatpush1.bf16.msra.mxu0 %v498
        %535 = vmatprep.subr.bf16.mxu0 0
        %536 = vmatpush1.bf16.msra.mxu0 %v531
        %537 = vmatprep.subr.bf16.mxu0 0
        %538 = vmatpush1.bf16.msra.mxu0 0
        %539 = vmatprep.subr.bf16.mxu0 0
        %540 = vmatpush1.bf16.msra.mxu0 0
        %541 = vmatprep.subr.bf16.mxu0 0
        %542 = vmatpush1.bf16.msra.mxu0 0
        %543 = vmatprep.subr.bf16.mxu0 0
        %544 = vmatpush1.bf16.msra.mxu0 0
        %545 = vmatprep.subr.bf16.mxu0 0
        %546 = vmatpush1.bf16.msra.mxu0 0
        %547 = vmatprep.subr.bf16.mxu0 0
        %548 = vmatpush1.bf16.msra.mxu0 0
        %549 = vmatprep.subr.bf16.mxu0 0
        %550 = vmatpush1.bf16.msra.mxu0 0
        %551 = vmatprep.subr.bf16.mxu0 0
        %552 = vmatpush1.bf16.msra.mxu0 0
        %553 = vmatprep.subr.bf16.mxu0 0
        %554 = vmatpush1.bf16.msra.mxu0 0
        %555 = vmatprep.subr.bf16.mxu0 0
        %556 = vmatpush1.bf16.msra.mxu0 0
        %557 = vmatprep.subr.bf16.mxu0 0
        %558 = vmatpush1.bf16.msra.mxu0 0
        %559 = vmatprep.subr.bf16.mxu0 0
        %560 = vmatpush1.bf16.msra.mxu0 0
        %561 = vmatprep.subr.bf16.mxu0 0
        %562 = vmatpush1.bf16.msra.mxu0 0
        %563 = vmatprep.subr.bf16.mxu0 0
        %564 = vmatpush1.bf16.msra.mxu0 0
        %565 = vmatprep.mubr.bf16.mxu0 0
        %566 = vmatmul.mubr.bf16.gmra.mrb[0].mxu0 %v503
        %v567 = vpop.f32.mrb[0].mxu0
        %v568 = vadd.f32 %v448, %v567
        %v569 = vpop.f32.mrb[0].mxu0
        %v570 = vpop.f32.mrb[0].mxu0
        %v571 = vadd.f32 %v448, %v570
        %v572 = vpop.f32.mrb[0].mxu0
        %573 = vmatprep.mubr.bf16.mxu0 0
        %574 = vmatmul.mubr.bf16.gmra.mrb[0].mxu0 %v506
        %v575 = vpop.f32.mrb[0].mxu0
        %v576 = vadd.f32 %v448, %v575
        %v577 = vpop.f32.mrb[0].mxu0
        %v578 = vpop.f32.mrb[0].mxu0
        %v579 = vadd.f32 %v448, %v578
        %v580 = vpop.f32.mrb[0].mxu0
        %581 = vmatprep.mubr.bf16.mxu0 0
        %582 = vmatmul.mubr.bf16.gmra.mrb[0].mxu0 %v509
        %v583 = vpop.f32.mrb[0].mxu0
        %v584 = vadd.f32 %v448, %v583
        %v585 = vpop.f32.mrb[0].mxu0
        %v586 = vpop.f32.mrb[0].mxu0
        %v587 = vadd.f32 %v448, %v586
        %v588 = vpop.f32.mrb[0].mxu0
        %589 = vmatprep.mubr.bf16.mxu0 0
        %590 = vmatmul.mubr.bf16.gmra.mrb[0].mxu0 %v512
        %v591 = vpop.f32.mrb[0].mxu0
        %v592 = vadd.f32 %v448, %v591
        %v593 = vpop.f32.mrb[0].mxu0
        %v594 = vpop.f32.mrb[0].mxu0
        %v595 = vadd.f32 %v448, %v594
        %v596 = vpop.f32.mrb[0].mxu0
        %597 = vmatprep.mubr.bf16.mxu0 0
        %598 = vmatmul.mubr.bf16.gmra.mrb[0].mxu0 %v515
        %v599 = vpop.f32.mrb[0].mxu0
        %v600 = vadd.f32 %v448, %v599
        %v601 = vpop.f32.mrb[0].mxu0
        %v602 = vpop.f32.mrb[0].mxu0
        %v603 = vadd.f32 %v448, %v602
        %v604 = vpop.f32.mrb[0].mxu0
        %605 = vmatprep.mubr.bf16.mxu0 0
        %606 = vmatmul.mubr.bf16.gmra.mrb[0].mxu0 %v518
        %v607 = vpop.f32.mrb[0].mxu0
        %v608 = vadd.f32 %v448, %v607
        %v609 = vpop.f32.mrb[0].mxu0
        %v610 = vpop.f32.mrb[0].mxu0
        %v611 = vadd.f32 %v448, %v610
        %v612 = vpop.f32.mrb[0].mxu0
        %613 = vmatprep.mubr.bf16.mxu0 0
        %614 = vmatmul.mubr.bf16.gmra.mrb[0].mxu0 %v521
        %v615 = vpop.f32.mrb[0].mxu0
        %v616 = vadd.f32 %v448, %v615
        %v617 = vpop.f32.mrb[0].mxu0
        %v618 = vpop.f32.mrb[0].mxu0
        %v619 = vadd.f32 %v448, %v618
        %v620 = vpop.f32.mrb[0].mxu0
        %621 = vmatprep.mubr.bf16.mxu0 0
        %622 = vmatmul.mubr.bf16.gmra.mrb[0].mxu0 %v524
        %v623 = vpop.f32.mrb[0].mxu0
        %v624 = vadd.f32 %v448, %v623
        %v625 = vpop.f32.mrb[0].mxu0
        %v626 = vpop.f32.mrb[0].mxu0
        %v627 = vadd.f32 %v448, %v626
        %v628 = vpop.f32.mrb[0].mxu0
        %629 = vdwg.mxu0
        %v630 = vxor.u32 %v568, 2147483648
        %v631 = vxor.u32 %v571, 2147483648
        %v632 = vxor.u32 %v576, 2147483648
        %v633 = vxor.u32 %v579, 2147483648
        %v634 = vxor.u32 %v584, 2147483648
        %v635 = vxor.u32 %v587, 2147483648
        %v636 = vxor.u32 %v592, 2147483648
        %v637 = vxor.u32 %v595, 2147483648
        %v638 = vxor.u32 %v600, 2147483648
        %v639 = vxor.u32 %v603, 2147483648
        %v640 = vxor.u32 %v608, 2147483648
        %v641 = vxor.u32 %v611, 2147483648
        %v642 = vxor.u32 %v616, 2147483648
        %v643 = vxor.u32 %v619, 2147483648
        %v644 = vxor.u32 %v624, 2147483648
        %v645 = vxor.u32 %v627, 2147483648
        %v646 = vmul.f32 %v630, 1.442695
        %v647 = vpow.pop %v646
        %v648 = vmul.f32 %v631, 1.442695
        %v649 = vpow.pop %v648
        %v650 = vmul.f32 %v632, 1.442695
        %v651 = vpow.pop %v650
        %v652 = vmul.f32 %v633, 1.442695
        %v653 = vpow.pop %v652
        %v654 = vmul.f32 %v634, 1.442695
        %v655 = vpow.pop %v654
        %v656 = vmul.f32 %v635, 1.442695
        %v657 = vpow.pop %v656
        %v658 = vmul.f32 %v636, 1.442695
        %v659 = vpow.pop %v658
        %v660 = vmul.f32 %v637, 1.442695
        %v661 = vpow.pop %v660
        %v662 = vmul.f32 %v638, 1.442695
        %v663 = vpow.pop %v662
        %v664 = vmul.f32 %v639, 1.442695
        %v665 = vpow.pop %v664
        %v666 = vmul.f32 %v640, 1.442695
        %v667 = vpow.pop %v666
        %v668 = vmul.f32 %v641, 1.442695
        %v669 = vpow.pop %v668
        %v670 = vmul.f32 %v642, 1.442695
        %v671 = vpow.pop %v670
        %v672 = vmul.f32 %v643, 1.442695
        %v673 = vpow.pop %v672
        %v674 = vmul.f32 %v644, 1.442695
        %v675 = vpow.pop %v674
        %v676 = vmul.f32 %v645, 1.442695
        %v677 = vpow.pop %v676
        %v678 = vadd.f32 %v647, 1.0
        %v679 = vadd.f32 %v649, 1.0
        %v680 = vadd.f32 %v651, 1.0
        %v681 = vadd.f32 %v653, 1.0
        %v682 = vadd.f32 %v655, 1.0
        %v683 = vadd.f32 %v657, 1.0
        %v684 = vadd.f32 %v659, 1.0
        %v685 = vadd.f32 %v661, 1.0
        %v686 = vadd.f32 %v663, 1.0
        %v687 = vadd.f32 %v665, 1.0
        %v688 = vadd.f32 %v667, 1.0
        %v689 = vadd.f32 %v669, 1.0
        %v690 = vadd.f32 %v671, 1.0
        %v691 = vadd.f32 %v673, 1.0
        %v692 = vadd.f32 %v675, 1.0
        %v693 = vadd.f32 %v677, 1.0
        %v694 = vrcp.pop %v678
        %v695 = vmul.f32 1.0, %v694
        %v696 = vrcp.pop %v679
        %v697 = vmul.f32 1.0, %v696
        %v698 = vrcp.pop %v680
        %v699 = vmul.f32 1.0, %v698
        %v700 = vrcp.pop %v681
        %v701 = vmul.f32 1.0, %v700
        %v702 = vrcp.pop %v682
        %v703 = vmul.f32 1.0, %v702
        %v704 = vrcp.pop %v683
        %v705 = vmul.f32 1.0, %v704
        %v706 = vrcp.pop %v684
        %v707 = vmul.f32 1.0, %v706
        %v708 = vrcp.pop %v685
        %v709 = vmul.f32 1.0, %v708
        %v710 = vrcp.pop %v686
        %v711 = vmul.f32 1.0, %v710
        %v712 = vrcp.pop %v687
        %v713 = vmul.f32 1.0, %v712
        %v714 = vrcp.pop %v688
        %v715 = vmul.f32 1.0, %v714
        %v716 = vrcp.pop %v689
        %v717 = vmul.f32 1.0, %v716
        %v718 = vrcp.pop %v690
        %v719 = vmul.f32 1.0, %v718
        %v720 = vrcp.pop %v691
        %v721 = vmul.f32 1.0, %v720
        %v722 = vrcp.pop %v692
        %v723 = vmul.f32 1.0, %v722
        %v724 = vrcp.pop %v693
        %v725 = vmul.f32 1.0, %v724
        %v726 = vmul.f32 %v568, %v695
        %v727 = vmul.f32 %v571, %v697
        %v728 = vmul.f32 %v576, %v699
        %v729 = vmul.f32 %v579, %v701
        %v730 = vmul.f32 %v584, %v703
        %v731 = vmul.f32 %v587, %v705
        %v732 = vmul.f32 %v592, %v707
        %v733 = vmul.f32 %v595, %v709
        %v734 = vmul.f32 %v600, %v711
        %v735 = vmul.f32 %v603, %v713
        %v736 = vmul.f32 %v608, %v715
        %v737 = vmul.f32 %v611, %v717
        %v738 = vmul.f32 %v616, %v719
        %v739 = vmul.f32 %v619, %v721
        %v740 = vmul.f32 %v624, %v723
        %v741 = vmul.f32 %v627, %v725
        %v742 = vpack.c.bf16 %v727, %v726
        %v743 = vpack.c.bf16 %v729, %v728
        %v744 = vpack.c.bf16 %v731, %v730
        %v745 = vpack.c.bf16 %v733, %v732
        %v746 = vpack.c.bf16 %v735, %v734
        %v747 = vpack.c.bf16 %v737, %v736
        %v748 = vpack.c.bf16 %v739, %v738
        %v749 = vpack.c.bf16 %v741, %v740
        %v750 = vld [vmem:[%s3] sm:$0xff]
        %v751 = vld [vmem:[%s3 + $0x8] sm:$0xff]
        %v752 = vld [vmem:[%s3 + $0x10] sm:$0xff]
        %v753 = vld [vmem:[%s3 + $0x18] sm:$0xff]
        %v754 = vld [vmem:[%s3 + $0x20] sm:$0xff]
        %v755 = vld [vmem:[%s3 + $0x28] sm:$0xff]
        %v756 = vld [vmem:[%s3 + $0x30] sm:$0xff]
        %v757 = vld [vmem:[%s3 + $0x38] sm:$0xff]
        %v758 = vld [vmem:[%s3 + $0x40] sm:$0xff]
        %v759 = vld [vmem:[%s3 + $0x48] sm:$0xff]
        %v760 = vld [vmem:[%s3 + $0x50] sm:$0xff]
        %v761 = vld [vmem:[%s3 + $0x58] sm:$0xff]
        %v762 = vld [vmem:[%s3 + $0x60] sm:$0xff]
        %v763 = vld [vmem:[%s3 + $0x68] sm:$0xff]
        %v764 = vld [vmem:[%s3 + $0x70] sm:$0xff]
        %v765 = vld [vmem:[%s3 + $0x78] sm:$0xff]
        %v766 = vld [vmem:[%s3 + $0x80] sm:$0xff]
        %v767 = vld [vmem:[%s3 + $0x88] sm:$0xff]
        %v768 = vld [vmem:[%s3 + $0x90] sm:$0xff]
        %v769 = vld [vmem:[%s3 + $0x98] sm:$0xff]
        %v770 = vld [vmem:[%s4] sm:$0xff]
        %v771 = vld [vmem:[%s4 + $0x8] sm:$0x3]
        %v774 = vlaneseq
        %v775 = vshrl.u32 %v774, 7
        %v776 = vsub.s32 0, %v775
        %v777 = vrot.slane %v770, %v776
        %v778 = vlaneseq
        %v779 = vshrl.u32 %v778, 7
        %v780 = vsub.s32 1, %v779
        %v781 = vrot.slane %v770, %v780
        %v782 = vlaneseq
        %v783 = vshrl.u32 %v782, 7
        %v784 = vsub.s32 2, %v783
        %v785 = vrot.slane %v770, %v784
        %v786 = vlaneseq
        %v787 = vshrl.u32 %v786, 7
        %v788 = vsub.s32 3, %v787
        %v789 = vrot.slane %v770, %v788
        %v790 = vlaneseq
        %v791 = vshrl.u32 %v790, 7
        %v792 = vsub.s32 4, %v791
        %v793 = vrot.slane %v770, %v792
        %v794 = vlaneseq
        %v795 = vshrl.u32 %v794, 7
        %v796 = vsub.s32 5, %v795
        %v797 = vrot.slane %v770, %v796
        %v798 = vlaneseq
        %v799 = vshrl.u32 %v798, 7
        %v800 = vsub.s32 6, %v799
        %v801 = vrot.slane %v770, %v800
        %v802 = vlaneseq
        %v803 = vshrl.u32 %v802, 7
        %v804 = vsub.s32 7, %v803
        %v805 = vrot.slane %v770, %v804
        %v806 = vlaneseq
        %v807 = vshrl.u32 %v806, 7
        %v808 = vsub.s32 0, %v807
        %v809 = vrot.slane %v771, %v808
        %v810 = vlaneseq
        %v811 = vshrl.u32 %v810, 7
        %v812 = vsub.s32 1, %v811
        %v813 = vrot.slane %v771, %v812
        %v844 = vunpack.c.l.b16 %v750
        %v845 = vunpack.c.h.b16 %v750
        %v846 = vunpack.c.l.b16 %v751
        %v847 = vunpack.c.h.b16 %v751
        %v848 = vunpack.c.l.b16 %v752
        %v849 = vunpack.c.h.b16 %v752
        %v850 = vunpack.c.l.b16 %v753
        %v851 = vunpack.c.h.b16 %v753
        %v852 = vunpack.c.l.b16 %v754
        %v853 = vunpack.c.h.b16 %v754
        %v854 = vunpack.c.l.b16 %v755
        %v855 = vunpack.c.h.b16 %v755
        %v856 = vunpack.c.l.b16 %v756
        %v857 = vunpack.c.h.b16 %v756
        %v858 = vunpack.c.l.b16 %v757
        %v859 = vunpack.c.h.b16 %v757
        %v860 = vunpack.c.l.b16 %v758
        %v861 = vunpack.c.h.b16 %v758
        %v862 = vunpack.c.l.b16 %v759
        %v863 = vunpack.c.h.b16 %v759
        %v864 = vunpack.c.l.b16 %v760
        %v865 = vunpack.c.h.b16 %v760
        %v866 = vunpack.c.l.b16 %v761
        %v867 = vunpack.c.h.b16 %v761
        %v868 = vunpack.c.l.b16 %v762
        %v869 = vunpack.c.h.b16 %v762
        %v870 = vunpack.c.l.b16 %v763
        %v871 = vunpack.c.h.b16 %v763
        %v872 = vunpack.c.l.b16 %v764
        %v873 = vunpack.c.h.b16 %v764
        %v874 = vunpack.c.l.b16 %v765
        %v875 = vunpack.c.h.b16 %v765
        %v876 = vunpack.c.l.b16 %v766
        %v877 = vunpack.c.h.b16 %v766
        %v878 = vunpack.c.l.b16 %v767
        %v879 = vunpack.c.h.b16 %v767
        %v880 = vunpack.c.l.b16 %v768
        %v881 = vunpack.c.h.b16 %v768
        %v882 = vunpack.c.l.b16 %v769
        %v883 = vunpack.c.h.b16 %v769
        %v884 = vpack.c.b16 %v854, %v844
        %v885 = vpack.c.b16 %v855, %v845
        %v886 = vpack.c.b16 %v856, %v846
        %v887 = vpack.c.b16 %v857, %v847
        %v888 = vpack.c.b16 %v858, %v848
        %v889 = vpack.c.b16 %v859, %v849
        %v890 = vpack.c.b16 %v860, %v850
        %v891 = vpack.c.b16 %v861, %v851
        %v892 = vpack.c.b16 %v862, %v852
        %v893 = vpack.c.b16 %v863, %v853
        %v894 = vpack.c.b16 %v874, %v864
        %v895 = vpack.c.b16 %v875, %v865
        %v896 = vpack.c.b16 %v876, %v866
        %v897 = vpack.c.b16 %v877, %v867
        %v898 = vpack.c.b16 %v878, %v868
        %v899 = vpack.c.b16 %v879, %v869
        %v900 = vpack.c.b16 %v880, %v870
        %v901 = vpack.c.b16 %v881, %v871
        %v902 = vpack.c.b16 %v882, %v872
        %v903 = vpack.c.b16 %v883, %v873
        %vm924 = vcmask 261120
        %v926 = vsel %vm924, %v742, 0
        %v929 = vsel %vm924, %v743, 0
        %v932 = vsel %vm924, %v744, 0
        %v935 = vsel %vm924, %v745, 0
        %v938 = vsel %vm924, %v746, 0
        %v941 = vsel %vm924, %v747, 0
        %v944 = vsel %vm924, %v748, 0
        %v947 = vsel %vm924, %v749, 0
        %949 = vmatprep.subr.bf16.mxu0 %v885
        %950 = vmatpush1.bf16.msra.mxu0 %v884
        %951 = vmatprep.subr.bf16.mxu0 %v895
        %952 = vmatpush1.bf16.msra.mxu0 %v894
        %953 = vmatprep.subr.bf16.mxu0 0
        %954 = vmatpush1.bf16.msra.mxu0 0
        %955 = vmatprep.subr.bf16.mxu0 0
        %956 = vmatpush1.bf16.msra.mxu0 0
        %957 = vmatprep.subr.bf16.mxu0 0
        %958 = vmatpush1.bf16.msra.mxu0 0
        %959 = vmatprep.subr.bf16.mxu0 0
        %960 = vmatpush1.bf16.msra.mxu0 0
        %961 = vmatprep.subr.bf16.mxu0 0
        %962 = vmatpush1.bf16.msra.mxu0 0
        %963 = vmatprep.subr.bf16.mxu0 0
        %964 = vmatpush1.bf16.msra.mxu0 0
        %965 = vmatprep.subr.bf16.mxu0 0
        %966 = vmatpush1.bf16.msra.mxu0 0
        %967 = vmatprep.subr.bf16.mxu0 0
        %968 = vmatpush1.bf16.msra.mxu0 0
        %969 = vmatprep.subr.bf16.mxu0 0
        %970 = vmatpush1.bf16.msra.mxu0 0
        %971 = vmatprep.subr.bf16.mxu0 0
        %972 = vmatpush1.bf16.msra.mxu0 0
        %973 = vmatprep.subr.bf16.mxu0 0
        %974 = vmatpush1.bf16.msra.mxu0 0
        %975 = vmatprep.subr.bf16.mxu0 0
        %976 = vmatpush1.bf16.msra.mxu0 0
        %977 = vmatprep.subr.bf16.mxu0 0
        %978 = vmatpush1.bf16.msra.mxu0 0
        %979 = vmatprep.subr.bf16.mxu0 0
        %980 = vmatpush1.bf16.msra.mxu0 0
        %981 = vmatprep.mubr.bf16.mxu0 0
        %982 = vmatmul.mubr.bf16.gmra.mrb[0].mxu0 %v926
        %v983 = vpop.f32.mrb[0].mxu0
        %v984 = vadd.f32 %v777, %v983
        %v985 = vpop.f32.mrb[0].mxu0
        %v986 = vadd.f32 %v781, %v985
        %v987 = vpop.f32.mrb[0].mxu0
        %v988 = vadd.f32 %v777, %v987
        %v989 = vpop.f32.mrb[0].mxu0
        %v990 = vadd.f32 %v781, %v989
        %991 = vmatprep.mubr.bf16.mxu0 0
        %992 = vmatmul.mubr.bf16.gmra.mrb[0].mxu0 %v929
        %v993 = vpop.f32.mrb[0].mxu0
        %v994 = vadd.f32 %v777, %v993
        %v995 = vpop.f32.mrb[0].mxu0
        %v996 = vadd.f32 %v781, %v995
        %v997 = vpop.f32.mrb[0].mxu0
        %v998 = vadd.f32 %v777, %v997
        %v999 = vpop.f32.mrb[0].mxu0
        %v1000 = vadd.f32 %v781, %v999
        %1001 = vmatprep.mubr.bf16.mxu0 0
        %1002 = vmatmul.mubr.bf16.gmra.mrb[0].mxu0 %v932
        %v1003 = vpop.f32.mrb[0].mxu0
        %v1004 = vadd.f32 %v777, %v1003
        %v1005 = vpop.f32.mrb[0].mxu0
        %v1006 = vadd.f32 %v781, %v1005
        %v1007 = vpop.f32.mrb[0].mxu0
        %v1008 = vadd.f32 %v777, %v1007
        %v1009 = vpop.f32.mrb[0].mxu0
        %v1010 = vadd.f32 %v781, %v1009
        %1011 = vmatprep.mubr.bf16.mxu0 0
        %1012 = vmatmul.mubr.bf16.gmra.mrb[0].mxu0 %v935
        %v1013 = vpop.f32.mrb[0].mxu0
        %v1014 = vadd.f32 %v777, %v1013
        %v1015 = vpop.f32.mrb[0].mxu0
        %v1016 = vadd.f32 %v781, %v1015
        %v1017 = vpop.f32.mrb[0].mxu0
        %v1018 = vadd.f32 %v777, %v1017
        %v1019 = vpop.f32.mrb[0].mxu0
        %v1020 = vadd.f32 %v781, %v1019
        %1021 = vmatprep.mubr.bf16.mxu0 0
        %1022 = vmatmul.mubr.bf16.gmra.mrb[0].mxu0 %v938
        %v1023 = vpop.f32.mrb[0].mxu0
        %v1024 = vadd.f32 %v777, %v1023
        %v1025 = vpop.f32.mrb[0].mxu0
        %v1026 = vadd.f32 %v781, %v1025
        %v1027 = vpop.f32.mrb[0].mxu0
        %v1028 = vadd.f32 %v777, %v1027
        %v1029 = vpop.f32.mrb[0].mxu0
        %v1030 = vadd.f32 %v781, %v1029
        %1031 = vmatprep.mubr.bf16.mxu0 0
        %1032 = vmatmul.mubr.bf16.gmra.mrb[0].mxu0 %v941
        %v1033 = vpop.f32.mrb[0].mxu0
        %v1034 = vadd.f32 %v777, %v1033
        %v1035 = vpop.f32.mrb[0].mxu0
        %v1036 = vadd.f32 %v781, %v1035
        %v1037 = vpop.f32.mrb[0].mxu0
        %v1038 = vadd.f32 %v777, %v1037
        %v1039 = vpop.f32.mrb[0].mxu0
        %v1040 = vadd.f32 %v781, %v1039
        %1041 = vmatprep.mubr.bf16.mxu0 0
        %1042 = vmatmul.mubr.bf16.gmra.mrb[0].mxu0 %v944
        %v1043 = vpop.f32.mrb[0].mxu0
        %v1044 = vadd.f32 %v777, %v1043
        %v1045 = vpop.f32.mrb[0].mxu0
        %v1046 = vadd.f32 %v781, %v1045
        %v1047 = vpop.f32.mrb[0].mxu0
        %v1048 = vadd.f32 %v777, %v1047
        %v1049 = vpop.f32.mrb[0].mxu0
        %v1050 = vadd.f32 %v781, %v1049
        %1051 = vmatprep.mubr.bf16.mxu0 0
        %1052 = vmatmul.mubr.bf16.gmra.mrb[0].mxu0 %v947
        %v1053 = vpop.f32.mrb[0].mxu0
        %v1054 = vadd.f32 %v777, %v1053
        %v1055 = vpop.f32.mrb[0].mxu0
        %v1056 = vadd.f32 %v781, %v1055
        %v1057 = vpop.f32.mrb[0].mxu0
        %v1058 = vadd.f32 %v777, %v1057
        %v1059 = vpop.f32.mrb[0].mxu0
        %v1060 = vadd.f32 %v781, %v1059
        %1061 = vdwg.mxu0
        %1062 = vmatprep.subr.bf16.mxu0 %v887
        %1063 = vmatpush1.bf16.msra.mxu0 %v886
        %1064 = vmatprep.subr.bf16.mxu0 %v897
        %1065 = vmatpush1.bf16.msra.mxu0 %v896
        %1066 = vmatprep.subr.bf16.mxu0 0
        %1067 = vmatpush1.bf16.msra.mxu0 0
        %1068 = vmatprep.subr.bf16.mxu0 0
        %1069 = vmatpush1.bf16.msra.mxu0 0
        %1070 = vmatprep.subr.bf16.mxu0 0
        %1071 = vmatpush1.bf16.msra.mxu0 0
        %1072 = vmatprep.subr.bf16.mxu0 0
        %1073 = vmatpush1.bf16.msra.mxu0 0
        %1074 = vmatprep.subr.bf16.mxu0 0
        %1075 = vmatpush1.bf16.msra.mxu0 0
        %1076 = vmatprep.subr.bf16.mxu0 0
        %1077 = vmatpush1.bf16.msra.mxu0 0
        %1078 = vmatprep.subr.bf16.mxu0 0
        %1079 = vmatpush1.bf16.msra.mxu0 0
        %1080 = vmatprep.subr.bf16.mxu0 0
        %1081 = vmatpush1.bf16.msra.mxu0 0
        %1082 = vmatprep.subr.bf16.mxu0 0
        %1083 = vmatpush1.bf16.msra.mxu0 0
        %1084 = vmatprep.subr.bf16.mxu0 0
        %1085 = vmatpush1.bf16.msra.mxu0 0
        %1086 = vmatprep.subr.bf16.mxu0 0
        %1087 = vmatpush1.bf16.msra.mxu0 0
        %1088 = vmatprep.subr.bf16.mxu0 0
        %1089 = vmatpush1.bf16.msra.mxu0 0
        %1090 = vmatprep.subr.bf16.mxu0 0
        %1091 = vmatpush1.bf16.msra.mxu0 0
        %1092 = vmatprep.subr.bf16.mxu0 0
        %1093 = vmatpush1.bf16.msra.mxu0 0
        %1094 = vmatprep.mubr.bf16.mxu0 0
        %1095 = vmatmul.mubr.bf16.gmra.mrb[0].mxu0 %v926
        %v1096 = vpop.f32.mrb[0].mxu0
        %v1097 = vadd.f32 %v785, %v1096
        %v1098 = vpop.f32.mrb[0].mxu0
        %v1099 = vadd.f32 %v789, %v1098
        %v1100 = vpop.f32.mrb[0].mxu0
        %v1101 = vadd.f32 %v785, %v1100
        %v1102 = vpop.f32.mrb[0].mxu0
        %v1103 = vadd.f32 %v789, %v1102
        %1104 = vmatprep.mubr.bf16.mxu0 0
        %1105 = vmatmul.mubr.bf16.gmra.mrb[0].mxu0 %v929
        %v1106 = vpop.f32.mrb[0].mxu0
        %v1107 = vadd.f32 %v785, %v1106
        %v1108 = vpop.f32.mrb[0].mxu0
        %v1109 = vadd.f32 %v789, %v1108
        %v1110 = vpop.f32.mrb[0].mxu0
        %v1111 = vadd.f32 %v785, %v1110
        %v1112 = vpop.f32.mrb[0].mxu0
        %v1113 = vadd.f32 %v789, %v1112
        %1114 = vmatprep.mubr.bf16.mxu0 0
        %1115 = vmatmul.mubr.bf16.gmra.mrb[0].mxu0 %v932
        %v1116 = vpop.f32.mrb[0].mxu0
        %v1117 = vadd.f32 %v785, %v1116
        %v1118 = vpop.f32.mrb[0].mxu0
        %v1119 = vadd.f32 %v789, %v1118
        %v1120 = vpop.f32.mrb[0].mxu0
        %v1121 = vadd.f32 %v785, %v1120
        %v1122 = vpop.f32.mrb[0].mxu0
        %v1123 = vadd.f32 %v789, %v1122
        %1124 = vmatprep.mubr.bf16.mxu0 0
        %1125 = vmatmul.mubr.bf16.gmra.mrb[0].mxu0 %v935
        %v1126 = vpop.f32.mrb[0].mxu0
        %v1127 = vadd.f32 %v785, %v1126
        %v1128 = vpop.f32.mrb[0].mxu0
        %v1129 = vadd.f32 %v789, %v1128
        %v1130 = vpop.f32.mrb[0].mxu0
        %v1131 = vadd.f32 %v785, %v1130
        %v1132 = vpop.f32.mrb[0].mxu0
        %v1133 = vadd.f32 %v789, %v1132
        %1134 = vmatprep.mubr.bf16.mxu0 0
        %1135 = vmatmul.mubr.bf16.gmra.mrb[0].mxu0 %v938
        %v1136 = vpop.f32.mrb[0].mxu0
        %v1137 = vadd.f32 %v785, %v1136
        %v1138 = vpop.f32.mrb[0].mxu0
        %v1139 = vadd.f32 %v789, %v1138
        %v1140 = vpop.f32.mrb[0].mxu0
        %v1141 = vadd.f32 %v785, %v1140
        %v1142 = vpop.f32.mrb[0].mxu0
        %v1143 = vadd.f32 %v789, %v1142
        %1144 = vmatprep.mubr.bf16.mxu0 0
        %1145 = vmatmul.mubr.bf16.gmra.mrb[0].mxu0 %v941
        %v1146 = vpop.f32.mrb[0].mxu0
        %v1147 = vadd.f32 %v785, %v1146
        %v1148 = vpop.f32.mrb[0].mxu0
        %v1149 = vadd.f32 %v789, %v1148
        %v1150 = vpop.f32.mrb[0].mxu0
        %v1151 = vadd.f32 %v785, %v1150
        %v1152 = vpop.f32.mrb[0].mxu0
        %v1153 = vadd.f32 %v789, %v1152
        %1154 = vmatprep.mubr.bf16.mxu0 0
        %1155 = vmatmul.mubr.bf16.gmra.mrb[0].mxu0 %v944
        %v1156 = vpop.f32.mrb[0].mxu0
        %v1157 = vadd.f32 %v785, %v1156
        %v1158 = vpop.f32.mrb[0].mxu0
        %v1159 = vadd.f32 %v789, %v1158
        %v1160 = vpop.f32.mrb[0].mxu0
        %v1161 = vadd.f32 %v785, %v1160
        %v1162 = vpop.f32.mrb[0].mxu0
        %v1163 = vadd.f32 %v789, %v1162
        %1164 = vmatprep.mubr.bf16.mxu0 0
        %1165 = vmatmul.mubr.bf16.gmra.mrb[0].mxu0 %v947
        %v1166 = vpop.f32.mrb[0].mxu0
        %v1167 = vadd.f32 %v785, %v1166
        %v1168 = vpop.f32.mrb[0].mxu0
        %v1169 = vadd.f32 %v789, %v1168
        %v1170 = vpop.f32.mrb[0].mxu0
        %v1171 = vadd.f32 %v785, %v1170
        %v1172 = vpop.f32.mrb[0].mxu0
        %v1173 = vadd.f32 %v789, %v1172
        %1174 = vdwg.mxu0
        %1175 = vmatprep.subr.bf16.mxu0 %v889
        %1176 = vmatpush1.bf16.msra.mxu0 %v888
        %1177 = vmatprep.subr.bf16.mxu0 %v899
        %1178 = vmatpush1.bf16.msra.mxu0 %v898
        %1179 = vmatprep.subr.bf16.mxu0 0
        %1180 = vmatpush1.bf16.msra.mxu0 0
        %1181 = vmatprep.subr.bf16.mxu0 0
        %1182 = vmatpush1.bf16.msra.mxu0 0
        %1183 = vmatprep.subr.bf16.mxu0 0
        %1184 = vmatpush1.bf16.msra.mxu0 0
        %1185 = vmatprep.subr.bf16.mxu0 0
        %1186 = vmatpush1.bf16.msra.mxu0 0
        %1187 = vmatprep.subr.bf16.mxu0 0
        %1188 = vmatpush1.bf16.msra.mxu0 0
        %1189 = vmatprep.subr.bf16.mxu0 0
        %1190 = vmatpush1.bf16.msra.mxu0 0
        %1191 = vmatprep.subr.bf16.mxu0 0
        %1192 = vmatpush1.bf16.msra.mxu0 0
        %1193 = vmatprep.subr.bf16.mxu0 0
        %1194 = vmatpush1.bf16.msra.mxu0 0
        %1195 = vmatprep.subr.bf16.mxu0 0
        %1196 = vmatpush1.bf16.msra.mxu0 0
        %1197 = vmatprep.subr.bf16.mxu0 0
        %1198 = vmatpush1.bf16.msra.mxu0 0
        %1199 = vmatprep.subr.bf16.mxu0 0
        %1200 = vmatpush1.bf16.msra.mxu0 0
        %1201 = vmatprep.subr.bf16.mxu0 0
        %1202 = vmatpush1.bf16.msra.mxu0 0
        %1203 = vmatprep.subr.bf16.mxu0 0
        %1204 = vmatpush1.bf16.msra.mxu0 0
        %1205 = vmatprep.subr.bf16.mxu0 0
        %1206 = vmatpush1.bf16.msra.mxu0 0
        %1207 = vmatprep.mubr.bf16.mxu0 0
        %1208 = vmatmul.mubr.bf16.gmra.mrb[0].mxu0 %v926
        %v1209 = vpop.f32.mrb[0].mxu0
        %v1210 = vadd.f32 %v793, %v1209
        %v1211 = vpop.f32.mrb[0].mxu0
        %v1212 = vadd.f32 %v797, %v1211
        %v1213 = vpop.f32.mrb[0].mxu0
        %v1214 = vadd.f32 %v793, %v1213
        %v1215 = vpop.f32.mrb[0].mxu0
        %v1216 = vadd.f32 %v797, %v1215
        %1217 = vmatprep.mubr.bf16.mxu0 0
        %1218 = vmatmul.mubr.bf16.gmra.mrb[0].mxu0 %v929
        %v1219 = vpop.f32.mrb[0].mxu0
        %v1220 = vadd.f32 %v793, %v1219
        %v1221 = vpop.f32.mrb[0].mxu0
        %v1222 = vadd.f32 %v797, %v1221
        %v1223 = vpop.f32.mrb[0].mxu0
        %v1224 = vadd.f32 %v793, %v1223
        %v1225 = vpop.f32.mrb[0].mxu0
        %v1226 = vadd.f32 %v797, %v1225
        %1227 = vmatprep.mubr.bf16.mxu0 0
        %1228 = vmatmul.mubr.bf16.gmra.mrb[0].mxu0 %v932
        %v1229 = vpop.f32.mrb[0].mxu0
        %v1230 = vadd.f32 %v793, %v1229
        %v1231 = vpop.f32.mrb[0].mxu0
        %v1232 = vadd.f32 %v797, %v1231
        %v1233 = vpop.f32.mrb[0].mxu0
        %v1234 = vadd.f32 %v793, %v1233
        %v1235 = vpop.f32.mrb[0].mxu0
        %v1236 = vadd.f32 %v797, %v1235
        %1237 = vmatprep.mubr.bf16.mxu0 0
        %1238 = vmatmul.mubr.bf16.gmra.mrb[0].mxu0 %v935
        %v1239 = vpop.f32.mrb[0].mxu0
        %v1240 = vadd.f32 %v793, %v1239
        %v1241 = vpop.f32.mrb[0].mxu0
        %v1242 = vadd.f32 %v797, %v1241
        %v1243 = vpop.f32.mrb[0].mxu0
        %v1244 = vadd.f32 %v793, %v1243
        %v1245 = vpop.f32.mrb[0].mxu0
        %v1246 = vadd.f32 %v797, %v1245
        %1247 = vmatprep.mubr.bf16.mxu0 0
        %1248 = vmatmul.mubr.bf16.gmra.mrb[0].mxu0 %v938
        %v1249 = vpop.f32.mrb[0].mxu0
        %v1250 = vadd.f32 %v793, %v1249
        %v1251 = vpop.f32.mrb[0].mxu0
        %v1252 = vadd.f32 %v797, %v1251
        %v1253 = vpop.f32.mrb[0].mxu0
        %v1254 = vadd.f32 %v793, %v1253
        %v1255 = vpop.f32.mrb[0].mxu0
        %v1256 = vadd.f32 %v797, %v1255
        %1257 = vmatprep.mubr.bf16.mxu0 0
        %1258 = vmatmul.mubr.bf16.gmra.mrb[0].mxu0 %v941
        %v1259 = vpop.f32.mrb[0].mxu0
        %v1260 = vadd.f32 %v793, %v1259
        %v1261 = vpop.f32.mrb[0].mxu0
        %v1262 = vadd.f32 %v797, %v1261
        %v1263 = vpop.f32.mrb[0].mxu0
        %v1264 = vadd.f32 %v793, %v1263
        %v1265 = vpop.f32.mrb[0].mxu0
        %v1266 = vadd.f32 %v797, %v1265
        %1267 = vmatprep.mubr.bf16.mxu0 0
        %1268 = vmatmul.mubr.bf16.gmra.mrb[0].mxu0 %v944
        %v1269 = vpop.f32.mrb[0].mxu0
        %v1270 = vadd.f32 %v793, %v1269
        %v1271 = vpop.f32.mrb[0].mxu0
        %v1272 = vadd.f32 %v797, %v1271
        %v1273 = vpop.f32.mrb[0].mxu0
        %v1274 = vadd.f32 %v793, %v1273
        %v1275 = vpop.f32.mrb[0].mxu0
        %v1276 = vadd.f32 %v797, %v1275
        %1277 = vmatprep.mubr.bf16.mxu0 0
        %1278 = vmatmul.mubr.bf16.gmra.mrb[0].mxu0 %v947
        %v1279 = vpop.f32.mrb[0].mxu0
        %v1280 = vadd.f32 %v793, %v1279
        %v1281 = vpop.f32.mrb[0].mxu0
        %v1282 = vadd.f32 %v797, %v1281
        %v1283 = vpop.f32.mrb[0].mxu0
        %v1284 = vadd.f32 %v793, %v1283
        %v1285 = vpop.f32.mrb[0].mxu0
        %v1286 = vadd.f32 %v797, %v1285
        %1287 = vdwg.mxu0
        %1288 = vmatprep.subr.bf16.mxu0 %v891
        %1289 = vmatpush1.bf16.msra.mxu0 %v890
        %1290 = vmatprep.subr.bf16.mxu0 %v901
        %1291 = vmatpush1.bf16.msra.mxu0 %v900
        %1292 = vmatprep.subr.bf16.mxu0 0
        %1293 = vmatpush1.bf16.msra.mxu0 0
        %1294 = vmatprep.subr.bf16.mxu0 0
        %1295 = vmatpush1.bf16.msra.mxu0 0
        %1296 = vmatprep.subr.bf16.mxu0 0
        %1297 = vmatpush1.bf16.msra.mxu0 0
        %1298 = vmatprep.subr.bf16.mxu0 0
        %1299 = vmatpush1.bf16.msra.mxu0 0
        %1300 = vmatprep.subr.bf16.mxu0 0
        %1301 = vmatpush1.bf16.msra.mxu0 0
        %1302 = vmatprep.subr.bf16.mxu0 0
        %1303 = vmatpush1.bf16.msra.mxu0 0
        %1304 = vmatprep.subr.bf16.mxu0 0
        %1305 = vmatpush1.bf16.msra.mxu0 0
        %1306 = vmatprep.subr.bf16.mxu0 0
        %1307 = vmatpush1.bf16.msra.mxu0 0
        %1308 = vmatprep.subr.bf16.mxu0 0
        %1309 = vmatpush1.bf16.msra.mxu0 0
        %1310 = vmatprep.subr.bf16.mxu0 0
        %1311 = vmatpush1.bf16.msra.mxu0 0
        %1312 = vmatprep.subr.bf16.mxu0 0
        %1313 = vmatpush1.bf16.msra.mxu0 0
        %1314 = vmatprep.subr.bf16.mxu0 0
        %1315 = vmatpush1.bf16.msra.mxu0 0
        %1316 = vmatprep.subr.bf16.mxu0 0
        %1317 = vmatpush1.bf16.msra.mxu0 0
        %1318 = vmatprep.subr.bf16.mxu0 0
        %1319 = vmatpush1.bf16.msra.mxu0 0
        %1320 = vmatprep.mubr.bf16.mxu0 0
        %1321 = vmatmul.mubr.bf16.gmra.mrb[0].mxu0 %v926
        %v1322 = vpop.f32.mrb[0].mxu0
        %v1323 = vadd.f32 %v801, %v1322
        %v1324 = vpop.f32.mrb[0].mxu0
        %v1325 = vadd.f32 %v805, %v1324
        %v1326 = vpop.f32.mrb[0].mxu0
        %v1327 = vadd.f32 %v801, %v1326
        %v1328 = vpop.f32.mrb[0].mxu0
        %v1329 = vadd.f32 %v805, %v1328
        %1330 = vmatprep.mubr.bf16.mxu0 0
        %1331 = vmatmul.mubr.bf16.gmra.mrb[0].mxu0 %v929
        %v1332 = vpop.f32.mrb[0].mxu0
        %v1333 = vadd.f32 %v801, %v1332
        %v1334 = vpop.f32.mrb[0].mxu0
        %v1335 = vadd.f32 %v805, %v1334
        %v1336 = vpop.f32.mrb[0].mxu0
        %v1337 = vadd.f32 %v801, %v1336
        %v1338 = vpop.f32.mrb[0].mxu0
        %v1339 = vadd.f32 %v805, %v1338
        %1340 = vmatprep.mubr.bf16.mxu0 0
        %1341 = vmatmul.mubr.bf16.gmra.mrb[0].mxu0 %v932
        %v1342 = vpop.f32.mrb[0].mxu0
        %v1343 = vadd.f32 %v801, %v1342
        %v1344 = vpop.f32.mrb[0].mxu0
        %v1345 = vadd.f32 %v805, %v1344
        %v1346 = vpop.f32.mrb[0].mxu0
        %v1347 = vadd.f32 %v801, %v1346
        %v1348 = vpop.f32.mrb[0].mxu0
        %v1349 = vadd.f32 %v805, %v1348
        %1350 = vmatprep.mubr.bf16.mxu0 0
        %1351 = vmatmul.mubr.bf16.gmra.mrb[0].mxu0 %v935
        %v1352 = vpop.f32.mrb[0].mxu0
        %v1353 = vadd.f32 %v801, %v1352
        %v1354 = vpop.f32.mrb[0].mxu0
        %v1355 = vadd.f32 %v805, %v1354
        %v1356 = vpop.f32.mrb[0].mxu0
        %v1357 = vadd.f32 %v801, %v1356
        %v1358 = vpop.f32.mrb[0].mxu0
        %v1359 = vadd.f32 %v805, %v1358
        %1360 = vmatprep.mubr.bf16.mxu0 0
        %1361 = vmatmul.mubr.bf16.gmra.mrb[0].mxu0 %v938
        %v1362 = vpop.f32.mrb[0].mxu0
        %v1363 = vadd.f32 %v801, %v1362
        %v1364 = vpop.f32.mrb[0].mxu0
        %v1365 = vadd.f32 %v805, %v1364
        %v1366 = vpop.f32.mrb[0].mxu0
        %v1367 = vadd.f32 %v801, %v1366
        %v1368 = vpop.f32.mrb[0].mxu0
        %v1369 = vadd.f32 %v805, %v1368
        %1370 = vmatprep.mubr.bf16.mxu0 0
        %1371 = vmatmul.mubr.bf16.gmra.mrb[0].mxu0 %v941
        %v1372 = vpop.f32.mrb[0].mxu0
        %v1373 = vadd.f32 %v801, %v1372
        %v1374 = vpop.f32.mrb[0].mxu0
        %v1375 = vadd.f32 %v805, %v1374
        %v1376 = vpop.f32.mrb[0].mxu0
        %v1377 = vadd.f32 %v801, %v1376
        %v1378 = vpop.f32.mrb[0].mxu0
        %v1379 = vadd.f32 %v805, %v1378
        %1380 = vmatprep.mubr.bf16.mxu0 0
        %1381 = vmatmul.mubr.bf16.gmra.mrb[0].mxu0 %v944
        %v1382 = vpop.f32.mrb[0].mxu0
        %v1383 = vadd.f32 %v801, %v1382
        %v1384 = vpop.f32.mrb[0].mxu0
        %v1385 = vadd.f32 %v805, %v1384
        %v1386 = vpop.f32.mrb[0].mxu0
        %v1387 = vadd.f32 %v801, %v1386
        %v1388 = vpop.f32.mrb[0].mxu0
        %v1389 = vadd.f32 %v805, %v1388
        %1390 = vmatprep.mubr.bf16.mxu0 0
        %1391 = vmatmul.mubr.bf16.gmra.mrb[0].mxu0 %v947
        %v1392 = vpop.f32.mrb[0].mxu0
        %v1393 = vadd.f32 %v801, %v1392
        %v1394 = vpop.f32.mrb[0].mxu0
        %v1395 = vadd.f32 %v805, %v1394
        %v1396 = vpop.f32.mrb[0].mxu0
        %v1397 = vadd.f32 %v801, %v1396
        %v1398 = vpop.f32.mrb[0].mxu0
        %v1399 = vadd.f32 %v805, %v1398
        %1400 = vdwg.mxu0
        %1401 = vmatprep.subr.bf16.mxu0 %v893
        %1402 = vmatpush1.bf16.msra.mxu0 %v892
        %1403 = vmatprep.subr.bf16.mxu0 %v903
        %1404 = vmatpush1.bf16.msra.mxu0 %v902
        %1405 = vmatprep.subr.bf16.mxu0 0
        %1406 = vmatpush1.bf16.msra.mxu0 0
        %1407 = vmatprep.subr.bf16.mxu0 0
        %1408 = vmatpush1.bf16.msra.mxu0 0
        %1409 = vmatprep.subr.bf16.mxu0 0
        %1410 = vmatpush1.bf16.msra.mxu0 0
        %1411 = vmatprep.subr.bf16.mxu0 0
        %1412 = vmatpush1.bf16.msra.mxu0 0
        %1413 = vmatprep.subr.bf16.mxu0 0
        %1414 = vmatpush1.bf16.msra.mxu0 0
        %1415 = vmatprep.subr.bf16.mxu0 0
        %1416 = vmatpush1.bf16.msra.mxu0 0
        %1417 = vmatprep.subr.bf16.mxu0 0
        %1418 = vmatpush1.bf16.msra.mxu0 0
        %1419 = vmatprep.subr.bf16.mxu0 0
        %1420 = vmatpush1.bf16.msra.mxu0 0
        %1421 = vmatprep.subr.bf16.mxu0 0
        %1422 = vmatpush1.bf16.msra.mxu0 0
        %1423 = vmatprep.subr.bf16.mxu0 0
        %1424 = vmatpush1.bf16.msra.mxu0 0
        %1425 = vmatprep.subr.bf16.mxu0 0
        %1426 = vmatpush1.bf16.msra.mxu0 0
        %1427 = vmatprep.subr.bf16.mxu0 0
        %1428 = vmatpush1.bf16.msra.mxu0 0
        %1429 = vmatprep.subr.bf16.mxu0 0
        %1430 = vmatpush1.bf16.msra.mxu0 0
        %1431 = vmatprep.subr.bf16.mxu0 0
        %1432 = vmatpush1.bf16.msra.mxu0 0
        %1433 = vmatprep.mubr.bf16.mxu0 0
        %1434 = vmatmul.mubr.bf16.gmra.mrb[0].mxu0 %v926
        %v1435 = vpop.f32.mrb[0].mxu0
        %v1436 = vadd.f32 %v809, %v1435
        %v1437 = vpop.f32.mrb[0].mxu0
        %v1438 = vadd.f32 %v813, %v1437
        %v1439 = vpop.f32.mrb[0].mxu0
        %v1440 = vadd.f32 %v809, %v1439
        %v1441 = vpop.f32.mrb[0].mxu0
        %v1442 = vadd.f32 %v813, %v1441
        %1443 = vmatprep.mubr.bf16.mxu0 0
        %1444 = vmatmul.mubr.bf16.gmra.mrb[0].mxu0 %v929
        %v1445 = vpop.f32.mrb[0].mxu0
        %v1446 = vadd.f32 %v809, %v1445
        %v1447 = vpop.f32.mrb[0].mxu0
        %v1448 = vadd.f32 %v813, %v1447
        %v1449 = vpop.f32.mrb[0].mxu0
        %v1450 = vadd.f32 %v809, %v1449
        %v1451 = vpop.f32.mrb[0].mxu0
        %v1452 = vadd.f32 %v813, %v1451
        %1453 = vmatprep.mubr.bf16.mxu0 0
        %1454 = vmatmul.mubr.bf16.gmra.mrb[0].mxu0 %v932
        %v1455 = vpop.f32.mrb[0].mxu0
        %v1456 = vadd.f32 %v809, %v1455
        %v1457 = vpop.f32.mrb[0].mxu0
        %v1458 = vadd.f32 %v813, %v1457
        %v1459 = vpop.f32.mrb[0].mxu0
        %v1460 = vadd.f32 %v809, %v1459
        %v1461 = vpop.f32.mrb[0].mxu0
        %v1462 = vadd.f32 %v813, %v1461
        %1463 = vmatprep.mubr.bf16.mxu0 0
        %1464 = vmatmul.mubr.bf16.gmra.mrb[0].mxu0 %v935
        %v1465 = vpop.f32.mrb[0].mxu0
        %v1466 = vadd.f32 %v809, %v1465
        %v1467 = vpop.f32.mrb[0].mxu0
        %v1468 = vadd.f32 %v813, %v1467
        %v1469 = vpop.f32.mrb[0].mxu0
        %v1470 = vadd.f32 %v809, %v1469
        %v1471 = vpop.f32.mrb[0].mxu0
        %v1472 = vadd.f32 %v813, %v1471
        %1473 = vmatprep.mubr.bf16.mxu0 0
        %1474 = vmatmul.mubr.bf16.gmra.mrb[0].mxu0 %v938
        %v1475 = vpop.f32.mrb[0].mxu0
        %v1476 = vadd.f32 %v809, %v1475
        %v1477 = vpop.f32.mrb[0].mxu0
        %v1478 = vadd.f32 %v813, %v1477
        %v1479 = vpop.f32.mrb[0].mxu0
        %v1480 = vadd.f32 %v809, %v1479
        %v1481 = vpop.f32.mrb[0].mxu0
        %v1482 = vadd.f32 %v813, %v1481
        %1483 = vmatprep.mubr.bf16.mxu0 0
        %1484 = vmatmul.mubr.bf16.gmra.mrb[0].mxu0 %v941
        %v1485 = vpop.f32.mrb[0].mxu0
        %v1486 = vadd.f32 %v809, %v1485
        %v1487 = vpop.f32.mrb[0].mxu0
        %v1488 = vadd.f32 %v813, %v1487
        %v1489 = vpop.f32.mrb[0].mxu0
        %v1490 = vadd.f32 %v809, %v1489
        %v1491 = vpop.f32.mrb[0].mxu0
        %v1492 = vadd.f32 %v813, %v1491
        %1493 = vmatprep.mubr.bf16.mxu0 0
        %1494 = vmatmul.mubr.bf16.gmra.mrb[0].mxu0 %v944
        %v1495 = vpop.f32.mrb[0].mxu0
        %v1496 = vadd.f32 %v809, %v1495
        %v1497 = vpop.f32.mrb[0].mxu0
        %v1498 = vadd.f32 %v813, %v1497
        %v1499 = vpop.f32.mrb[0].mxu0
        %v1500 = vadd.f32 %v809, %v1499
        %v1501 = vpop.f32.mrb[0].mxu0
        %v1502 = vadd.f32 %v813, %v1501
        %1503 = vmatprep.mubr.bf16.mxu0 0
        %1504 = vmatmul.mubr.bf16.gmra.mrb[0].mxu0 %v947
        %v1505 = vpop.f32.mrb[0].mxu0
        %v1506 = vadd.f32 %v809, %v1505
        %v1507 = vpop.f32.mrb[0].mxu0
        %v1508 = vadd.f32 %v813, %v1507
        %v1509 = vpop.f32.mrb[0].mxu0
        %v1510 = vadd.f32 %v809, %v1509
        %v1511 = vpop.f32.mrb[0].mxu0
        %v1512 = vadd.f32 %v813, %v1511
        %1513 = vdwg.mxu0
        %v1514 = vxor.u32 %v984, 2147483648
        %v1515 = vxor.u32 %v986, 2147483648
        %v1516 = vxor.u32 %v1097, 2147483648
        %v1517 = vxor.u32 %v1099, 2147483648
        %v1518 = vxor.u32 %v1210, 2147483648
        %v1519 = vxor.u32 %v1212, 2147483648
        %v1520 = vxor.u32 %v1323, 2147483648
        %v1521 = vxor.u32 %v1325, 2147483648
        %v1522 = vxor.u32 %v1436, 2147483648
        %v1523 = vxor.u32 %v1438, 2147483648
        %v1524 = vxor.u32 %v988, 2147483648
        %v1525 = vxor.u32 %v990, 2147483648
        %v1526 = vxor.u32 %v1101, 2147483648
        %v1527 = vxor.u32 %v1103, 2147483648
        %v1528 = vxor.u32 %v1214, 2147483648
        %v1529 = vxor.u32 %v1216, 2147483648
        %v1530 = vxor.u32 %v1327, 2147483648
        %v1531 = vxor.u32 %v1329, 2147483648
        %v1532 = vxor.u32 %v1440, 2147483648
        %v1533 = vxor.u32 %v1442, 2147483648
        %v1534 = vxor.u32 %v994, 2147483648
        %v1535 = vxor.u32 %v996, 2147483648
        %v1536 = vxor.u32 %v1107, 2147483648
        %v1537 = vxor.u32 %v1109, 2147483648
        %v1538 = vxor.u32 %v1220, 2147483648
        %v1539 = vxor.u32 %v1222, 2147483648
        %v1540 = vxor.u32 %v1333, 2147483648
        %v1541 = vxor.u32 %v1335, 2147483648
        %v1542 = vxor.u32 %v1446, 2147483648
        %v1543 = vxor.u32 %v1448, 2147483648
        %v1544 = vxor.u32 %v998, 2147483648
        %v1545 = vxor.u32 %v1000, 2147483648
        %v1546 = vxor.u32 %v1111, 2147483648
        %v1547 = vxor.u32 %v1113, 2147483648
        %v1548 = vxor.u32 %v1224, 2147483648
        %v1549 = vxor.u32 %v1226, 2147483648
        %v1550 = vxor.u32 %v1337, 2147483648
        %v1551 = vxor.u32 %v1339, 2147483648
        %v1552 = vxor.u32 %v1450, 2147483648
        %v1553 = vxor.u32 %v1452, 2147483648
        %v1554 = vxor.u32 %v1004, 2147483648
        %v1555 = vxor.u32 %v1006, 2147483648
        %v1556 = vxor.u32 %v1117, 2147483648
        %v1557 = vxor.u32 %v1119, 2147483648
        %v1558 = vxor.u32 %v1230, 2147483648
        %v1559 = vxor.u32 %v1232, 2147483648
        %v1560 = vxor.u32 %v1343, 2147483648
        %v1561 = vxor.u32 %v1345, 2147483648
        %v1562 = vxor.u32 %v1456, 2147483648
        %v1563 = vxor.u32 %v1458, 2147483648
        %v1564 = vxor.u32 %v1008, 2147483648
        %v1565 = vxor.u32 %v1010, 2147483648
        %v1566 = vxor.u32 %v1121, 2147483648
        %v1567 = vxor.u32 %v1123, 2147483648
        %v1568 = vxor.u32 %v1234, 2147483648
        %v1569 = vxor.u32 %v1236, 2147483648
        %v1570 = vxor.u32 %v1347, 2147483648
        %v1571 = vxor.u32 %v1349, 2147483648
        %v1572 = vxor.u32 %v1460, 2147483648
        %v1573 = vxor.u32 %v1462, 2147483648
        %v1574 = vxor.u32 %v1014, 2147483648
        %v1575 = vxor.u32 %v1016, 2147483648
        %v1576 = vxor.u32 %v1127, 2147483648
        %v1577 = vxor.u32 %v1129, 2147483648
        %v1578 = vxor.u32 %v1240, 2147483648
        %v1579 = vxor.u32 %v1242, 2147483648
        %v1580 = vxor.u32 %v1353, 2147483648
        %v1581 = vxor.u32 %v1355, 2147483648
        %v1582 = vxor.u32 %v1466, 2147483648
        %v1583 = vxor.u32 %v1468, 2147483648
        %v1584 = vxor.u32 %v1018, 2147483648
        %v1585 = vxor.u32 %v1020, 2147483648
        %v1586 = vxor.u32 %v1131, 2147483648
        %v1587 = vxor.u32 %v1133, 2147483648
        %v1588 = vxor.u32 %v1244, 2147483648
        %v1589 = vxor.u32 %v1246, 2147483648
        %v1590 = vxor.u32 %v1357, 2147483648
        %v1591 = vxor.u32 %v1359, 2147483648
        %v1592 = vxor.u32 %v1470, 2147483648
        %v1593 = vxor.u32 %v1472, 2147483648
        %v1594 = vxor.u32 %v1024, 2147483648
        %v1595 = vxor.u32 %v1026, 2147483648
        %v1596 = vxor.u32 %v1137, 2147483648
        %v1597 = vxor.u32 %v1139, 2147483648
        %v1598 = vxor.u32 %v1250, 2147483648
        %v1599 = vxor.u32 %v1252, 2147483648
        %v1600 = vxor.u32 %v1363, 2147483648
        %v1601 = vxor.u32 %v1365, 2147483648
        %v1602 = vxor.u32 %v1476, 2147483648
        %v1603 = vxor.u32 %v1478, 2147483648
        %v1604 = vxor.u32 %v1028, 2147483648
        %v1605 = vxor.u32 %v1030, 2147483648
        %v1606 = vxor.u32 %v1141, 2147483648
        %v1607 = vxor.u32 %v1143, 2147483648
        %v1608 = vxor.u32 %v1254, 2147483648
        %v1609 = vxor.u32 %v1256, 2147483648
        %v1610 = vxor.u32 %v1367, 2147483648
        %v1611 = vxor.u32 %v1369, 2147483648
        %v1612 = vxor.u32 %v1480, 2147483648
        %v1613 = vxor.u32 %v1482, 2147483648
        %v1614 = vxor.u32 %v1034, 2147483648
        %v1615 = vxor.u32 %v1036, 2147483648
        %v1616 = vxor.u32 %v1147, 2147483648
        %v1617 = vxor.u32 %v1149, 2147483648
        %v1618 = vxor.u32 %v1260, 2147483648
        %v1619 = vxor.u32 %v1262, 2147483648
        %v1620 = vxor.u32 %v1373, 2147483648
        %v1621 = vxor.u32 %v1375, 2147483648
        %v1622 = vxor.u32 %v1486, 2147483648
        %v1623 = vxor.u32 %v1488, 2147483648
        %v1624 = vxor.u32 %v1038, 2147483648
        %v1625 = vxor.u32 %v1040, 2147483648
        %v1626 = vxor.u32 %v1151, 2147483648
        %v1627 = vxor.u32 %v1153, 2147483648
        %v1628 = vxor.u32 %v1264, 2147483648
        %v1629 = vxor.u32 %v1266, 2147483648
        %v1630 = vxor.u32 %v1377, 2147483648
        %v1631 = vxor.u32 %v1379, 2147483648
        %v1632 = vxor.u32 %v1490, 2147483648
        %v1633 = vxor.u32 %v1492, 2147483648
        %v1634 = vxor.u32 %v1044, 2147483648
        %v1635 = vxor.u32 %v1046, 2147483648
        %v1636 = vxor.u32 %v1157, 2147483648
        %v1637 = vxor.u32 %v1159, 2147483648
        %v1638 = vxor.u32 %v1270, 2147483648
        %v1639 = vxor.u32 %v1272, 2147483648
        %v1640 = vxor.u32 %v1383, 2147483648
        %v1641 = vxor.u32 %v1385, 2147483648
        %v1642 = vxor.u32 %v1496, 2147483648
        %v1643 = vxor.u32 %v1498, 2147483648
        %v1644 = vxor.u32 %v1048, 2147483648
        %v1645 = vxor.u32 %v1050, 2147483648
        %v1646 = vxor.u32 %v1161, 2147483648
        %v1647 = vxor.u32 %v1163, 2147483648
        %v1648 = vxor.u32 %v1274, 2147483648
        %v1649 = vxor.u32 %v1276, 2147483648
        %v1650 = vxor.u32 %v1387, 2147483648
        %v1651 = vxor.u32 %v1389, 2147483648
        %v1652 = vxor.u32 %v1500, 2147483648
        %v1653 = vxor.u32 %v1502, 2147483648
        %v1654 = vxor.u32 %v1054, 2147483648
        %v1655 = vxor.u32 %v1056, 2147483648
        %v1656 = vxor.u32 %v1167, 2147483648
        %v1657 = vxor.u32 %v1169, 2147483648
        %v1658 = vxor.u32 %v1280, 2147483648
        %v1659 = vxor.u32 %v1282, 2147483648
        %v1660 = vxor.u32 %v1393, 2147483648
        %v1661 = vxor.u32 %v1395, 2147483648
        %v1662 = vxor.u32 %v1506, 2147483648
        %v1663 = vxor.u32 %v1508, 2147483648
        %v1664 = vxor.u32 %v1058, 2147483648
        %v1665 = vxor.u32 %v1060, 2147483648
        %v1666 = vxor.u32 %v1171, 2147483648
        %v1667 = vxor.u32 %v1173, 2147483648
        %v1668 = vxor.u32 %v1284, 2147483648
        %v1669 = vxor.u32 %v1286, 2147483648
        %v1670 = vxor.u32 %v1397, 2147483648
        %v1671 = vxor.u32 %v1399, 2147483648
        %v1672 = vxor.u32 %v1510, 2147483648
        %v1673 = vxor.u32 %v1512, 2147483648
        %v1674 = vmul.f32 %v1514, 1.442695
        %v1675 = vpow.pop %v1674
        %v1676 = vmul.f32 %v1515, 1.442695
        %v1677 = vpow.pop %v1676
        %v1678 = vmul.f32 %v1516, 1.442695
        %v1679 = vpow.pop %v1678
        %v1680 = vmul.f32 %v1517, 1.442695
        %v1681 = vpow.pop %v1680
        %v1682 = vmul.f32 %v1518, 1.442695
        %v1683 = vpow.pop %v1682
        %v1684 = vmul.f32 %v1519, 1.442695
        %v1685 = vpow.pop %v1684
        %v1686 = vmul.f32 %v1520, 1.442695
        %v1687 = vpow.pop %v1686
        %v1688 = vmul.f32 %v1521, 1.442695
        %v1689 = vpow.pop %v1688
        %v1690 = vmul.f32 %v1522, 1.442695
        %v1691 = vpow.pop %v1690
        %v1692 = vmul.f32 %v1523, 1.442695
        %v1693 = vpow.pop %v1692
        %v1694 = vmul.f32 %v1524, 1.442695
        %v1695 = vpow.pop %v1694
        %v1696 = vmul.f32 %v1525, 1.442695
        %v1697 = vpow.pop %v1696
        %v1698 = vmul.f32 %v1526, 1.442695
        %v1699 = vpow.pop %v1698
        %v1700 = vmul.f32 %v1527, 1.442695
        %v1701 = vpow.pop %v1700
        %v1702 = vmul.f32 %v1528, 1.442695
        %v1703 = vpow.pop %v1702
        %v1704 = vmul.f32 %v1529, 1.442695
        %v1705 = vpow.pop %v1704
        %v1706 = vmul.f32 %v1530, 1.442695
        %v1707 = vpow.pop %v1706
        %v1708 = vmul.f32 %v1531, 1.442695
        %v1709 = vpow.pop %v1708
        %v1710 = vmul.f32 %v1532, 1.442695
        %v1711 = vpow.pop %v1710
        %v1712 = vmul.f32 %v1533, 1.442695
        %v1713 = vpow.pop %v1712
        %v1714 = vmul.f32 %v1534, 1.442695
        %v1715 = vpow.pop %v1714
        %v1716 = vmul.f32 %v1535, 1.442695
        %v1717 = vpow.pop %v1716
        %v1718 = vmul.f32 %v1536, 1.442695
        %v1719 = vpow.pop %v1718
        %v1720 = vmul.f32 %v1537, 1.442695
        %v1721 = vpow.pop %v1720
        %v1722 = vmul.f32 %v1538, 1.442695
        %v1723 = vpow.pop %v1722
        %v1724 = vmul.f32 %v1539, 1.442695
        %v1725 = vpow.pop %v1724
        %v1726 = vmul.f32 %v1540, 1.442695
        %v1727 = vpow.pop %v1726
        %v1728 = vmul.f32 %v1541, 1.442695
        %v1729 = vpow.pop %v1728
        %v1730 = vmul.f32 %v1542, 1.442695
        %v1731 = vpow.pop %v1730
        %v1732 = vmul.f32 %v1543, 1.442695
        %v1733 = vpow.pop %v1732
        %v1734 = vmul.f32 %v1544, 1.442695
        %v1735 = vpow.pop %v1734
        %v1736 = vmul.f32 %v1545, 1.442695
        %v1737 = vpow.pop %v1736
        %v1738 = vmul.f32 %v1546, 1.442695
        %v1739 = vpow.pop %v1738
        %v1740 = vmul.f32 %v1547, 1.442695
        %v1741 = vpow.pop %v1740
        %v1742 = vmul.f32 %v1548, 1.442695
        %v1743 = vpow.pop %v1742
        %v1744 = vmul.f32 %v1549, 1.442695
        %v1745 = vpow.pop %v1744
        %v1746 = vmul.f32 %v1550, 1.442695
        %v1747 = vpow.pop %v1746
        %v1748 = vmul.f32 %v1551, 1.442695
        %v1749 = vpow.pop %v1748
        %v1750 = vmul.f32 %v1552, 1.442695
        %v1751 = vpow.pop %v1750
        %v1752 = vmul.f32 %v1553, 1.442695
        %v1753 = vpow.pop %v1752
        %v1754 = vmul.f32 %v1554, 1.442695
        %v1755 = vpow.pop %v1754
        %v1756 = vmul.f32 %v1555, 1.442695
        %v1757 = vpow.pop %v1756
        %v1758 = vmul.f32 %v1556, 1.442695
        %v1759 = vpow.pop %v1758
        %v1760 = vmul.f32 %v1557, 1.442695
        %v1761 = vpow.pop %v1760
        %v1762 = vmul.f32 %v1558, 1.442695
        %v1763 = vpow.pop %v1762
        %v1764 = vmul.f32 %v1559, 1.442695
        %v1765 = vpow.pop %v1764
        %v1766 = vmul.f32 %v1560, 1.442695
        %v1767 = vpow.pop %v1766
        %v1768 = vmul.f32 %v1561, 1.442695
        %v1769 = vpow.pop %v1768
        %v1770 = vmul.f32 %v1562, 1.442695
        %v1771 = vpow.pop %v1770
        %v1772 = vmul.f32 %v1563, 1.442695
        %v1773 = vpow.pop %v1772
        %v1774 = vmul.f32 %v1564, 1.442695
        %v1775 = vpow.pop %v1774
        %v1776 = vmul.f32 %v1565, 1.442695
        %v1777 = vpow.pop %v1776
        %v1778 = vmul.f32 %v1566, 1.442695
        %v1779 = vpow.pop %v1778
        %v1780 = vmul.f32 %v1567, 1.442695
        %v1781 = vpow.pop %v1780
        %v1782 = vmul.f32 %v1568, 1.442695
        %v1783 = vpow.pop %v1782
        %v1784 = vmul.f32 %v1569, 1.442695
        %v1785 = vpow.pop %v1784
        %v1786 = vmul.f32 %v1570, 1.442695
        %v1787 = vpow.pop %v1786
        %v1788 = vmul.f32 %v1571, 1.442695
        %v1789 = vpow.pop %v1788
        %v1790 = vmul.f32 %v1572, 1.442695
        %v1791 = vpow.pop %v1790
        %v1792 = vmul.f32 %v1573, 1.442695
        %v1793 = vpow.pop %v1792
        %v1794 = vmul.f32 %v1574, 1.442695
        %v1795 = vpow.pop %v1794
        %v1796 = vmul.f32 %v1575, 1.442695
        %v1797 = vpow.pop %v1796
        %v1798 = vmul.f32 %v1576, 1.442695
        %v1799 = vpow.pop %v1798
        %v1800 = vmul.f32 %v1577, 1.442695
        %v1801 = vpow.pop %v1800
        %v1802 = vmul.f32 %v1578, 1.442695
        %v1803 = vpow.pop %v1802
        %v1804 = vmul.f32 %v1579, 1.442695
        %v1805 = vpow.pop %v1804
        %v1806 = vmul.f32 %v1580, 1.442695
        %v1807 = vpow.pop %v1806
        %v1808 = vmul.f32 %v1581, 1.442695
        %v1809 = vpow.pop %v1808
        %v1810 = vmul.f32 %v1582, 1.442695
        %v1811 = vpow.pop %v1810
        %v1812 = vmul.f32 %v1583, 1.442695
        %v1813 = vpow.pop %v1812
        %v1814 = vmul.f32 %v1584, 1.442695
        %v1815 = vpow.pop %v1814
        %v1816 = vmul.f32 %v1585, 1.442695
        %v1817 = vpow.pop %v1816
        %v1818 = vmul.f32 %v1586, 1.442695
        %v1819 = vpow.pop %v1818
        %v1820 = vmul.f32 %v1587, 1.442695
        %v1821 = vpow.pop %v1820
        %v1822 = vmul.f32 %v1588, 1.442695
        %v1823 = vpow.pop %v1822
        %v1824 = vmul.f32 %v1589, 1.442695
        %v1825 = vpow.pop %v1824
        %v1826 = vmul.f32 %v1590, 1.442695
        %v1827 = vpow.pop %v1826
        %v1828 = vmul.f32 %v1591, 1.442695
        %v1829 = vpow.pop %v1828
        %v1830 = vmul.f32 %v1592, 1.442695
        %v1831 = vpow.pop %v1830
        %v1832 = vmul.f32 %v1593, 1.442695
        %v1833 = vpow.pop %v1832
        %v1834 = vmul.f32 %v1594, 1.442695
        %v1835 = vpow.pop %v1834
        %v1836 = vmul.f32 %v1595, 1.442695
        %v1837 = vpow.pop %v1836
        %v1838 = vmul.f32 %v1596, 1.442695
        %v1839 = vpow.pop %v1838
        %v1840 = vmul.f32 %v1597, 1.442695
        %v1841 = vpow.pop %v1840
        %v1842 = vmul.f32 %v1598, 1.442695
        %v1843 = vpow.pop %v1842
        %v1844 = vmul.f32 %v1599, 1.442695
        %v1845 = vpow.pop %v1844
        %v1846 = vmul.f32 %v1600, 1.442695
        %v1847 = vpow.pop %v1846
        %v1848 = vmul.f32 %v1601, 1.442695
        %v1849 = vpow.pop %v1848
        %v1850 = vmul.f32 %v1602, 1.442695
        %v1851 = vpow.pop %v1850
        %v1852 = vmul.f32 %v1603, 1.442695
        %v1853 = vpow.pop %v1852
        %v1854 = vmul.f32 %v1604, 1.442695
        %v1855 = vpow.pop %v1854
        %v1856 = vmul.f32 %v1605, 1.442695
        %v1857 = vpow.pop %v1856
        %v1858 = vmul.f32 %v1606, 1.442695
        %v1859 = vpow.pop %v1858
        %v1860 = vmul.f32 %v1607, 1.442695
        %v1861 = vpow.pop %v1860
        %v1862 = vmul.f32 %v1608, 1.442695
        %v1863 = vpow.pop %v1862
        %v1864 = vmul.f32 %v1609, 1.442695
        %v1865 = vpow.pop %v1864
        %v1866 = vmul.f32 %v1610, 1.442695
        %v1867 = vpow.pop %v1866
        %v1868 = vmul.f32 %v1611, 1.442695
        %v1869 = vpow.pop %v1868
        %v1870 = vmul.f32 %v1612, 1.442695
        %v1871 = vpow.pop %v1870
        %v1872 = vmul.f32 %v1613, 1.442695
        %v1873 = vpow.pop %v1872
        %v1874 = vmul.f32 %v1614, 1.442695
        %v1875 = vpow.pop %v1874
        %v1876 = vmul.f32 %v1615, 1.442695
        %v1877 = vpow.pop %v1876
        %v1878 = vmul.f32 %v1616, 1.442695
        %v1879 = vpow.pop %v1878
        %v1880 = vmul.f32 %v1617, 1.442695
        %v1881 = vpow.pop %v1880
        %v1882 = vmul.f32 %v1618, 1.442695
        %v1883 = vpow.pop %v1882
        %v1884 = vmul.f32 %v1619, 1.442695
        %v1885 = vpow.pop %v1884
        %v1886 = vmul.f32 %v1620, 1.442695
        %v1887 = vpow.pop %v1886
        %v1888 = vmul.f32 %v1621, 1.442695
        %v1889 = vpow.pop %v1888
        %v1890 = vmul.f32 %v1622, 1.442695
        %v1891 = vpow.pop %v1890
        %v1892 = vmul.f32 %v1623, 1.442695
        %v1893 = vpow.pop %v1892
        %v1894 = vmul.f32 %v1624, 1.442695
        %v1895 = vpow.pop %v1894
        %v1896 = vmul.f32 %v1625, 1.442695
        %v1897 = vpow.pop %v1896
        %v1898 = vmul.f32 %v1626, 1.442695
        %v1899 = vpow.pop %v1898
        %v1900 = vmul.f32 %v1627, 1.442695
        %v1901 = vpow.pop %v1900
        %v1902 = vmul.f32 %v1628, 1.442695
        %v1903 = vpow.pop %v1902
        %v1904 = vmul.f32 %v1629, 1.442695
        %v1905 = vpow.pop %v1904
        %v1906 = vmul.f32 %v1630, 1.442695
        %v1907 = vpow.pop %v1906
        %v1908 = vmul.f32 %v1631, 1.442695
        %v1909 = vpow.pop %v1908
        %v1910 = vmul.f32 %v1632, 1.442695
        %v1911 = vpow.pop %v1910
        %v1912 = vmul.f32 %v1633, 1.442695
        %v1913 = vpow.pop %v1912
        %v1914 = vmul.f32 %v1634, 1.442695
        %v1915 = vpow.pop %v1914
        %v1916 = vmul.f32 %v1635, 1.442695
        %v1917 = vpow.pop %v1916
        %v1918 = vmul.f32 %v1636, 1.442695
        %v1919 = vpow.pop %v1918
        %v1920 = vmul.f32 %v1637, 1.442695
        %v1921 = vpow.pop %v1920
        %v1922 = vmul.f32 %v1638, 1.442695
        %v1923 = vpow.pop %v1922
        %v1924 = vmul.f32 %v1639, 1.442695
        %v1925 = vpow.pop %v1924
        %v1926 = vmul.f32 %v1640, 1.442695
        %v1927 = vpow.pop %v1926
        %v1928 = vmul.f32 %v1641, 1.442695
        %v1929 = vpow.pop %v1928
        %v1930 = vmul.f32 %v1642, 1.442695
        %v1931 = vpow.pop %v1930
        %v1932 = vmul.f32 %v1643, 1.442695
        %v1933 = vpow.pop %v1932
        %v1934 = vmul.f32 %v1644, 1.442695
        %v1935 = vpow.pop %v1934
        %v1936 = vmul.f32 %v1645, 1.442695
        %v1937 = vpow.pop %v1936
        %v1938 = vmul.f32 %v1646, 1.442695
        %v1939 = vpow.pop %v1938
        %v1940 = vmul.f32 %v1647, 1.442695
        %v1941 = vpow.pop %v1940
        %v1942 = vmul.f32 %v1648, 1.442695
        %v1943 = vpow.pop %v1942
        %v1944 = vmul.f32 %v1649, 1.442695
        %v1945 = vpow.pop %v1944
        %v1946 = vmul.f32 %v1650, 1.442695
        %v1947 = vpow.pop %v1946
        %v1948 = vmul.f32 %v1651, 1.442695
        %v1949 = vpow.pop %v1948
        %v1950 = vmul.f32 %v1652, 1.442695
        %v1951 = vpow.pop %v1950
        %v1952 = vmul.f32 %v1653, 1.442695
        %v1953 = vpow.pop %v1952
        %v1954 = vmul.f32 %v1654, 1.442695
        %v1955 = vpow.pop %v1954
        %v1956 = vmul.f32 %v1655, 1.442695
        %v1957 = vpow.pop %v1956
        %v1958 = vmul.f32 %v1656, 1.442695
        %v1959 = vpow.pop %v1958
        %v1960 = vmul.f32 %v1657, 1.442695
        %v1961 = vpow.pop %v1960
        %v1962 = vmul.f32 %v1658, 1.442695
        %v1963 = vpow.pop %v1962
        %v1964 = vmul.f32 %v1659, 1.442695
        %v1965 = vpow.pop %v1964
        %v1966 = vmul.f32 %v1660, 1.442695
        %v1967 = vpow.pop %v1966
        %v1968 = vmul.f32 %v1661, 1.442695
        %v1969 = vpow.pop %v1968
        %v1970 = vmul.f32 %v1662, 1.442695
        %v1971 = vpow.pop %v1970
        %v1972 = vmul.f32 %v1663, 1.442695
        %v1973 = vpow.pop %v1972
        %v1974 = vmul.f32 %v1664, 1.442695
        %v1975 = vpow.pop %v1974
        %v1976 = vmul.f32 %v1665, 1.442695
        %v1977 = vpow.pop %v1976
        %v1978 = vmul.f32 %v1666, 1.442695
        %v1979 = vpow.pop %v1978
        %v1980 = vmul.f32 %v1667, 1.442695
        %v1981 = vpow.pop %v1980
        %v1982 = vmul.f32 %v1668, 1.442695
        %v1983 = vpow.pop %v1982
        %v1984 = vmul.f32 %v1669, 1.442695
        %v1985 = vpow.pop %v1984
        %v1986 = vmul.f32 %v1670, 1.442695
        %v1987 = vpow.pop %v1986
        %v1988 = vmul.f32 %v1671, 1.442695
        %v1989 = vpow.pop %v1988
        %v1990 = vmul.f32 %v1672, 1.442695
        %v1991 = vpow.pop %v1990
        %v1992 = vmul.f32 %v1673, 1.442695
        %v1993 = vpow.pop %v1992
        %v1994 = vadd.f32 %v1675, 1.0
        %v1995 = vadd.f32 %v1677, 1.0
        %v1996 = vadd.f32 %v1679, 1.0
        %v1997 = vadd.f32 %v1681, 1.0
        %v1998 = vadd.f32 %v1683, 1.0
        %v1999 = vadd.f32 %v1685, 1.0
        %v2000 = vadd.f32 %v1687, 1.0
        %v2001 = vadd.f32 %v1689, 1.0
        %v2002 = vadd.f32 %v1691, 1.0
        %v2003 = vadd.f32 %v1693, 1.0
        %v2004 = vadd.f32 %v1695, 1.0
        %v2005 = vadd.f32 %v1697, 1.0
        %v2006 = vadd.f32 %v1699, 1.0
        %v2007 = vadd.f32 %v1701, 1.0
        %v2008 = vadd.f32 %v1703, 1.0
        %v2009 = vadd.f32 %v1705, 1.0
        %v2010 = vadd.f32 %v1707, 1.0
        %v2011 = vadd.f32 %v1709, 1.0
        %v2012 = vadd.f32 %v1711, 1.0
        %v2013 = vadd.f32 %v1713, 1.0
        %v2014 = vadd.f32 %v1715, 1.0
        %v2015 = vadd.f32 %v1717, 1.0
        %v2016 = vadd.f32 %v1719, 1.0
        %v2017 = vadd.f32 %v1721, 1.0
        %v2018 = vadd.f32 %v1723, 1.0
        %v2019 = vadd.f32 %v1725, 1.0
        %v2020 = vadd.f32 %v1727, 1.0
        %v2021 = vadd.f32 %v1729, 1.0
        %v2022 = vadd.f32 %v1731, 1.0
        %v2023 = vadd.f32 %v1733, 1.0
        %v2024 = vadd.f32 %v1735, 1.0
        %v2025 = vadd.f32 %v1737, 1.0
        %v2026 = vadd.f32 %v1739, 1.0
        %v2027 = vadd.f32 %v1741, 1.0
        %v2028 = vadd.f32 %v1743, 1.0
        %v2029 = vadd.f32 %v1745, 1.0
        %v2030 = vadd.f32 %v1747, 1.0
        %v2031 = vadd.f32 %v1749, 1.0
        %v2032 = vadd.f32 %v1751, 1.0
        %v2033 = vadd.f32 %v1753, 1.0
        %v2034 = vadd.f32 %v1755, 1.0
        %v2035 = vadd.f32 %v1757, 1.0
        %v2036 = vadd.f32 %v1759, 1.0
        %v2037 = vadd.f32 %v1761, 1.0
        %v2038 = vadd.f32 %v1763, 1.0
        %v2039 = vadd.f32 %v1765, 1.0
        %v2040 = vadd.f32 %v1767, 1.0
        %v2041 = vadd.f32 %v1769, 1.0
        %v2042 = vadd.f32 %v1771, 1.0
        %v2043 = vadd.f32 %v1773, 1.0
        %v2044 = vadd.f32 %v1775, 1.0
        %v2045 = vadd.f32 %v1777, 1.0
        %v2046 = vadd.f32 %v1779, 1.0
        %v2047 = vadd.f32 %v1781, 1.0
        %v2048 = vadd.f32 %v1783, 1.0
        %v2049 = vadd.f32 %v1785, 1.0
        %v2050 = vadd.f32 %v1787, 1.0
        %v2051 = vadd.f32 %v1789, 1.0
        %v2052 = vadd.f32 %v1791, 1.0
        %v2053 = vadd.f32 %v1793, 1.0
        %v2054 = vadd.f32 %v1795, 1.0
        %v2055 = vadd.f32 %v1797, 1.0
        %v2056 = vadd.f32 %v1799, 1.0
        %v2057 = vadd.f32 %v1801, 1.0
        %v2058 = vadd.f32 %v1803, 1.0
        %v2059 = vadd.f32 %v1805, 1.0
        %v2060 = vadd.f32 %v1807, 1.0
        %v2061 = vadd.f32 %v1809, 1.0
        %v2062 = vadd.f32 %v1811, 1.0
        %v2063 = vadd.f32 %v1813, 1.0
        %v2064 = vadd.f32 %v1815, 1.0
        %v2065 = vadd.f32 %v1817, 1.0
        %v2066 = vadd.f32 %v1819, 1.0
        %v2067 = vadd.f32 %v1821, 1.0
        %v2068 = vadd.f32 %v1823, 1.0
        %v2069 = vadd.f32 %v1825, 1.0
        %v2070 = vadd.f32 %v1827, 1.0
        %v2071 = vadd.f32 %v1829, 1.0
        %v2072 = vadd.f32 %v1831, 1.0
        %v2073 = vadd.f32 %v1833, 1.0
        %v2074 = vadd.f32 %v1835, 1.0
        %v2075 = vadd.f32 %v1837, 1.0
        %v2076 = vadd.f32 %v1839, 1.0
        %v2077 = vadd.f32 %v1841, 1.0
        %v2078 = vadd.f32 %v1843, 1.0
        %v2079 = vadd.f32 %v1845, 1.0
        %v2080 = vadd.f32 %v1847, 1.0
        %v2081 = vadd.f32 %v1849, 1.0
        %v2082 = vadd.f32 %v1851, 1.0
        %v2083 = vadd.f32 %v1853, 1.0
        %v2084 = vadd.f32 %v1855, 1.0
        %v2085 = vadd.f32 %v1857, 1.0
        %v2086 = vadd.f32 %v1859, 1.0
        %v2087 = vadd.f32 %v1861, 1.0
        %v2088 = vadd.f32 %v1863, 1.0
        %v2089 = vadd.f32 %v1865, 1.0
        %v2090 = vadd.f32 %v1867, 1.0
        %v2091 = vadd.f32 %v1869, 1.0
        %v2092 = vadd.f32 %v1871, 1.0
        %v2093 = vadd.f32 %v1873, 1.0
        %v2094 = vadd.f32 %v1875, 1.0
        %v2095 = vadd.f32 %v1877, 1.0
        %v2096 = vadd.f32 %v1879, 1.0
        %v2097 = vadd.f32 %v1881, 1.0
        %v2098 = vadd.f32 %v1883, 1.0
        %v2099 = vadd.f32 %v1885, 1.0
        %v2100 = vadd.f32 %v1887, 1.0
        %v2101 = vadd.f32 %v1889, 1.0
        %v2102 = vadd.f32 %v1891, 1.0
        %v2103 = vadd.f32 %v1893, 1.0
        %v2104 = vadd.f32 %v1895, 1.0
        %v2105 = vadd.f32 %v1897, 1.0
        %v2106 = vadd.f32 %v1899, 1.0
        %v2107 = vadd.f32 %v1901, 1.0
        %v2108 = vadd.f32 %v1903, 1.0
        %v2109 = vadd.f32 %v1905, 1.0
        %v2110 = vadd.f32 %v1907, 1.0
        %v2111 = vadd.f32 %v1909, 1.0
        %v2112 = vadd.f32 %v1911, 1.0
        %v2113 = vadd.f32 %v1913, 1.0
        %v2114 = vadd.f32 %v1915, 1.0
        %v2115 = vadd.f32 %v1917, 1.0
        %v2116 = vadd.f32 %v1919, 1.0
        %v2117 = vadd.f32 %v1921, 1.0
        %v2118 = vadd.f32 %v1923, 1.0
        %v2119 = vadd.f32 %v1925, 1.0
        %v2120 = vadd.f32 %v1927, 1.0
        %v2121 = vadd.f32 %v1929, 1.0
        %v2122 = vadd.f32 %v1931, 1.0
        %v2123 = vadd.f32 %v1933, 1.0
        %v2124 = vadd.f32 %v1935, 1.0
        %v2125 = vadd.f32 %v1937, 1.0
        %v2126 = vadd.f32 %v1939, 1.0
        %v2127 = vadd.f32 %v1941, 1.0
        %v2128 = vadd.f32 %v1943, 1.0
        %v2129 = vadd.f32 %v1945, 1.0
        %v2130 = vadd.f32 %v1947, 1.0
        %v2131 = vadd.f32 %v1949, 1.0
        %v2132 = vadd.f32 %v1951, 1.0
        %v2133 = vadd.f32 %v1953, 1.0
        %v2134 = vadd.f32 %v1955, 1.0
        %v2135 = vadd.f32 %v1957, 1.0
        %v2136 = vadd.f32 %v1959, 1.0
        %v2137 = vadd.f32 %v1961, 1.0
        %v2138 = vadd.f32 %v1963, 1.0
        %v2139 = vadd.f32 %v1965, 1.0
        %v2140 = vadd.f32 %v1967, 1.0
        %v2141 = vadd.f32 %v1969, 1.0
        %v2142 = vadd.f32 %v1971, 1.0
        %v2143 = vadd.f32 %v1973, 1.0
        %v2144 = vadd.f32 %v1975, 1.0
        %v2145 = vadd.f32 %v1977, 1.0
        %v2146 = vadd.f32 %v1979, 1.0
        %v2147 = vadd.f32 %v1981, 1.0
        %v2148 = vadd.f32 %v1983, 1.0
        %v2149 = vadd.f32 %v1985, 1.0
        %v2150 = vadd.f32 %v1987, 1.0
        %v2151 = vadd.f32 %v1989, 1.0
        %v2152 = vadd.f32 %v1991, 1.0
        %v2153 = vadd.f32 %v1993, 1.0
        %v2154 = vrcp.pop %v1994
        %v2155 = vmul.f32 1.0, %v2154
        %v2156 = vrcp.pop %v1995
        %v2157 = vmul.f32 1.0, %v2156
        %v2158 = vrcp.pop %v1996
        %v2159 = vmul.f32 1.0, %v2158
        %v2160 = vrcp.pop %v1997
        %v2161 = vmul.f32 1.0, %v2160
        %v2162 = vrcp.pop %v1998
        %v2163 = vmul.f32 1.0, %v2162
        %v2164 = vrcp.pop %v1999
        %v2165 = vmul.f32 1.0, %v2164
        %v2166 = vrcp.pop %v2000
        %v2167 = vmul.f32 1.0, %v2166
        %v2168 = vrcp.pop %v2001
        %v2169 = vmul.f32 1.0, %v2168
        %v2170 = vrcp.pop %v2002
        %v2171 = vmul.f32 1.0, %v2170
        %v2172 = vrcp.pop %v2003
        %v2173 = vmul.f32 1.0, %v2172
        %v2174 = vrcp.pop %v2004
        %v2175 = vmul.f32 1.0, %v2174
        %v2176 = vrcp.pop %v2005
        %v2177 = vmul.f32 1.0, %v2176
        %v2178 = vrcp.pop %v2006
        %v2179 = vmul.f32 1.0, %v2178
        %v2180 = vrcp.pop %v2007
        %v2181 = vmul.f32 1.0, %v2180
        %v2182 = vrcp.pop %v2008
        %v2183 = vmul.f32 1.0, %v2182
        %v2184 = vrcp.pop %v2009
        %v2185 = vmul.f32 1.0, %v2184
        %v2186 = vrcp.pop %v2010
        %v2187 = vmul.f32 1.0, %v2186
        %v2188 = vrcp.pop %v2011
        %v2189 = vmul.f32 1.0, %v2188
        %v2190 = vrcp.pop %v2012
        %v2191 = vmul.f32 1.0, %v2190
        %v2192 = vrcp.pop %v2013
        %v2193 = vmul.f32 1.0, %v2192
        %v2194 = vrcp.pop %v2014
        %v2195 = vmul.f32 1.0, %v2194
        %v2196 = vrcp.pop %v2015
        %v2197 = vmul.f32 1.0, %v2196
        %v2198 = vrcp.pop %v2016
        %v2199 = vmul.f32 1.0, %v2198
        %v2200 = vrcp.pop %v2017
        %v2201 = vmul.f32 1.0, %v2200
        %v2202 = vrcp.pop %v2018
        %v2203 = vmul.f32 1.0, %v2202
        %v2204 = vrcp.pop %v2019
        %v2205 = vmul.f32 1.0, %v2204
        %v2206 = vrcp.pop %v2020
        %v2207 = vmul.f32 1.0, %v2206
        %v2208 = vrcp.pop %v2021
        %v2209 = vmul.f32 1.0, %v2208
        %v2210 = vrcp.pop %v2022
        %v2211 = vmul.f32 1.0, %v2210
        %v2212 = vrcp.pop %v2023
        %v2213 = vmul.f32 1.0, %v2212
        %v2214 = vrcp.pop %v2024
        %v2215 = vmul.f32 1.0, %v2214
        %v2216 = vrcp.pop %v2025
        %v2217 = vmul.f32 1.0, %v2216
        %v2218 = vrcp.pop %v2026
        %v2219 = vmul.f32 1.0, %v2218
        %v2220 = vrcp.pop %v2027
        %v2221 = vmul.f32 1.0, %v2220
        %v2222 = vrcp.pop %v2028
        %v2223 = vmul.f32 1.0, %v2222
        %v2224 = vrcp.pop %v2029
        %v2225 = vmul.f32 1.0, %v2224
        %v2226 = vrcp.pop %v2030
        %v2227 = vmul.f32 1.0, %v2226
        %v2228 = vrcp.pop %v2031
        %v2229 = vmul.f32 1.0, %v2228
        %v2230 = vrcp.pop %v2032
        %v2231 = vmul.f32 1.0, %v2230
        %v2232 = vrcp.pop %v2033
        %v2233 = vmul.f32 1.0, %v2232
        %v2234 = vrcp.pop %v2034
        %v2235 = vmul.f32 1.0, %v2234
        %v2236 = vrcp.pop %v2035
        %v2237 = vmul.f32 1.0, %v2236
        %v2238 = vrcp.pop %v2036
        %v2239 = vmul.f32 1.0, %v2238
        %v2240 = vrcp.pop %v2037
        %v2241 = vmul.f32 1.0, %v2240
        %v2242 = vrcp.pop %v2038
        %v2243 = vmul.f32 1.0, %v2242
        %v2244 = vrcp.pop %v2039
        %v2245 = vmul.f32 1.0, %v2244
        %v2246 = vrcp.pop %v2040
        %v2247 = vmul.f32 1.0, %v2246
        %v2248 = vrcp.pop %v2041
        %v2249 = vmul.f32 1.0, %v2248
        %v2250 = vrcp.pop %v2042
        %v2251 = vmul.f32 1.0, %v2250
        %v2252 = vrcp.pop %v2043
        %v2253 = vmul.f32 1.0, %v2252
        %v2254 = vrcp.pop %v2044
        %v2255 = vmul.f32 1.0, %v2254
        %v2256 = vrcp.pop %v2045
        %v2257 = vmul.f32 1.0, %v2256
        %v2258 = vrcp.pop %v2046
        %v2259 = vmul.f32 1.0, %v2258
        %v2260 = vrcp.pop %v2047
        %v2261 = vmul.f32 1.0, %v2260
        %v2262 = vrcp.pop %v2048
        %v2263 = vmul.f32 1.0, %v2262
        %v2264 = vrcp.pop %v2049
        %v2265 = vmul.f32 1.0, %v2264
        %v2266 = vrcp.pop %v2050
        %v2267 = vmul.f32 1.0, %v2266
        %v2268 = vrcp.pop %v2051
        %v2269 = vmul.f32 1.0, %v2268
        %v2270 = vrcp.pop %v2052
        %v2271 = vmul.f32 1.0, %v2270
        %v2272 = vrcp.pop %v2053
        %v2273 = vmul.f32 1.0, %v2272
        %v2274 = vrcp.pop %v2054
        %v2275 = vmul.f32 1.0, %v2274
        %v2276 = vrcp.pop %v2055
        %v2277 = vmul.f32 1.0, %v2276
        %v2278 = vrcp.pop %v2056
        %v2279 = vmul.f32 1.0, %v2278
        %v2280 = vrcp.pop %v2057
        %v2281 = vmul.f32 1.0, %v2280
        %v2282 = vrcp.pop %v2058
        %v2283 = vmul.f32 1.0, %v2282
        %v2284 = vrcp.pop %v2059
        %v2285 = vmul.f32 1.0, %v2284
        %v2286 = vrcp.pop %v2060
        %v2287 = vmul.f32 1.0, %v2286
        %v2288 = vrcp.pop %v2061
        %v2289 = vmul.f32 1.0, %v2288
        %v2290 = vrcp.pop %v2062
        %v2291 = vmul.f32 1.0, %v2290
        %v2292 = vrcp.pop %v2063
        %v2293 = vmul.f32 1.0, %v2292
        %v2294 = vrcp.pop %v2064
        %v2295 = vmul.f32 1.0, %v2294
        %v2296 = vrcp.pop %v2065
        %v2297 = vmul.f32 1.0, %v2296
        %v2298 = vrcp.pop %v2066
        %v2299 = vmul.f32 1.0, %v2298
        %v2300 = vrcp.pop %v2067
        %v2301 = vmul.f32 1.0, %v2300
        %v2302 = vrcp.pop %v2068
        %v2303 = vmul.f32 1.0, %v2302
        %v2304 = vrcp.pop %v2069
        %v2305 = vmul.f32 1.0, %v2304
        %v2306 = vrcp.pop %v2070
        %v2307 = vmul.f32 1.0, %v2306
        %v2308 = vrcp.pop %v2071
        %v2309 = vmul.f32 1.0, %v2308
        %v2310 = vrcp.pop %v2072
        %v2311 = vmul.f32 1.0, %v2310
        %v2312 = vrcp.pop %v2073
        %v2313 = vmul.f32 1.0, %v2312
        %v2314 = vrcp.pop %v2074
        %v2315 = vmul.f32 1.0, %v2314
        %v2316 = vrcp.pop %v2075
        %v2317 = vmul.f32 1.0, %v2316
        %v2318 = vrcp.pop %v2076
        %v2319 = vmul.f32 1.0, %v2318
        %v2320 = vrcp.pop %v2077
        %v2321 = vmul.f32 1.0, %v2320
        %v2322 = vrcp.pop %v2078
        %v2323 = vmul.f32 1.0, %v2322
        %v2324 = vrcp.pop %v2079
        %v2325 = vmul.f32 1.0, %v2324
        %v2326 = vrcp.pop %v2080
        %v2327 = vmul.f32 1.0, %v2326
        %v2328 = vrcp.pop %v2081
        %v2329 = vmul.f32 1.0, %v2328
        %v2330 = vrcp.pop %v2082
        %v2331 = vmul.f32 1.0, %v2330
        %v2332 = vrcp.pop %v2083
        %v2333 = vmul.f32 1.0, %v2332
        %v2334 = vrcp.pop %v2084
        %v2335 = vmul.f32 1.0, %v2334
        %v2336 = vrcp.pop %v2085
        %v2337 = vmul.f32 1.0, %v2336
        %v2338 = vrcp.pop %v2086
        %v2339 = vmul.f32 1.0, %v2338
        %v2340 = vrcp.pop %v2087
        %v2341 = vmul.f32 1.0, %v2340
        %v2342 = vrcp.pop %v2088
        %v2343 = vmul.f32 1.0, %v2342
        %v2344 = vrcp.pop %v2089
        %v2345 = vmul.f32 1.0, %v2344
        %v2346 = vrcp.pop %v2090
        %v2347 = vmul.f32 1.0, %v2346
        %v2348 = vrcp.pop %v2091
        %v2349 = vmul.f32 1.0, %v2348
        %v2350 = vrcp.pop %v2092
        %v2351 = vmul.f32 1.0, %v2350
        %v2352 = vrcp.pop %v2093
        %v2353 = vmul.f32 1.0, %v2352
        %v2354 = vrcp.pop %v2094
        %v2355 = vmul.f32 1.0, %v2354
        %v2356 = vrcp.pop %v2095
        %v2357 = vmul.f32 1.0, %v2356
        %v2358 = vrcp.pop %v2096
        %v2359 = vmul.f32 1.0, %v2358
        %v2360 = vrcp.pop %v2097
        %v2361 = vmul.f32 1.0, %v2360
        %v2362 = vrcp.pop %v2098
        %v2363 = vmul.f32 1.0, %v2362
        %v2364 = vrcp.pop %v2099
        %v2365 = vmul.f32 1.0, %v2364
        %v2366 = vrcp.pop %v2100
        %v2367 = vmul.f32 1.0, %v2366
        %v2368 = vrcp.pop %v2101
        %v2369 = vmul.f32 1.0, %v2368
        %v2370 = vrcp.pop %v2102
        %v2371 = vmul.f32 1.0, %v2370
        %v2372 = vrcp.pop %v2103
        %v2373 = vmul.f32 1.0, %v2372
        %v2374 = vrcp.pop %v2104
        %v2375 = vmul.f32 1.0, %v2374
        %v2376 = vrcp.pop %v2105
        %v2377 = vmul.f32 1.0, %v2376
        %v2378 = vrcp.pop %v2106
        %v2379 = vmul.f32 1.0, %v2378
        %v2380 = vrcp.pop %v2107
        %v2381 = vmul.f32 1.0, %v2380
        %v2382 = vrcp.pop %v2108
        %v2383 = vmul.f32 1.0, %v2382
        %v2384 = vrcp.pop %v2109
        %v2385 = vmul.f32 1.0, %v2384
        %v2386 = vrcp.pop %v2110
        %v2387 = vmul.f32 1.0, %v2386
        %v2388 = vrcp.pop %v2111
        %v2389 = vmul.f32 1.0, %v2388
        %v2390 = vrcp.pop %v2112
        %v2391 = vmul.f32 1.0, %v2390
        %v2392 = vrcp.pop %v2113
        %v2393 = vmul.f32 1.0, %v2392
        %v2394 = vrcp.pop %v2114
        %v2395 = vmul.f32 1.0, %v2394
        %v2396 = vrcp.pop %v2115
        %v2397 = vmul.f32 1.0, %v2396
        %v2398 = vrcp.pop %v2116
        %v2399 = vmul.f32 1.0, %v2398
        %v2400 = vrcp.pop %v2117
        %v2401 = vmul.f32 1.0, %v2400
        %v2402 = vrcp.pop %v2118
        %v2403 = vmul.f32 1.0, %v2402
        %v2404 = vrcp.pop %v2119
        %v2405 = vmul.f32 1.0, %v2404
        %v2406 = vrcp.pop %v2120
        %v2407 = vmul.f32 1.0, %v2406
        %v2408 = vrcp.pop %v2121
        %v2409 = vmul.f32 1.0, %v2408
        %v2410 = vrcp.pop %v2122
        %v2411 = vmul.f32 1.0, %v2410
        %v2412 = vrcp.pop %v2123
        %v2413 = vmul.f32 1.0, %v2412
        %v2414 = vrcp.pop %v2124
        %v2415 = vmul.f32 1.0, %v2414
        %v2416 = vrcp.pop %v2125
        %v2417 = vmul.f32 1.0, %v2416
        %v2418 = vrcp.pop %v2126
        %v2419 = vmul.f32 1.0, %v2418
        %v2420 = vrcp.pop %v2127
        %v2421 = vmul.f32 1.0, %v2420
        %v2422 = vrcp.pop %v2128
        %v2423 = vmul.f32 1.0, %v2422
        %v2424 = vrcp.pop %v2129
        %v2425 = vmul.f32 1.0, %v2424
        %v2426 = vrcp.pop %v2130
        %v2427 = vmul.f32 1.0, %v2426
        %v2428 = vrcp.pop %v2131
        %v2429 = vmul.f32 1.0, %v2428
        %v2430 = vrcp.pop %v2132
        %v2431 = vmul.f32 1.0, %v2430
        %v2432 = vrcp.pop %v2133
        %v2433 = vmul.f32 1.0, %v2432
        %v2434 = vrcp.pop %v2134
        %v2435 = vmul.f32 1.0, %v2434
        %v2436 = vrcp.pop %v2135
        %v2437 = vmul.f32 1.0, %v2436
        %v2438 = vrcp.pop %v2136
        %v2439 = vmul.f32 1.0, %v2438
        %v2440 = vrcp.pop %v2137
        %v2441 = vmul.f32 1.0, %v2440
        %v2442 = vrcp.pop %v2138
        %v2443 = vmul.f32 1.0, %v2442
        %v2444 = vrcp.pop %v2139
        %v2445 = vmul.f32 1.0, %v2444
        %v2446 = vrcp.pop %v2140
        %v2447 = vmul.f32 1.0, %v2446
        %v2448 = vrcp.pop %v2141
        %v2449 = vmul.f32 1.0, %v2448
        %v2450 = vrcp.pop %v2142
        %v2451 = vmul.f32 1.0, %v2450
        %v2452 = vrcp.pop %v2143
        %v2453 = vmul.f32 1.0, %v2452
        %v2454 = vrcp.pop %v2144
        %v2455 = vmul.f32 1.0, %v2454
        %v2456 = vrcp.pop %v2145
        %v2457 = vmul.f32 1.0, %v2456
        %v2458 = vrcp.pop %v2146
        %v2459 = vmul.f32 1.0, %v2458
        %v2460 = vrcp.pop %v2147
        %v2461 = vmul.f32 1.0, %v2460
        %v2462 = vrcp.pop %v2148
        %v2463 = vmul.f32 1.0, %v2462
        %v2464 = vrcp.pop %v2149
        %v2465 = vmul.f32 1.0, %v2464
        %v2466 = vrcp.pop %v2150
        %v2467 = vmul.f32 1.0, %v2466
        %v2468 = vrcp.pop %v2151
        %v2469 = vmul.f32 1.0, %v2468
        %v2470 = vrcp.pop %v2152
        %v2471 = vmul.f32 1.0, %v2470
        %v2472 = vrcp.pop %v2153
        %v2473 = vmul.f32 1.0, %v2472
        %v2474 = vmul.f32 %v984, %v2155
        %v2475 = vmul.f32 %v986, %v2157
        %v2476 = vmul.f32 %v1097, %v2159
        %v2477 = vmul.f32 %v1099, %v2161
        %v2478 = vmul.f32 %v1210, %v2163
        %v2479 = vmul.f32 %v1212, %v2165
        %v2480 = vmul.f32 %v1323, %v2167
        %v2481 = vmul.f32 %v1325, %v2169
        %v2482 = vmul.f32 %v1436, %v2171
        %v2483 = vmul.f32 %v1438, %v2173
        %v2484 = vmul.f32 %v988, %v2175
        %v2485 = vmul.f32 %v990, %v2177
        %v2486 = vmul.f32 %v1101, %v2179
        %v2487 = vmul.f32 %v1103, %v2181
        %v2488 = vmul.f32 %v1214, %v2183
        %v2489 = vmul.f32 %v1216, %v2185
        %v2490 = vmul.f32 %v1327, %v2187
        %v2491 = vmul.f32 %v1329, %v2189
        %v2492 = vmul.f32 %v1440, %v2191
        %v2493 = vmul.f32 %v1442, %v2193
        %v2494 = vmul.f32 %v994, %v2195
        %v2495 = vmul.f32 %v996, %v2197
        %v2496 = vmul.f32 %v1107, %v2199
        %v2497 = vmul.f32 %v1109, %v2201
        %v2498 = vmul.f32 %v1220, %v2203
        %v2499 = vmul.f32 %v1222, %v2205
        %v2500 = vmul.f32 %v1333, %v2207
        %v2501 = vmul.f32 %v1335, %v2209
        %v2502 = vmul.f32 %v1446, %v2211
        %v2503 = vmul.f32 %v1448, %v2213
        %v2504 = vmul.f32 %v998, %v2215
        %v2505 = vmul.f32 %v1000, %v2217
        %v2506 = vmul.f32 %v1111, %v2219
        %v2507 = vmul.f32 %v1113, %v2221
        %v2508 = vmul.f32 %v1224, %v2223
        %v2509 = vmul.f32 %v1226, %v2225
        %v2510 = vmul.f32 %v1337, %v2227
        %v2511 = vmul.f32 %v1339, %v2229
        %v2512 = vmul.f32 %v1450, %v2231
        %v2513 = vmul.f32 %v1452, %v2233
        %v2514 = vmul.f32 %v1004, %v2235
        %v2515 = vmul.f32 %v1006, %v2237
        %v2516 = vmul.f32 %v1117, %v2239
        %v2517 = vmul.f32 %v1119, %v2241
        %v2518 = vmul.f32 %v1230, %v2243
        %v2519 = vmul.f32 %v1232, %v2245
        %v2520 = vmul.f32 %v1343, %v2247
        %v2521 = vmul.f32 %v1345, %v2249
        %v2522 = vmul.f32 %v1456, %v2251
        %v2523 = vmul.f32 %v1458, %v2253
        %v2524 = vmul.f32 %v1008, %v2255
        %v2525 = vmul.f32 %v1010, %v2257
        %v2526 = vmul.f32 %v1121, %v2259
        %v2527 = vmul.f32 %v1123, %v2261
        %v2528 = vmul.f32 %v1234, %v2263
        %v2529 = vmul.f32 %v1236, %v2265
        %v2530 = vmul.f32 %v1347, %v2267
        %v2531 = vmul.f32 %v1349, %v2269
        %v2532 = vmul.f32 %v1460, %v2271
        %v2533 = vmul.f32 %v1462, %v2273
        %v2534 = vmul.f32 %v1014, %v2275
        %v2535 = vmul.f32 %v1016, %v2277
        %v2536 = vmul.f32 %v1127, %v2279
        %v2537 = vmul.f32 %v1129, %v2281
        %v2538 = vmul.f32 %v1240, %v2283
        %v2539 = vmul.f32 %v1242, %v2285
        %v2540 = vmul.f32 %v1353, %v2287
        %v2541 = vmul.f32 %v1355, %v2289
        %v2542 = vmul.f32 %v1466, %v2291
        %v2543 = vmul.f32 %v1468, %v2293
        %v2544 = vmul.f32 %v1018, %v2295
        %v2545 = vmul.f32 %v1020, %v2297
        %v2546 = vmul.f32 %v1131, %v2299
        %v2547 = vmul.f32 %v1133, %v2301
        %v2548 = vmul.f32 %v1244, %v2303
        %v2549 = vmul.f32 %v1246, %v2305
        %v2550 = vmul.f32 %v1357, %v2307
        %v2551 = vmul.f32 %v1359, %v2309
        %v2552 = vmul.f32 %v1470, %v2311
        %v2553 = vmul.f32 %v1472, %v2313
        %v2554 = vmul.f32 %v1024, %v2315
        %v2555 = vmul.f32 %v1026, %v2317
        %v2556 = vmul.f32 %v1137, %v2319
        %v2557 = vmul.f32 %v1139, %v2321
        %v2558 = vmul.f32 %v1250, %v2323
        %v2559 = vmul.f32 %v1252, %v2325
        %v2560 = vmul.f32 %v1363, %v2327
        %v2561 = vmul.f32 %v1365, %v2329
        %v2562 = vmul.f32 %v1476, %v2331
        %v2563 = vmul.f32 %v1478, %v2333
        %v2564 = vmul.f32 %v1028, %v2335
        %v2565 = vmul.f32 %v1030, %v2337
        %v2566 = vmul.f32 %v1141, %v2339
        %v2567 = vmul.f32 %v1143, %v2341
        %v2568 = vmul.f32 %v1254, %v2343
        %v2569 = vmul.f32 %v1256, %v2345
        %v2570 = vmul.f32 %v1367, %v2347
        %v2571 = vmul.f32 %v1369, %v2349
        %v2572 = vmul.f32 %v1480, %v2351
        %v2573 = vmul.f32 %v1482, %v2353
        %v2574 = vmul.f32 %v1034, %v2355
        %v2575 = vmul.f32 %v1036, %v2357
        %v2576 = vmul.f32 %v1147, %v2359
        %v2577 = vmul.f32 %v1149, %v2361
        %v2578 = vmul.f32 %v1260, %v2363
        %v2579 = vmul.f32 %v1262, %v2365
        %v2580 = vmul.f32 %v1373, %v2367
        %v2581 = vmul.f32 %v1375, %v2369
        %v2582 = vmul.f32 %v1486, %v2371
        %v2583 = vmul.f32 %v1488, %v2373
        %v2584 = vmul.f32 %v1038, %v2375
        %v2585 = vmul.f32 %v1040, %v2377
        %v2586 = vmul.f32 %v1151, %v2379
        %v2587 = vmul.f32 %v1153, %v2381
        %v2588 = vmul.f32 %v1264, %v2383
        %v2589 = vmul.f32 %v1266, %v2385
        %v2590 = vmul.f32 %v1377, %v2387
        %v2591 = vmul.f32 %v1379, %v2389
        %v2592 = vmul.f32 %v1490, %v2391
        %v2593 = vmul.f32 %v1492, %v2393
        %v2594 = vmul.f32 %v1044, %v2395
        %v2595 = vmul.f32 %v1046, %v2397
        %v2596 = vmul.f32 %v1157, %v2399
        %v2597 = vmul.f32 %v1159, %v2401
        %v2598 = vmul.f32 %v1270, %v2403
        %v2599 = vmul.f32 %v1272, %v2405
        %v2600 = vmul.f32 %v1383, %v2407
        %v2601 = vmul.f32 %v1385, %v2409
        %v2602 = vmul.f32 %v1496, %v2411
        %v2603 = vmul.f32 %v1498, %v2413
        %v2604 = vmul.f32 %v1048, %v2415
        %v2605 = vmul.f32 %v1050, %v2417
        %v2606 = vmul.f32 %v1161, %v2419
        %v2607 = vmul.f32 %v1163, %v2421
        %v2608 = vmul.f32 %v1274, %v2423
        %v2609 = vmul.f32 %v1276, %v2425
        %v2610 = vmul.f32 %v1387, %v2427
        %v2611 = vmul.f32 %v1389, %v2429
        %v2612 = vmul.f32 %v1500, %v2431
        %v2613 = vmul.f32 %v1502, %v2433
        %v2614 = vmul.f32 %v1054, %v2435
        %v2615 = vmul.f32 %v1056, %v2437
        %v2616 = vmul.f32 %v1167, %v2439
        %v2617 = vmul.f32 %v1169, %v2441
        %v2618 = vmul.f32 %v1280, %v2443
        %v2619 = vmul.f32 %v1282, %v2445
        %v2620 = vmul.f32 %v1393, %v2447
        %v2621 = vmul.f32 %v1395, %v2449
        %v2622 = vmul.f32 %v1506, %v2451
        %v2623 = vmul.f32 %v1508, %v2453
        %v2624 = vmul.f32 %v1058, %v2455
        %v2625 = vmul.f32 %v1060, %v2457
        %v2626 = vmul.f32 %v1171, %v2459
        %v2627 = vmul.f32 %v1173, %v2461
        %v2628 = vmul.f32 %v1284, %v2463
        %v2629 = vmul.f32 %v1286, %v2465
        %v2630 = vmul.f32 %v1397, %v2467
        %v2631 = vmul.f32 %v1399, %v2469
        %v2632 = vmul.f32 %v1510, %v2471
        %v2633 = vmul.f32 %v1512, %v2473
        %v2634 = vld [vmem:[#allocation2] sm:$0xff]
        %v2635 = vld [vmem:[#allocation2 + $0x8] sm:$0x3]
        %v2636 = vadd.f32 %v2474, %v2484
        %v2637 = vadd.f32 %v2636, %v2494
        %v2638 = vadd.f32 %v2637, %v2504
        %v2639 = vadd.f32 %v2638, %v2514
        %v2640 = vadd.f32 %v2639, %v2524
        %v2641 = vadd.f32 %v2640, %v2534
        %v2642 = vadd.f32 %v2641, %v2544
        %v2643 = vadd.f32 %v2642, %v2554
        %v2644 = vadd.f32 %v2643, %v2564
        %v2645 = vadd.f32 %v2644, %v2574
        %v2646 = vadd.f32 %v2645, %v2584
        %v2647 = vadd.f32 %v2646, %v2594
        %v2648 = vadd.f32 %v2647, %v2604
        %v2649 = vadd.f32 %v2648, %v2614
        %v2650 = vadd.f32 %v2649, %v2624
        %v2651 = vrot.slane %v2650, 4
        %v2652 = vadd.f32 %v2650, %v2651
        %v2653 = vrot.slane %v2652, 2
        %v2654 = vadd.f32 %v2652, %v2653
        %v2655 = vrot.slane %v2654, 1
        %v2656 = vadd.f32 %v2654, %v2655
        %v2657 = vadd.f32 %v2475, %v2485
        %v2658 = vadd.f32 %v2657, %v2495
        %v2659 = vadd.f32 %v2658, %v2505
        %v2660 = vadd.f32 %v2659, %v2515
        %v2661 = vadd.f32 %v2660, %v2525
        %v2662 = vadd.f32 %v2661, %v2535
        %v2663 = vadd.f32 %v2662, %v2545
        %v2664 = vadd.f32 %v2663, %v2555
        %v2665 = vadd.f32 %v2664, %v2565
        %v2666 = vadd.f32 %v2665, %v2575
        %v2667 = vadd.f32 %v2666, %v2585
        %v2668 = vadd.f32 %v2667, %v2595
        %v2669 = vadd.f32 %v2668, %v2605
        %v2670 = vadd.f32 %v2669, %v2615
        %v2671 = vadd.f32 %v2670, %v2625
        %v2672 = vrot.slane %v2671, 4
        %v2673 = vadd.f32 %v2671, %v2672
        %v2674 = vrot.slane %v2673, 2
        %v2675 = vadd.f32 %v2673, %v2674
        %v2676 = vrot.slane %v2675, 1
        %v2677 = vadd.f32 %v2675, %v2676
        %v2678 = vadd.f32 %v2476, %v2486
        %v2679 = vadd.f32 %v2678, %v2496
        %v2680 = vadd.f32 %v2679, %v2506
        %v2681 = vadd.f32 %v2680, %v2516
        %v2682 = vadd.f32 %v2681, %v2526
        %v2683 = vadd.f32 %v2682, %v2536
        %v2684 = vadd.f32 %v2683, %v2546
        %v2685 = vadd.f32 %v2684, %v2556
        %v2686 = vadd.f32 %v2685, %v2566
        %v2687 = vadd.f32 %v2686, %v2576
        %v2688 = vadd.f32 %v2687, %v2586
        %v2689 = vadd.f32 %v2688, %v2596
        %v2690 = vadd.f32 %v2689, %v2606
        %v2691 = vadd.f32 %v2690, %v2616
        %v2692 = vadd.f32 %v2691, %v2626
        %v2693 = vrot.slane %v2692, 4
        %v2694 = vadd.f32 %v2692, %v2693
        %v2695 = vrot.slane %v2694, 2
        %v2696 = vadd.f32 %v2694, %v2695
        %v2697 = vrot.slane %v2696, 1
        %v2698 = vadd.f32 %v2696, %v2697
        %v2699 = vadd.f32 %v2477, %v2487
        %v2700 = vadd.f32 %v2699, %v2497
        %v2701 = vadd.f32 %v2700, %v2507
        %v2702 = vadd.f32 %v2701, %v2517
        %v2703 = vadd.f32 %v2702, %v2527
        %v2704 = vadd.f32 %v2703, %v2537
        %v2705 = vadd.f32 %v2704, %v2547
        %v2706 = vadd.f32 %v2705, %v2557
        %v2707 = vadd.f32 %v2706, %v2567
        %v2708 = vadd.f32 %v2707, %v2577
        %v2709 = vadd.f32 %v2708, %v2587
        %v2710 = vadd.f32 %v2709, %v2597
        %v2711 = vadd.f32 %v2710, %v2607
        %v2712 = vadd.f32 %v2711, %v2617
        %v2713 = vadd.f32 %v2712, %v2627
        %v2714 = vrot.slane %v2713, 4
        %v2715 = vadd.f32 %v2713, %v2714
        %v2716 = vrot.slane %v2715, 2
        %v2717 = vadd.f32 %v2715, %v2716
        %v2718 = vrot.slane %v2717, 1
        %v2719 = vadd.f32 %v2717, %v2718
        %v2720 = vadd.f32 %v2478, %v2488
        %v2721 = vadd.f32 %v2720, %v2498
        %v2722 = vadd.f32 %v2721, %v2508
        %v2723 = vadd.f32 %v2722, %v2518
        %v2724 = vadd.f32 %v2723, %v2528
        %v2725 = vadd.f32 %v2724, %v2538
        %v2726 = vadd.f32 %v2725, %v2548
        %v2727 = vadd.f32 %v2726, %v2558
        %v2728 = vadd.f32 %v2727, %v2568
        %v2729 = vadd.f32 %v2728, %v2578
        %v2730 = vadd.f32 %v2729, %v2588
        %v2731 = vadd.f32 %v2730, %v2598
        %v2732 = vadd.f32 %v2731, %v2608
        %v2733 = vadd.f32 %v2732, %v2618
        %v2734 = vadd.f32 %v2733, %v2628
        %v2735 = vrot.slane %v2734, 4
        %v2736 = vadd.f32 %v2734, %v2735
        %v2737 = vrot.slane %v2736, 2
        %v2738 = vadd.f32 %v2736, %v2737
        %v2739 = vrot.slane %v2738, 1
        %v2740 = vadd.f32 %v2738, %v2739
        %v2741 = vadd.f32 %v2479, %v2489
        %v2742 = vadd.f32 %v2741, %v2499
        %v2743 = vadd.f32 %v2742, %v2509
        %v2744 = vadd.f32 %v2743, %v2519
        %v2745 = vadd.f32 %v2744, %v2529
        %v2746 = vadd.f32 %v2745, %v2539
        %v2747 = vadd.f32 %v2746, %v2549
        %v2748 = vadd.f32 %v2747, %v2559
        %v2749 = vadd.f32 %v2748, %v2569
        %v2750 = vadd.f32 %v2749, %v2579
        %v2751 = vadd.f32 %v2750, %v2589
        %v2752 = vadd.f32 %v2751, %v2599
        %v2753 = vadd.f32 %v2752, %v2609
        %v2754 = vadd.f32 %v2753, %v2619
        %v2755 = vadd.f32 %v2754, %v2629
        %v2756 = vrot.slane %v2755, 4
        %v2757 = vadd.f32 %v2755, %v2756
        %v2758 = vrot.slane %v2757, 2
        %v2759 = vadd.f32 %v2757, %v2758
        %v2760 = vrot.slane %v2759, 1
        %v2761 = vadd.f32 %v2759, %v2760
        %v2762 = vadd.f32 %v2480, %v2490
        %v2763 = vadd.f32 %v2762, %v2500
        %v2764 = vadd.f32 %v2763, %v2510
        %v2765 = vadd.f32 %v2764, %v2520
        %v2766 = vadd.f32 %v2765, %v2530
        %v2767 = vadd.f32 %v2766, %v2540
        %v2768 = vadd.f32 %v2767, %v2550
        %v2769 = vadd.f32 %v2768, %v2560
        %v2770 = vadd.f32 %v2769, %v2570
        %v2771 = vadd.f32 %v2770, %v2580
        %v2772 = vadd.f32 %v2771, %v2590
        %v2773 = vadd.f32 %v2772, %v2600
        %v2774 = vadd.f32 %v2773, %v2610
        %v2775 = vadd.f32 %v2774, %v2620
        %v2776 = vadd.f32 %v2775, %v2630
        %v2777 = vrot.slane %v2776, 4
        %v2778 = vadd.f32 %v2776, %v2777
        %v2779 = vrot.slane %v2778, 2
        %v2780 = vadd.f32 %v2778, %v2779
        %v2781 = vrot.slane %v2780, 1
        %v2782 = vadd.f32 %v2780, %v2781
        %v2783 = vadd.f32 %v2481, %v2491
        %v2784 = vadd.f32 %v2783, %v2501
        %v2785 = vadd.f32 %v2784, %v2511
        %v2786 = vadd.f32 %v2785, %v2521
        %v2787 = vadd.f32 %v2786, %v2531
        %v2788 = vadd.f32 %v2787, %v2541
        %v2789 = vadd.f32 %v2788, %v2551
        %v2790 = vadd.f32 %v2789, %v2561
        %v2791 = vadd.f32 %v2790, %v2571
        %v2792 = vadd.f32 %v2791, %v2581
        %v2793 = vadd.f32 %v2792, %v2591
        %v2794 = vadd.f32 %v2793, %v2601
        %v2795 = vadd.f32 %v2794, %v2611
        %v2796 = vadd.f32 %v2795, %v2621
        %v2797 = vadd.f32 %v2796, %v2631
        %v2798 = vrot.slane %v2797, 4
        %v2799 = vadd.f32 %v2797, %v2798
        %v2800 = vrot.slane %v2799, 2
        %v2801 = vadd.f32 %v2799, %v2800
        %v2802 = vrot.slane %v2801, 1
        %v2803 = vadd.f32 %v2801, %v2802
        %v2804 = vadd.f32 %v2482, %v2492
        %v2805 = vadd.f32 %v2804, %v2502
        %v2806 = vadd.f32 %v2805, %v2512
        %v2807 = vadd.f32 %v2806, %v2522
        %v2808 = vadd.f32 %v2807, %v2532
        %v2809 = vadd.f32 %v2808, %v2542
        %v2810 = vadd.f32 %v2809, %v2552
        %v2811 = vadd.f32 %v2810, %v2562
        %v2812 = vadd.f32 %v2811, %v2572
        %v2813 = vadd.f32 %v2812, %v2582
        %v2814 = vadd.f32 %v2813, %v2592
        %v2815 = vadd.f32 %v2814, %v2602
        %v2816 = vadd.f32 %v2815, %v2612
        %v2817 = vadd.f32 %v2816, %v2622
        %v2818 = vadd.f32 %v2817, %v2632
        %v2819 = vrot.slane %v2818, 4
        %v2820 = vadd.f32 %v2818, %v2819
        %v2821 = vrot.slane %v2820, 2
        %v2822 = vadd.f32 %v2820, %v2821
        %v2823 = vrot.slane %v2822, 1
        %v2824 = vadd.f32 %v2822, %v2823
        %v2825 = vadd.f32 %v2483, %v2493
        %v2826 = vadd.f32 %v2825, %v2503
        %v2827 = vadd.f32 %v2826, %v2513
        %v2828 = vadd.f32 %v2827, %v2523
        %v2829 = vadd.f32 %v2828, %v2533
        %v2830 = vadd.f32 %v2829, %v2543
        %v2831 = vadd.f32 %v2830, %v2553
        %v2832 = vadd.f32 %v2831, %v2563
        %v2833 = vadd.f32 %v2832, %v2573
        %v2834 = vadd.f32 %v2833, %v2583
        %v2835 = vadd.f32 %v2834, %v2593
        %v2836 = vadd.f32 %v2835, %v2603
        %v2837 = vadd.f32 %v2836, %v2613
        %v2838 = vadd.f32 %v2837, %v2623
        %v2839 = vadd.f32 %v2838, %v2633
        %v2840 = vrot.slane %v2839, 4
        %v2841 = vadd.f32 %v2839, %v2840
        %v2842 = vrot.slane %v2841, 2
        %v2843 = vadd.f32 %v2841, %v2842
        %v2844 = vrot.slane %v2843, 1
        %v2845 = vadd.f32 %v2843, %v2844
        %v2856 = vcombine.low %v2656, %v2677
        %v2857 = vcombine.low %v2698, %v2719
        %v2858 = vcombine.low %v2740, %v2761
        %v2859 = vcombine.low %v2782, %v2803
        %v2861 = vunpack.c.l.s4 1966171168
        %v2862 = vunpack.c.0.s8 %v2861
        %v2863 = vlaneseq
        %v2864 = vshrl.u32 %v2863, 7
        %v2865 = vsub.s32 %v2862, %v2864
        %v2866 = vrot.slane %v2856, %v2865
        %v2868 = vunpack.c.l.s4 1966171168
        %v2869 = vunpack.c.0.s8 %v2868
        %v2870 = vlaneseq
        %v2871 = vshrl.u32 %v2870, 7
        %v2872 = vsub.s32 %v2869, %v2871
        %v2873 = vrot.slane %v2857, %v2872
        %v2875 = vunpack.c.l.s4 1966171168
        %v2876 = vunpack.c.0.s8 %v2875
        %v2877 = vlaneseq
        %v2878 = vshrl.u32 %v2877, 7
        %v2879 = vsub.s32 %v2876, %v2878
        %v2880 = vrot.slane %v2858, %v2879
        %v2882 = vunpack.c.l.s4 1966171168
        %v2883 = vunpack.c.0.s8 %v2882
        %v2884 = vlaneseq
        %v2885 = vshrl.u32 %v2884, 7
        %v2886 = vsub.s32 %v2883, %v2885
        %v2887 = vrot.slane %v2859, %v2886
        %v2888 = vcombine.low %v2866, %v2873
        %v2889 = vcombine.low %v2880, %v2887
        %v2891 = vunpack.c.l.s4 1966171168
        %v2892 = vunpack.c.0.s8 %v2891
        %v2893 = vlaneseq
        %v2894 = vshrl.u32 %v2893, 7
        %v2895 = vsub.s32 %v2892, %v2894
        %v2896 = vrot.slane %v2888, %v2895
        %v2898 = vunpack.c.l.s4 1966171168
        %v2899 = vunpack.c.0.s8 %v2898
        %v2900 = vlaneseq
        %v2901 = vshrl.u32 %v2900, 7
        %v2902 = vsub.s32 %v2899, %v2901
        %v2903 = vrot.slane %v2889, %v2902
        %v2904 = vcombine.low %v2896, %v2903
        %v2905 = vcombine.low %v2824, %v2845
        %v2907 = vunpack.c.l.s4 1966171168
        %v2908 = vunpack.c.0.s8 %v2907
        %v2909 = vlaneseq
        %v2910 = vshrl.u32 %v2909, 7
        %v2911 = vsub.s32 %v2908, %v2910
        %v2912 = vrot.slane %v2905, %v2911
        %v2914 = vunpack.c.l.s4 1966171168
        %v2915 = vunpack.c.0.s8 %v2914
        %v2916 = vlaneseq
        %v2917 = vshrl.u32 %v2916, 7
        %v2918 = vsub.s32 %v2915, %v2917
        %v2919 = vrot.slane %v2912, %v2918
        %v2922 = vadd.f32 %v2634, %v2904
        %v2923 = vadd.f32 %v2635, %v2919
        %2924 = vst [vmem:[#allocation2] sm:$0xff] %v2922
        %v2925 = vlaneseq
        %vm2926 = vcmp.ge.s32.totalorder %v2925, 0
        %vm2927 = vcmp.lt.s32.totalorder %v2925, 256
        %vm2928 = vmand %vm2926, %vm2927
        %2929 = vst.msk [vmem:[#allocation2 + $0x8] sm:$0x3] %vm2928, %v2923
        %p2930 = scmp.eq.s32.totalorder %s30, 1
        // Predicated region
        $region69: #{enhanced_fernet_forward.1} parent=63 // pred_check
          %p2931 = pneg %p2930
        $region70: #{enhanced_fernet_forward.1} parent=63 // pred_check_branch
          %2933 = sbr.rel (%p2931) target = $region72
        $region71: #{enhanced_fernet_forward.1} parent=63 // pred_region
          %v2934 = vld [vmem:[#allocation2] sm:$0xff]
          %v2935 = vld [vmem:[#allocation2 + $0x8] sm:$0x3]
          %v2936 = vmul.f32 %v2934, 0.00390625
          %v2937 = vmul.f32 %v2935, 0.00390625
          %v2940 = vlaneseq
          %v2941 = vshrl.u32 %v2940, 7
          %v2942 = vsub.s32 0, %v2941
          %v2943 = vrot.slane %v2936, %v2942
          %v2944 = vlaneseq
          %v2945 = vshrl.u32 %v2944, 7
          %v2946 = vsub.s32 1, %v2945
          %v2947 = vrot.slane %v2936, %v2946
          %v2948 = vlaneseq
          %v2949 = vshrl.u32 %v2948, 7
          %v2950 = vsub.s32 2, %v2949
          %v2951 = vrot.slane %v2936, %v2950
          %v2952 = vlaneseq
          %v2953 = vshrl.u32 %v2952, 7
          %v2954 = vsub.s32 3, %v2953
          %v2955 = vrot.slane %v2936, %v2954
          %v2956 = vlaneseq
          %v2957 = vshrl.u32 %v2956, 7
          %v2958 = vsub.s32 4, %v2957
          %v2959 = vrot.slane %v2936, %v2958
          %v2960 = vlaneseq
          %v2961 = vshrl.u32 %v2960, 7
          %v2962 = vsub.s32 5, %v2961
          %v2963 = vrot.slane %v2936, %v2962
          %v2964 = vlaneseq
          %v2965 = vshrl.u32 %v2964, 7
          %v2966 = vsub.s32 6, %v2965
          %v2967 = vrot.slane %v2936, %v2966
          %v2968 = vlaneseq
          %v2969 = vshrl.u32 %v2968, 7
          %v2970 = vsub.s32 7, %v2969
          %v2971 = vrot.slane %v2936, %v2970
          %v2972 = vlaneseq
          %v2973 = vshrl.u32 %v2972, 7
          %v2974 = vsub.s32 0, %v2973
          %v2975 = vrot.slane %v2937, %v2974
          %v2976 = vlaneseq
          %v2977 = vshrl.u32 %v2976, 7
          %v2978 = vsub.s32 1, %v2977
          %v2979 = vrot.slane %v2937, %v2978
          %v2990 = vpack.c.bf16 %v2943, %v2943
          %v2991 = vpack.c.bf16 %v2947, %v2947
          %v2992 = vpack.c.bf16 %v2951, %v2951
          %v2993 = vpack.c.bf16 %v2955, %v2955
          %v2994 = vpack.c.bf16 %v2959, %v2959
          %v2995 = vpack.c.bf16 %v2963, %v2963
          %v2996 = vpack.c.bf16 %v2967, %v2967
          %v2997 = vpack.c.bf16 %v2971, %v2971
          %v2998 = vpack.c.bf16 %v2975, %v2975
          %v2999 = vpack.c.bf16 %v2979, %v2979
          %v3000 = vld [vmem:[%s5] sm:$0xff]
          %v3001 = vld [vmem:[%s5 + $0x8] sm:$0xff]
          %v3002 = vld [vmem:[%s5 + $0x10] sm:$0xff]
          %v3003 = vld [vmem:[%s5 + $0x18] sm:$0xff]
          %v3004 = vld [vmem:[%s5 + $0x20] sm:$0xff]
          %v3005 = vld [vmem:[%s5 + $0x28] sm:$0xff]
          %v3006 = vld [vmem:[%s5 + $0x30] sm:$0xff]
          %v3007 = vld [vmem:[%s5 + $0x38] sm:$0xff]
          %v3008 = vld [vmem:[%s5 + $0x40] sm:$0xff]
          %v3009 = vld [vmem:[%s5 + $0x48] sm:$0xff]
          %v3010 = vld [vmem:[%s5 + $0x50] sm:$0xff]
          %v3011 = vld [vmem:[%s5 + $0x58] sm:$0xff]
          %v3012 = vld [vmem:[%s5 + $0x60] sm:$0xff]
          %v3013 = vld [vmem:[%s5 + $0x68] sm:$0xff]
          %v3014 = vld [vmem:[%s5 + $0x70] sm:$0xff]
          %v3015 = vld [vmem:[%s5 + $0x78] sm:$0xff]
          %v3016 = vld [vmem:[%s5 + $0x80] sm:$0xff]
          %v3017 = vld [vmem:[%s5 + $0x88] sm:$0xff]
          %v3018 = vld [vmem:[%s5 + $0x90] sm:$0xff]
          %v3019 = vld [vmem:[%s5 + $0x98] sm:$0xff]
          %v3020 = vld [vmem:[%s5 + $0xa0] sm:$0xff]
          %v3021 = vld [vmem:[%s5 + $0xa8] sm:$0xff]
          %v3022 = vld [vmem:[%s5 + $0xb0] sm:$0xff]
          %v3023 = vld [vmem:[%s5 + $0xb8] sm:$0xff]
          %v3024 = vld [vmem:[%s5 + $0xc0] sm:$0xff]
          %v3025 = vld [vmem:[%s5 + $0xc8] sm:$0xff]
          %v3026 = vld [vmem:[%s5 + $0xd0] sm:$0xff]
          %v3027 = vld [vmem:[%s5 + $0xd8] sm:$0xff]
          %v3028 = vld [vmem:[%s5 + $0xe0] sm:$0xff]
          %v3029 = vld [vmem:[%s5 + $0xe8] sm:$0xff]
          %v3030 = vld [vmem:[%s5 + $0xf0] sm:$0xff]
          %v3031 = vld [vmem:[%s5 + $0xf8] sm:$0xff]
          %v3032 = vld [vmem:[%s5 + $0x100] sm:$0xff]
          %v3033 = vld [vmem:[%s5 + $0x108] sm:$0xff]
          %v3034 = vld [vmem:[%s5 + $0x110] sm:$0xff]
          %v3035 = vld [vmem:[%s5 + $0x118] sm:$0xff]
          %v3036 = vld [vmem:[%s5 + $0x120] sm:$0xff]
          %v3037 = vld [vmem:[%s5 + $0x128] sm:$0xff]
          %v3038 = vld [vmem:[%s5 + $0x130] sm:$0xff]
          %v3039 = vld [vmem:[%s5 + $0x138] sm:$0xff]
          %v3040 = vld [vmem:[%s5 + $0x140] sm:$0xff]
          %v3041 = vld [vmem:[%s5 + $0x148] sm:$0xff]
          %v3042 = vld [vmem:[%s5 + $0x150] sm:$0xff]
          %v3043 = vld [vmem:[%s5 + $0x158] sm:$0xff]
          %v3044 = vld [vmem:[%s5 + $0x160] sm:$0xff]
          %v3045 = vld [vmem:[%s5 + $0x168] sm:$0xff]
          %v3046 = vld [vmem:[%s5 + $0x170] sm:$0xff]
          %v3047 = vld [vmem:[%s5 + $0x178] sm:$0xff]
          %v3048 = vld [vmem:[%s5 + $0x180] sm:$0xff]
          %v3049 = vld [vmem:[%s5 + $0x188] sm:$0xff]
          %v3050 = vld [vmem:[%s5 + $0x190] sm:$0xff]
          %v3051 = vld [vmem:[%s5 + $0x198] sm:$0xff]
          %v3052 = vld [vmem:[%s5 + $0x1a0] sm:$0xff]
          %v3053 = vld [vmem:[%s5 + $0x1a8] sm:$0xff]
          %v3054 = vld [vmem:[%s5 + $0x1b0] sm:$0xff]
          %v3055 = vld [vmem:[%s5 + $0x1b8] sm:$0xff]
          %v3056 = vld [vmem:[%s5 + $0x1c0] sm:$0xff]
          %v3057 = vld [vmem:[%s5 + $0x1c8] sm:$0xff]
          %v3058 = vld [vmem:[%s5 + $0x1d0] sm:$0xff]
          %v3059 = vld [vmem:[%s5 + $0x1d8] sm:$0xff]
          %v3060 = vld [vmem:[%s5 + $0x1e0] sm:$0xff]
          %v3061 = vld [vmem:[%s5 + $0x1e8] sm:$0xff]
          %v3062 = vld [vmem:[%s5 + $0x1f0] sm:$0xff]
          %v3063 = vld [vmem:[%s5 + $0x1f8] sm:$0xff]
          %v3064 = vld [vmem:[%s5 + $0x200] sm:$0xff]
          %v3065 = vld [vmem:[%s5 + $0x208] sm:$0xff]
          %v3066 = vld [vmem:[%s5 + $0x210] sm:$0xff]
          %v3067 = vld [vmem:[%s5 + $0x218] sm:$0xff]
          %v3068 = vld [vmem:[%s5 + $0x220] sm:$0xff]
          %v3069 = vld [vmem:[%s5 + $0x228] sm:$0xff]
          %v3070 = vld [vmem:[%s5 + $0x230] sm:$0xff]
          %v3071 = vld [vmem:[%s5 + $0x238] sm:$0xff]
          %v3072 = vld [vmem:[%s5 + $0x240] sm:$0xff]
          %v3073 = vld [vmem:[%s5 + $0x248] sm:$0xff]
          %v3074 = vld [vmem:[%s5 + $0x250] sm:$0xff]
          %v3075 = vld [vmem:[%s5 + $0x258] sm:$0xff]
          %v3076 = vld [vmem:[%s5 + $0x260] sm:$0xff]
          %v3077 = vld [vmem:[%s5 + $0x268] sm:$0xff]
          %v3078 = vld [vmem:[%s5 + $0x270] sm:$0xff]
          %v3079 = vld [vmem:[%s5 + $0x278] sm:$0xff]
          %v3080 = vld [vmem:[%s5 + $0x280] sm:$0xff]
          %v3081 = vld [vmem:[%s5 + $0x288] sm:$0xff]
          %v3082 = vld [vmem:[%s5 + $0x290] sm:$0xff]
          %v3083 = vld [vmem:[%s5 + $0x298] sm:$0xff]
          %v3084 = vld [vmem:[%s5 + $0x2a0] sm:$0xff]
          %v3085 = vld [vmem:[%s5 + $0x2a8] sm:$0xff]
          %v3086 = vld [vmem:[%s5 + $0x2b0] sm:$0xff]
          %v3087 = vld [vmem:[%s5 + $0x2b8] sm:$0xff]
          %v3088 = vld [vmem:[%s5 + $0x2c0] sm:$0xff]
          %v3089 = vld [vmem:[%s5 + $0x2c8] sm:$0xff]
          %v3090 = vld [vmem:[%s5 + $0x2d0] sm:$0xff]
          %v3091 = vld [vmem:[%s5 + $0x2d8] sm:$0xff]
          %v3092 = vld [vmem:[%s5 + $0x2e0] sm:$0xff]
          %v3093 = vld [vmem:[%s5 + $0x2e8] sm:$0xff]
          %v3094 = vld [vmem:[%s5 + $0x2f0] sm:$0xff]
          %v3095 = vld [vmem:[%s5 + $0x2f8] sm:$0xff]
          %v3096 = vld [vmem:[%s5 + $0x300] sm:$0xff]
          %v3097 = vld [vmem:[%s5 + $0x308] sm:$0xff]
          %v3098 = vld [vmem:[%s5 + $0x310] sm:$0xff]
          %v3099 = vld [vmem:[%s5 + $0x318] sm:$0xff]
          %v3100 = vld [vmem:[%s5 + $0x320] sm:$0xff]
          %v3101 = vld [vmem:[%s5 + $0x328] sm:$0xff]
          %v3102 = vld [vmem:[%s5 + $0x330] sm:$0xff]
          %v3103 = vld [vmem:[%s5 + $0x338] sm:$0xff]
          %v3104 = vld [vmem:[%s5 + $0x340] sm:$0xff]
          %v3105 = vld [vmem:[%s5 + $0x348] sm:$0xff]
          %v3106 = vld [vmem:[%s5 + $0x350] sm:$0xff]
          %v3107 = vld [vmem:[%s5 + $0x358] sm:$0xff]
          %v3108 = vld [vmem:[%s5 + $0x360] sm:$0xff]
          %v3109 = vld [vmem:[%s5 + $0x368] sm:$0xff]
          %v3110 = vld [vmem:[%s5 + $0x370] sm:$0xff]
          %v3111 = vld [vmem:[%s5 + $0x378] sm:$0xff]
          %v3112 = vld [vmem:[%s5 + $0x380] sm:$0xff]
          %v3113 = vld [vmem:[%s5 + $0x388] sm:$0xff]
          %v3114 = vld [vmem:[%s5 + $0x390] sm:$0xff]
          %v3115 = vld [vmem:[%s5 + $0x398] sm:$0xff]
          %v3116 = vld [vmem:[%s5 + $0x3a0] sm:$0xff]
          %v3117 = vld [vmem:[%s5 + $0x3a8] sm:$0xff]
          %v3118 = vld [vmem:[%s5 + $0x3b0] sm:$0xff]
          %v3119 = vld [vmem:[%s5 + $0x3b8] sm:$0xff]
          %v3120 = vld [vmem:[%s5 + $0x3c0] sm:$0xff]
          %v3121 = vld [vmem:[%s5 + $0x3c8] sm:$0xff]
          %v3122 = vld [vmem:[%s5 + $0x3d0] sm:$0xff]
          %v3123 = vld [vmem:[%s5 + $0x3d8] sm:$0xff]
          %v3124 = vld [vmem:[%s5 + $0x3e0] sm:$0xff]
          %v3125 = vld [vmem:[%s5 + $0x3e8] sm:$0xff]
          %v3126 = vld [vmem:[%s5 + $0x3f0] sm:$0xff]
          %v3127 = vld [vmem:[%s5 + $0x3f8] sm:$0xff]
          %v3128 = vld [vmem:[%s5 + $0x400] sm:$0xff]
          %v3129 = vld [vmem:[%s5 + $0x408] sm:$0xff]
          %v3130 = vld [vmem:[%s5 + $0x410] sm:$0xff]
          %v3131 = vld [vmem:[%s5 + $0x418] sm:$0xff]
          %v3132 = vld [vmem:[%s5 + $0x420] sm:$0xff]
          %v3133 = vld [vmem:[%s5 + $0x428] sm:$0xff]
          %v3134 = vld [vmem:[%s5 + $0x430] sm:$0xff]
          %v3135 = vld [vmem:[%s5 + $0x438] sm:$0xff]
          %v3136 = vld [vmem:[%s5 + $0x440] sm:$0xff]
          %v3137 = vld [vmem:[%s5 + $0x448] sm:$0xff]
          %v3138 = vld [vmem:[%s5 + $0x450] sm:$0xff]
          %v3139 = vld [vmem:[%s5 + $0x458] sm:$0xff]
          %v3140 = vld [vmem:[%s5 + $0x460] sm:$0xff]
          %v3141 = vld [vmem:[%s5 + $0x468] sm:$0xff]
          %v3142 = vld [vmem:[%s5 + $0x470] sm:$0xff]
          %v3143 = vld [vmem:[%s5 + $0x478] sm:$0xff]
          %v3144 = vld [vmem:[%s5 + $0x480] sm:$0xff]
          %v3145 = vld [vmem:[%s5 + $0x488] sm:$0xff]
          %v3146 = vld [vmem:[%s5 + $0x490] sm:$0xff]
          %v3147 = vld [vmem:[%s5 + $0x498] sm:$0xff]
          %v3148 = vld [vmem:[%s5 + $0x4a0] sm:$0xff]
          %v3149 = vld [vmem:[%s5 + $0x4a8] sm:$0xff]
          %v3150 = vld [vmem:[%s5 + $0x4b0] sm:$0xff]
          %v3151 = vld [vmem:[%s5 + $0x4b8] sm:$0xff]
          %v3152 = vld [vmem:[%s5 + $0x4c0] sm:$0xff]
          %v3153 = vld [vmem:[%s5 + $0x4c8] sm:$0xff]
          %v3154 = vld [vmem:[%s5 + $0x4d0] sm:$0xff]
          %v3155 = vld [vmem:[%s5 + $0x4d8] sm:$0xff]
          %v3156 = vld [vmem:[%s5 + $0x4e0] sm:$0xff]
          %v3157 = vld [vmem:[%s5 + $0x4e8] sm:$0xff]
          %v3158 = vld [vmem:[%s5 + $0x4f0] sm:$0xff]
          %v3159 = vld [vmem:[%s5 + $0x4f8] sm:$0xff]
          %v3160 = vld [vmem:[%s5 + $0x500] sm:$0xff]
          %v3161 = vld [vmem:[%s5 + $0x508] sm:$0xff]
          %v3162 = vld [vmem:[%s5 + $0x510] sm:$0xff]
          %v3163 = vld [vmem:[%s5 + $0x518] sm:$0xff]
          %v3164 = vld [vmem:[%s5 + $0x520] sm:$0xff]
          %v3165 = vld [vmem:[%s5 + $0x528] sm:$0xff]
          %v3166 = vld [vmem:[%s5 + $0x530] sm:$0xff]
          %v3167 = vld [vmem:[%s5 + $0x538] sm:$0xff]
          %v3168 = vld [vmem:[%s5 + $0x540] sm:$0xff]
          %v3169 = vld [vmem:[%s5 + $0x548] sm:$0xff]
          %v3170 = vld [vmem:[%s5 + $0x550] sm:$0xff]
          %v3171 = vld [vmem:[%s5 + $0x558] sm:$0xff]
          %v3172 = vld [vmem:[%s5 + $0x560] sm:$0xff]
          %v3173 = vld [vmem:[%s5 + $0x568] sm:$0xff]
          %v3174 = vld [vmem:[%s5 + $0x570] sm:$0xff]
          %v3175 = vld [vmem:[%s5 + $0x578] sm:$0xff]
          %v3176 = vld [vmem:[%s5 + $0x580] sm:$0xff]
          %v3177 = vld [vmem:[%s5 + $0x588] sm:$0xff]
          %v3178 = vld [vmem:[%s5 + $0x590] sm:$0xff]
          %v3179 = vld [vmem:[%s5 + $0x598] sm:$0xff]
          %v3180 = vld [vmem:[%s5 + $0x5a0] sm:$0xff]
          %v3181 = vld [vmem:[%s5 + $0x5a8] sm:$0xff]
          %v3182 = vld [vmem:[%s5 + $0x5b0] sm:$0xff]
          %v3183 = vld [vmem:[%s5 + $0x5b8] sm:$0xff]
          %v3184 = vld [vmem:[%s5 + $0x5c0] sm:$0xff]
          %v3185 = vld [vmem:[%s5 + $0x5c8] sm:$0xff]
          %v3186 = vld [vmem:[%s5 + $0x5d0] sm:$0xff]
          %v3187 = vld [vmem:[%s5 + $0x5d8] sm:$0xff]
          %v3188 = vld [vmem:[%s5 + $0x5e0] sm:$0xff]
          %v3189 = vld [vmem:[%s5 + $0x5e8] sm:$0xff]
          %v3190 = vld [vmem:[%s5 + $0x5f0] sm:$0xff]
          %v3191 = vld [vmem:[%s5 + $0x5f8] sm:$0xff]
          %v3192 = vld [vmem:[%s5 + $0x600] sm:$0xff]
          %v3193 = vld [vmem:[%s5 + $0x608] sm:$0xff]
          %v3194 = vld [vmem:[%s5 + $0x610] sm:$0xff]
          %v3195 = vld [vmem:[%s5 + $0x618] sm:$0xff]
          %v3196 = vld [vmem:[%s5 + $0x620] sm:$0xff]
          %v3197 = vld [vmem:[%s5 + $0x628] sm:$0xff]
          %v3198 = vld [vmem:[%s5 + $0x630] sm:$0xff]
          %v3199 = vld [vmem:[%s5 + $0x638] sm:$0xff]
          %v3200 = vld [vmem:[%s5 + $0x640] sm:$0xff]
          %v3201 = vld [vmem:[%s5 + $0x648] sm:$0xff]
          %v3202 = vld [vmem:[%s5 + $0x650] sm:$0xff]
          %v3203 = vld [vmem:[%s5 + $0x658] sm:$0xff]
          %v3204 = vld [vmem:[%s5 + $0x660] sm:$0xff]
          %v3205 = vld [vmem:[%s5 + $0x668] sm:$0xff]
          %v3206 = vld [vmem:[%s5 + $0x670] sm:$0xff]
          %v3207 = vld [vmem:[%s5 + $0x678] sm:$0xff]
          %v3208 = vld [vmem:[%s5 + $0x680] sm:$0xff]
          %v3209 = vld [vmem:[%s5 + $0x688] sm:$0xff]
          %v3210 = vld [vmem:[%s5 + $0x690] sm:$0xff]
          %v3211 = vld [vmem:[%s5 + $0x698] sm:$0xff]
          %v3212 = vld [vmem:[%s5 + $0x6a0] sm:$0xff]
          %v3213 = vld [vmem:[%s5 + $0x6a8] sm:$0xff]
          %v3214 = vld [vmem:[%s5 + $0x6b0] sm:$0xff]
          %v3215 = vld [vmem:[%s5 + $0x6b8] sm:$0xff]
          %v3216 = vld [vmem:[%s5 + $0x6c0] sm:$0xff]
          %v3217 = vld [vmem:[%s5 + $0x6c8] sm:$0xff]
          %v3218 = vld [vmem:[%s5 + $0x6d0] sm:$0xff]
          %v3219 = vld [vmem:[%s5 + $0x6d8] sm:$0xff]
          %v3220 = vld [vmem:[%s5 + $0x6e0] sm:$0xff]
          %v3221 = vld [vmem:[%s5 + $0x6e8] sm:$0xff]
          %v3222 = vld [vmem:[%s5 + $0x6f0] sm:$0xff]
          %v3223 = vld [vmem:[%s5 + $0x6f8] sm:$0xff]
          %v3224 = vld [vmem:[%s5 + $0x700] sm:$0xff]
          %v3225 = vld [vmem:[%s5 + $0x708] sm:$0xff]
          %v3226 = vld [vmem:[%s5 + $0x710] sm:$0xff]
          %v3227 = vld [vmem:[%s5 + $0x718] sm:$0xff]
          %v3228 = vld [vmem:[%s5 + $0x720] sm:$0xff]
          %v3229 = vld [vmem:[%s5 + $0x728] sm:$0xff]
          %v3230 = vld [vmem:[%s5 + $0x730] sm:$0xff]
          %v3231 = vld [vmem:[%s5 + $0x738] sm:$0xff]
          %v3232 = vld [vmem:[%s5 + $0x740] sm:$0xff]
          %v3233 = vld [vmem:[%s5 + $0x748] sm:$0xff]
          %v3234 = vld [vmem:[%s5 + $0x750] sm:$0xff]
          %v3235 = vld [vmem:[%s5 + $0x758] sm:$0xff]
          %v3236 = vld [vmem:[%s5 + $0x760] sm:$0xff]
          %v3237 = vld [vmem:[%s5 + $0x768] sm:$0xff]
          %v3238 = vld [vmem:[%s5 + $0x770] sm:$0xff]
          %v3239 = vld [vmem:[%s5 + $0x778] sm:$0xff]
          %v3240 = vld [vmem:[%s5 + $0x780] sm:$0xff]
          %v3241 = vld [vmem:[%s5 + $0x788] sm:$0xff]
          %v3242 = vld [vmem:[%s5 + $0x790] sm:$0xff]
          %v3243 = vld [vmem:[%s5 + $0x798] sm:$0xff]
          %v3244 = vld [vmem:[%s5 + $0x7a0] sm:$0xff]
          %v3245 = vld [vmem:[%s5 + $0x7a8] sm:$0xff]
          %v3246 = vld [vmem:[%s5 + $0x7b0] sm:$0xff]
          %v3247 = vld [vmem:[%s5 + $0x7b8] sm:$0xff]
          %v3248 = vld [vmem:[%s5 + $0x7c0] sm:$0xff]
          %v3249 = vld [vmem:[%s5 + $0x7c8] sm:$0xff]
          %v3250 = vld [vmem:[%s5 + $0x7d0] sm:$0xff]
          %v3251 = vld [vmem:[%s5 + $0x7d8] sm:$0xff]
          %v3252 = vld [vmem:[%s5 + $0x7e0] sm:$0xff]
          %v3253 = vld [vmem:[%s5 + $0x7e8] sm:$0xff]
          %v3254 = vld [vmem:[%s5 + $0x7f0] sm:$0xff]
          %v3255 = vld [vmem:[%s5 + $0x7f8] sm:$0xff]
          %v3256 = vld [vmem:[%s5 + $0x800] sm:$0xff]
          %v3257 = vld [vmem:[%s5 + $0x808] sm:$0xff]
          %v3258 = vld [vmem:[%s5 + $0x810] sm:$0xff]
          %v3259 = vld [vmem:[%s5 + $0x818] sm:$0xff]
          %v3260 = vld [vmem:[%s5 + $0x820] sm:$0xff]
          %v3261 = vld [vmem:[%s5 + $0x828] sm:$0xff]
          %v3262 = vld [vmem:[%s5 + $0x830] sm:$0xff]
          %v3263 = vld [vmem:[%s5 + $0x838] sm:$0xff]
          %v3264 = vld [vmem:[%s5 + $0x840] sm:$0xff]
          %v3265 = vld [vmem:[%s5 + $0x848] sm:$0xff]
          %v3266 = vld [vmem:[%s5 + $0x850] sm:$0xff]
          %v3267 = vld [vmem:[%s5 + $0x858] sm:$0xff]
          %v3268 = vld [vmem:[%s5 + $0x860] sm:$0xff]
          %v3269 = vld [vmem:[%s5 + $0x868] sm:$0xff]
          %v3270 = vld [vmem:[%s5 + $0x870] sm:$0xff]
          %v3271 = vld [vmem:[%s5 + $0x878] sm:$0xff]
          %v3272 = vld [vmem:[%s5 + $0x880] sm:$0xff]
          %v3273 = vld [vmem:[%s5 + $0x888] sm:$0xff]
          %v3274 = vld [vmem:[%s5 + $0x890] sm:$0xff]
          %v3275 = vld [vmem:[%s5 + $0x898] sm:$0xff]
          %v3276 = vld [vmem:[%s5 + $0x8a0] sm:$0xff]
          %v3277 = vld [vmem:[%s5 + $0x8a8] sm:$0xff]
          %v3278 = vld [vmem:[%s5 + $0x8b0] sm:$0xff]
          %v3279 = vld [vmem:[%s5 + $0x8b8] sm:$0xff]
          %v3280 = vld [vmem:[%s5 + $0x8c0] sm:$0xff]
          %v3281 = vld [vmem:[%s5 + $0x8c8] sm:$0xff]
          %v3282 = vld [vmem:[%s5 + $0x8d0] sm:$0xff]
          %v3283 = vld [vmem:[%s5 + $0x8d8] sm:$0xff]
          %v3284 = vld [vmem:[%s5 + $0x8e0] sm:$0xff]
          %v3285 = vld [vmem:[%s5 + $0x8e8] sm:$0xff]
          %v3286 = vld [vmem:[%s5 + $0x8f0] sm:$0xff]
          %v3287 = vld [vmem:[%s5 + $0x8f8] sm:$0xff]
          %v3288 = vld [vmem:[%s5 + $0x900] sm:$0xff]
          %v3289 = vld [vmem:[%s5 + $0x908] sm:$0xff]
          %v3290 = vld [vmem:[%s5 + $0x910] sm:$0xff]
          %v3291 = vld [vmem:[%s5 + $0x918] sm:$0xff]
          %v3292 = vld [vmem:[%s5 + $0x920] sm:$0xff]
          %v3293 = vld [vmem:[%s5 + $0x928] sm:$0xff]
          %v3294 = vld [vmem:[%s5 + $0x930] sm:$0xff]
          %v3295 = vld [vmem:[%s5 + $0x938] sm:$0xff]
          %v3296 = vld [vmem:[%s5 + $0x940] sm:$0xff]
          %v3297 = vld [vmem:[%s5 + $0x948] sm:$0xff]
          %v3298 = vld [vmem:[%s5 + $0x950] sm:$0xff]
          %v3299 = vld [vmem:[%s5 + $0x958] sm:$0xff]
          %v3300 = vld [vmem:[%s5 + $0x960] sm:$0xff]
          %v3301 = vld [vmem:[%s5 + $0x968] sm:$0xff]
          %v3302 = vld [vmem:[%s5 + $0x970] sm:$0xff]
          %v3303 = vld [vmem:[%s5 + $0x978] sm:$0xff]
          %v3304 = vld [vmem:[%s5 + $0x980] sm:$0xff]
          %v3305 = vld [vmem:[%s5 + $0x988] sm:$0xff]
          %v3306 = vld [vmem:[%s5 + $0x990] sm:$0xff]
          %v3307 = vld [vmem:[%s5 + $0x998] sm:$0xff]
          %v3308 = vld [vmem:[%s5 + $0x9a0] sm:$0xff]
          %v3309 = vld [vmem:[%s5 + $0x9a8] sm:$0xff]
          %v3310 = vld [vmem:[%s5 + $0x9b0] sm:$0xff]
          %v3311 = vld [vmem:[%s5 + $0x9b8] sm:$0xff]
          %v3312 = vld [vmem:[%s5 + $0x9c0] sm:$0xff]
          %v3313 = vld [vmem:[%s5 + $0x9c8] sm:$0xff]
          %v3314 = vld [vmem:[%s5 + $0x9d0] sm:$0xff]
          %v3315 = vld [vmem:[%s5 + $0x9d8] sm:$0xff]
          %v3316 = vld [vmem:[%s5 + $0x9e0] sm:$0xff]
          %v3317 = vld [vmem:[%s5 + $0x9e8] sm:$0xff]
          %v3318 = vld [vmem:[%s5 + $0x9f0] sm:$0xff]
          %v3319 = vld [vmem:[%s5 + $0x9f8] sm:$0xff]
          %v3320 = vld [vmem:[%s6] sm:$0xf]
          %v3641 = vunpack.c.l.b16 %v3000
          %v3642 = vunpack.c.h.b16 %v3000
          %v3643 = vunpack.c.l.b16 %v3001
          %v3644 = vunpack.c.h.b16 %v3001
          %v3645 = vunpack.c.l.b16 %v3002
          %v3646 = vunpack.c.h.b16 %v3002
          %v3647 = vunpack.c.l.b16 %v3003
          %v3648 = vunpack.c.h.b16 %v3003
          %v3649 = vunpack.c.l.b16 %v3004
          %v3650 = vunpack.c.h.b16 %v3004
          %v3651 = vunpack.c.l.b16 %v3005
          %v3652 = vunpack.c.h.b16 %v3005
          %v3653 = vunpack.c.l.b16 %v3006
          %v3654 = vunpack.c.h.b16 %v3006
          %v3655 = vunpack.c.l.b16 %v3007
          %v3656 = vunpack.c.h.b16 %v3007
          %v3657 = vunpack.c.l.b16 %v3008
          %v3658 = vunpack.c.h.b16 %v3008
          %v3659 = vunpack.c.l.b16 %v3009
          %v3660 = vunpack.c.h.b16 %v3009
          %v3661 = vunpack.c.l.b16 %v3010
          %v3662 = vunpack.c.h.b16 %v3010
          %v3663 = vunpack.c.l.b16 %v3011
          %v3664 = vunpack.c.h.b16 %v3011
          %v3665 = vunpack.c.l.b16 %v3012
          %v3666 = vunpack.c.h.b16 %v3012
          %v3667 = vunpack.c.l.b16 %v3013
          %v3668 = vunpack.c.h.b16 %v3013
          %v3669 = vunpack.c.l.b16 %v3014
          %v3670 = vunpack.c.h.b16 %v3014
          %v3671 = vunpack.c.l.b16 %v3015
          %v3672 = vunpack.c.h.b16 %v3015
          %v3673 = vunpack.c.l.b16 %v3016
          %v3674 = vunpack.c.h.b16 %v3016
          %v3675 = vunpack.c.l.b16 %v3017
          %v3676 = vunpack.c.h.b16 %v3017
          %v3677 = vunpack.c.l.b16 %v3018
          %v3678 = vunpack.c.h.b16 %v3018
          %v3679 = vunpack.c.l.b16 %v3019
          %v3680 = vunpack.c.h.b16 %v3019
          %v3681 = vunpack.c.l.b16 %v3020
          %v3682 = vunpack.c.h.b16 %v3020
          %v3683 = vunpack.c.l.b16 %v3021
          %v3684 = vunpack.c.h.b16 %v3021
          %v3685 = vunpack.c.l.b16 %v3022
          %v3686 = vunpack.c.h.b16 %v3022
          %v3687 = vunpack.c.l.b16 %v3023
          %v3688 = vunpack.c.h.b16 %v3023
          %v3689 = vunpack.c.l.b16 %v3024
          %v3690 = vunpack.c.h.b16 %v3024
          %v3691 = vunpack.c.l.b16 %v3025
          %v3692 = vunpack.c.h.b16 %v3025
          %v3693 = vunpack.c.l.b16 %v3026
          %v3694 = vunpack.c.h.b16 %v3026
          %v3695 = vunpack.c.l.b16 %v3027
          %v3696 = vunpack.c.h.b16 %v3027
          %v3697 = vunpack.c.l.b16 %v3028
          %v3698 = vunpack.c.h.b16 %v3028
          %v3699 = vunpack.c.l.b16 %v3029
          %v3700 = vunpack.c.h.b16 %v3029
          %v3701 = vunpack.c.l.b16 %v3030
          %v3702 = vunpack.c.h.b16 %v3030
          %v3703 = vunpack.c.l.b16 %v3031
          %v3704 = vunpack.c.h.b16 %v3031
          %v3705 = vunpack.c.l.b16 %v3032
          %v3706 = vunpack.c.h.b16 %v3032
          %v3707 = vunpack.c.l.b16 %v3033
          %v3708 = vunpack.c.h.b16 %v3033
          %v3709 = vunpack.c.l.b16 %v3034
          %v3710 = vunpack.c.h.b16 %v3034
          %v3711 = vunpack.c.l.b16 %v3035
          %v3712 = vunpack.c.h.b16 %v3035
          %v3713 = vunpack.c.l.b16 %v3036
          %v3714 = vunpack.c.h.b16 %v3036
          %v3715 = vunpack.c.l.b16 %v3037
          %v3716 = vunpack.c.h.b16 %v3037
          %v3717 = vunpack.c.l.b16 %v3038
          %v3718 = vunpack.c.h.b16 %v3038
          %v3719 = vunpack.c.l.b16 %v3039
          %v3720 = vunpack.c.h.b16 %v3039
          %v3721 = vunpack.c.l.b16 %v3040
          %v3722 = vunpack.c.h.b16 %v3040
          %v3723 = vunpack.c.l.b16 %v3041
          %v3724 = vunpack.c.h.b16 %v3041
          %v3725 = vunpack.c.l.b16 %v3042
          %v3726 = vunpack.c.h.b16 %v3042
          %v3727 = vunpack.c.l.b16 %v3043
          %v3728 = vunpack.c.h.b16 %v3043
          %v3729 = vunpack.c.l.b16 %v3044
          %v3730 = vunpack.c.h.b16 %v3044
          %v3731 = vunpack.c.l.b16 %v3045
          %v3732 = vunpack.c.h.b16 %v3045
          %v3733 = vunpack.c.l.b16 %v3046
          %v3734 = vunpack.c.h.b16 %v3046
          %v3735 = vunpack.c.l.b16 %v3047
          %v3736 = vunpack.c.h.b16 %v3047
          %v3737 = vunpack.c.l.b16 %v3048
          %v3738 = vunpack.c.h.b16 %v3048
          %v3739 = vunpack.c.l.b16 %v3049
          %v3740 = vunpack.c.h.b16 %v3049
          %v3741 = vunpack.c.l.b16 %v3050
          %v3742 = vunpack.c.h.b16 %v3050
          %v3743 = vunpack.c.l.b16 %v3051
          %v3744 = vunpack.c.h.b16 %v3051
          %v3745 = vunpack.c.l.b16 %v3052
          %v3746 = vunpack.c.h.b16 %v3052
          %v3747 = vunpack.c.l.b16 %v3053
          %v3748 = vunpack.c.h.b16 %v3053
          %v3749 = vunpack.c.l.b16 %v3054
          %v3750 = vunpack.c.h.b16 %v3054
          %v3751 = vunpack.c.l.b16 %v3055
          %v3752 = vunpack.c.h.b16 %v3055
          %v3753 = vunpack.c.l.b16 %v3056
          %v3754 = vunpack.c.h.b16 %v3056
          %v3755 = vunpack.c.l.b16 %v3057
          %v3756 = vunpack.c.h.b16 %v3057
          %v3757 = vunpack.c.l.b16 %v3058
          %v3758 = vunpack.c.h.b16 %v3058
          %v3759 = vunpack.c.l.b16 %v3059
          %v3760 = vunpack.c.h.b16 %v3059
          %v3761 = vunpack.c.l.b16 %v3060
          %v3762 = vunpack.c.h.b16 %v3060
          %v3763 = vunpack.c.l.b16 %v3061
          %v3764 = vunpack.c.h.b16 %v3061
          %v3765 = vunpack.c.l.b16 %v3062
          %v3766 = vunpack.c.h.b16 %v3062
          %v3767 = vunpack.c.l.b16 %v3063
          %v3768 = vunpack.c.h.b16 %v3063
          %v3769 = vunpack.c.l.b16 %v3064
          %v3770 = vunpack.c.h.b16 %v3064
          %v3771 = vunpack.c.l.b16 %v3065
          %v3772 = vunpack.c.h.b16 %v3065
          %v3773 = vunpack.c.l.b16 %v3066
          %v3774 = vunpack.c.h.b16 %v3066
          %v3775 = vunpack.c.l.b16 %v3067
          %v3776 = vunpack.c.h.b16 %v3067
          %v3777 = vunpack.c.l.b16 %v3068
          %v3778 = vunpack.c.h.b16 %v3068
          %v3779 = vunpack.c.l.b16 %v3069
          %v3780 = vunpack.c.h.b16 %v3069
          %v3781 = vunpack.c.l.b16 %v3070
          %v3782 = vunpack.c.h.b16 %v3070
          %v3783 = vunpack.c.l.b16 %v3071
          %v3784 = vunpack.c.h.b16 %v3071
          %v3785 = vunpack.c.l.b16 %v3072
          %v3786 = vunpack.c.h.b16 %v3072
          %v3787 = vunpack.c.l.b16 %v3073
          %v3788 = vunpack.c.h.b16 %v3073
          %v3789 = vunpack.c.l.b16 %v3074
          %v3790 = vunpack.c.h.b16 %v3074
          %v3791 = vunpack.c.l.b16 %v3075
          %v3792 = vunpack.c.h.b16 %v3075
          %v3793 = vunpack.c.l.b16 %v3076
          %v3794 = vunpack.c.h.b16 %v3076
          %v3795 = vunpack.c.l.b16 %v3077
          %v3796 = vunpack.c.h.b16 %v3077
          %v3797 = vunpack.c.l.b16 %v3078
          %v3798 = vunpack.c.h.b16 %v3078
          %v3799 = vunpack.c.l.b16 %v3079
          %v3800 = vunpack.c.h.b16 %v3079
          %v3801 = vunpack.c.l.b16 %v3080
          %v3802 = vunpack.c.h.b16 %v3080
          %v3803 = vunpack.c.l.b16 %v3081
          %v3804 = vunpack.c.h.b16 %v3081
          %v3805 = vunpack.c.l.b16 %v3082
          %v3806 = vunpack.c.h.b16 %v3082
          %v3807 = vunpack.c.l.b16 %v3083
          %v3808 = vunpack.c.h.b16 %v3083
          %v3809 = vunpack.c.l.b16 %v3084
          %v3810 = vunpack.c.h.b16 %v3084
          %v3811 = vunpack.c.l.b16 %v3085
          %v3812 = vunpack.c.h.b16 %v3085
          %v3813 = vunpack.c.l.b16 %v3086
          %v3814 = vunpack.c.h.b16 %v3086
          %v3815 = vunpack.c.l.b16 %v3087
          %v3816 = vunpack.c.h.b16 %v3087
          %v3817 = vunpack.c.l.b16 %v3088
          %v3818 = vunpack.c.h.b16 %v3088
          %v3819 = vunpack.c.l.b16 %v3089
          %v3820 = vunpack.c.h.b16 %v3089
          %v3821 = vunpack.c.l.b16 %v3090
          %v3822 = vunpack.c.h.b16 %v3090
          %v3823 = vunpack.c.l.b16 %v3091
          %v3824 = vunpack.c.h.b16 %v3091
          %v3825 = vunpack.c.l.b16 %v3092
          %v3826 = vunpack.c.h.b16 %v3092
          %v3827 = vunpack.c.l.b16 %v3093
          %v3828 = vunpack.c.h.b16 %v3093
          %v3829 = vunpack.c.l.b16 %v3094
          %v3830 = vunpack.c.h.b16 %v3094
          %v3831 = vunpack.c.l.b16 %v3095
          %v3832 = vunpack.c.h.b16 %v3095
          %v3833 = vunpack.c.l.b16 %v3096
          %v3834 = vunpack.c.h.b16 %v3096
          %v3835 = vunpack.c.l.b16 %v3097
          %v3836 = vunpack.c.h.b16 %v3097
          %v3837 = vunpack.c.l.b16 %v3098
          %v3838 = vunpack.c.h.b16 %v3098
          %v3839 = vunpack.c.l.b16 %v3099
          %v3840 = vunpack.c.h.b16 %v3099
          %v3841 = vunpack.c.l.b16 %v3100
          %v3842 = vunpack.c.h.b16 %v3100
          %v3843 = vunpack.c.l.b16 %v3101
          %v3844 = vunpack.c.h.b16 %v3101
          %v3845 = vunpack.c.l.b16 %v3102
          %v3846 = vunpack.c.h.b16 %v3102
          %v3847 = vunpack.c.l.b16 %v3103
          %v3848 = vunpack.c.h.b16 %v3103
          %v3849 = vunpack.c.l.b16 %v3104
          %v3850 = vunpack.c.h.b16 %v3104
          %v3851 = vunpack.c.l.b16 %v3105
          %v3852 = vunpack.c.h.b16 %v3105
          %v3853 = vunpack.c.l.b16 %v3106
          %v3854 = vunpack.c.h.b16 %v3106
          %v3855 = vunpack.c.l.b16 %v3107
          %v3856 = vunpack.c.h.b16 %v3107
          %v3857 = vunpack.c.l.b16 %v3108
          %v3858 = vunpack.c.h.b16 %v3108
          %v3859 = vunpack.c.l.b16 %v3109
          %v3860 = vunpack.c.h.b16 %v3109
          %v3861 = vunpack.c.l.b16 %v3110
          %v3862 = vunpack.c.h.b16 %v3110
          %v3863 = vunpack.c.l.b16 %v3111
          %v3864 = vunpack.c.h.b16 %v3111
          %v3865 = vunpack.c.l.b16 %v3112
          %v3866 = vunpack.c.h.b16 %v3112
          %v3867 = vunpack.c.l.b16 %v3113
          %v3868 = vunpack.c.h.b16 %v3113
          %v3869 = vunpack.c.l.b16 %v3114
          %v3870 = vunpack.c.h.b16 %v3114
          %v3871 = vunpack.c.l.b16 %v3115
          %v3872 = vunpack.c.h.b16 %v3115
          %v3873 = vunpack.c.l.b16 %v3116
          %v3874 = vunpack.c.h.b16 %v3116
          %v3875 = vunpack.c.l.b16 %v3117
          %v3876 = vunpack.c.h.b16 %v3117
          %v3877 = vunpack.c.l.b16 %v3118
          %v3878 = vunpack.c.h.b16 %v3118
          %v3879 = vunpack.c.l.b16 %v3119
          %v3880 = vunpack.c.h.b16 %v3119
          %v3881 = vunpack.c.l.b16 %v3120
          %v3882 = vunpack.c.h.b16 %v3120
          %v3883 = vunpack.c.l.b16 %v3121
          %v3884 = vunpack.c.h.b16 %v3121
          %v3885 = vunpack.c.l.b16 %v3122
          %v3886 = vunpack.c.h.b16 %v3122
          %v3887 = vunpack.c.l.b16 %v3123
          %v3888 = vunpack.c.h.b16 %v3123
          %v3889 = vunpack.c.l.b16 %v3124
          %v3890 = vunpack.c.h.b16 %v3124
          %v3891 = vunpack.c.l.b16 %v3125
          %v3892 = vunpack.c.h.b16 %v3125
          %v3893 = vunpack.c.l.b16 %v3126
          %v3894 = vunpack.c.h.b16 %v3126
          %v3895 = vunpack.c.l.b16 %v3127
          %v3896 = vunpack.c.h.b16 %v3127
          %v3897 = vunpack.c.l.b16 %v3128
          %v3898 = vunpack.c.h.b16 %v3128
          %v3899 = vunpack.c.l.b16 %v3129
          %v3900 = vunpack.c.h.b16 %v3129
          %v3901 = vunpack.c.l.b16 %v3130
          %v3902 = vunpack.c.h.b16 %v3130
          %v3903 = vunpack.c.l.b16 %v3131
          %v3904 = vunpack.c.h.b16 %v3131
          %v3905 = vunpack.c.l.b16 %v3132
          %v3906 = vunpack.c.h.b16 %v3132
          %v3907 = vunpack.c.l.b16 %v3133
          %v3908 = vunpack.c.h.b16 %v3133
          %v3909 = vunpack.c.l.b16 %v3134
          %v3910 = vunpack.c.h.b16 %v3134
          %v3911 = vunpack.c.l.b16 %v3135
          %v3912 = vunpack.c.h.b16 %v3135
          %v3913 = vunpack.c.l.b16 %v3136
          %v3914 = vunpack.c.h.b16 %v3136
          %v3915 = vunpack.c.l.b16 %v3137
          %v3916 = vunpack.c.h.b16 %v3137
          %v3917 = vunpack.c.l.b16 %v3138
          %v3918 = vunpack.c.h.b16 %v3138
          %v3919 = vunpack.c.l.b16 %v3139
          %v3920 = vunpack.c.h.b16 %v3139
          %v3921 = vunpack.c.l.b16 %v3140
          %v3922 = vunpack.c.h.b16 %v3140
          %v3923 = vunpack.c.l.b16 %v3141
          %v3924 = vunpack.c.h.b16 %v3141
          %v3925 = vunpack.c.l.b16 %v3142
          %v3926 = vunpack.c.h.b16 %v3142
          %v3927 = vunpack.c.l.b16 %v3143
          %v3928 = vunpack.c.h.b16 %v3143
          %v3929 = vunpack.c.l.b16 %v3144
          %v3930 = vunpack.c.h.b16 %v3144
          %v3931 = vunpack.c.l.b16 %v3145
          %v3932 = vunpack.c.h.b16 %v3145
          %v3933 = vunpack.c.l.b16 %v3146
          %v3934 = vunpack.c.h.b16 %v3146
          %v3935 = vunpack.c.l.b16 %v3147
          %v3936 = vunpack.c.h.b16 %v3147
          %v3937 = vunpack.c.l.b16 %v3148
          %v3938 = vunpack.c.h.b16 %v3148
          %v3939 = vunpack.c.l.b16 %v3149
          %v3940 = vunpack.c.h.b16 %v3149
          %v3941 = vunpack.c.l.b16 %v3150
          %v3942 = vunpack.c.h.b16 %v3150
          %v3943 = vunpack.c.l.b16 %v3151
          %v3944 = vunpack.c.h.b16 %v3151
          %v3945 = vunpack.c.l.b16 %v3152
          %v3946 = vunpack.c.h.b16 %v3152
          %v3947 = vunpack.c.l.b16 %v3153
          %v3948 = vunpack.c.h.b16 %v3153
          %v3949 = vunpack.c.l.b16 %v3154
          %v3950 = vunpack.c.h.b16 %v3154
          %v3951 = vunpack.c.l.b16 %v3155
          %v3952 = vunpack.c.h.b16 %v3155
          %v3953 = vunpack.c.l.b16 %v3156
          %v3954 = vunpack.c.h.b16 %v3156
          %v3955 = vunpack.c.l.b16 %v3157
          %v3956 = vunpack.c.h.b16 %v3157
          %v3957 = vunpack.c.l.b16 %v3158
          %v3958 = vunpack.c.h.b16 %v3158
          %v3959 = vunpack.c.l.b16 %v3159
          %v3960 = vunpack.c.h.b16 %v3159
          %v3961 = vunpack.c.l.b16 %v3160
          %v3962 = vunpack.c.h.b16 %v3160
          %v3963 = vunpack.c.l.b16 %v3161
          %v3964 = vunpack.c.h.b16 %v3161
          %v3965 = vunpack.c.l.b16 %v3162
          %v3966 = vunpack.c.h.b16 %v3162
          %v3967 = vunpack.c.l.b16 %v3163
          %v3968 = vunpack.c.h.b16 %v3163
          %v3969 = vunpack.c.l.b16 %v3164
          %v3970 = vunpack.c.h.b16 %v3164
          %v3971 = vunpack.c.l.b16 %v3165
          %v3972 = vunpack.c.h.b16 %v3165
          %v3973 = vunpack.c.l.b16 %v3166
          %v3974 = vunpack.c.h.b16 %v3166
          %v3975 = vunpack.c.l.b16 %v3167
          %v3976 = vunpack.c.h.b16 %v3167
          %v3977 = vunpack.c.l.b16 %v3168
          %v3978 = vunpack.c.h.b16 %v3168
          %v3979 = vunpack.c.l.b16 %v3169
          %v3980 = vunpack.c.h.b16 %v3169
          %v3981 = vunpack.c.l.b16 %v3170
          %v3982 = vunpack.c.h.b16 %v3170
          %v3983 = vunpack.c.l.b16 %v3171
          %v3984 = vunpack.c.h.b16 %v3171
          %v3985 = vunpack.c.l.b16 %v3172
          %v3986 = vunpack.c.h.b16 %v3172
          %v3987 = vunpack.c.l.b16 %v3173
          %v3988 = vunpack.c.h.b16 %v3173
          %v3989 = vunpack.c.l.b16 %v3174
          %v3990 = vunpack.c.h.b16 %v3174
          %v3991 = vunpack.c.l.b16 %v3175
          %v3992 = vunpack.c.h.b16 %v3175
          %v3993 = vunpack.c.l.b16 %v3176
          %v3994 = vunpack.c.h.b16 %v3176
          %v3995 = vunpack.c.l.b16 %v3177
          %v3996 = vunpack.c.h.b16 %v3177
          %v3997 = vunpack.c.l.b16 %v3178
          %v3998 = vunpack.c.h.b16 %v3178
          %v3999 = vunpack.c.l.b16 %v3179
          %v4000 = vunpack.c.h.b16 %v3179
          %v4001 = vunpack.c.l.b16 %v3180
          %v4002 = vunpack.c.h.b16 %v3180
          %v4003 = vunpack.c.l.b16 %v3181
          %v4004 = vunpack.c.h.b16 %v3181
          %v4005 = vunpack.c.l.b16 %v3182
          %v4006 = vunpack.c.h.b16 %v3182
          %v4007 = vunpack.c.l.b16 %v3183
          %v4008 = vunpack.c.h.b16 %v3183
          %v4009 = vunpack.c.l.b16 %v3184
          %v4010 = vunpack.c.h.b16 %v3184
          %v4011 = vunpack.c.l.b16 %v3185
          %v4012 = vunpack.c.h.b16 %v3185
          %v4013 = vunpack.c.l.b16 %v3186
          %v4014 = vunpack.c.h.b16 %v3186
          %v4015 = vunpack.c.l.b16 %v3187
          %v4016 = vunpack.c.h.b16 %v3187
          %v4017 = vunpack.c.l.b16 %v3188
          %v4018 = vunpack.c.h.b16 %v3188
          %v4019 = vunpack.c.l.b16 %v3189
          %v4020 = vunpack.c.h.b16 %v3189
          %v4021 = vunpack.c.l.b16 %v3190
          %v4022 = vunpack.c.h.b16 %v3190
          %v4023 = vunpack.c.l.b16 %v3191
          %v4024 = vunpack.c.h.b16 %v3191
          %v4025 = vunpack.c.l.b16 %v3192
          %v4026 = vunpack.c.h.b16 %v3192
          %v4027 = vunpack.c.l.b16 %v3193
          %v4028 = vunpack.c.h.b16 %v3193
          %v4029 = vunpack.c.l.b16 %v3194
          %v4030 = vunpack.c.h.b16 %v3194
          %v4031 = vunpack.c.l.b16 %v3195
          %v4032 = vunpack.c.h.b16 %v3195
          %v4033 = vunpack.c.l.b16 %v3196
          %v4034 = vunpack.c.h.b16 %v3196
          %v4035 = vunpack.c.l.b16 %v3197
          %v4036 = vunpack.c.h.b16 %v3197
          %v4037 = vunpack.c.l.b16 %v3198
          %v4038 = vunpack.c.h.b16 %v3198
          %v4039 = vunpack.c.l.b16 %v3199
          %v4040 = vunpack.c.h.b16 %v3199
          %v4041 = vunpack.c.l.b16 %v3200
          %v4042 = vunpack.c.h.b16 %v3200
          %v4043 = vunpack.c.l.b16 %v3201
          %v4044 = vunpack.c.h.b16 %v3201
          %v4045 = vunpack.c.l.b16 %v3202
          %v4046 = vunpack.c.h.b16 %v3202
          %v4047 = vunpack.c.l.b16 %v3203
          %v4048 = vunpack.c.h.b16 %v3203
          %v4049 = vunpack.c.l.b16 %v3204
          %v4050 = vunpack.c.h.b16 %v3204
          %v4051 = vunpack.c.l.b16 %v3205
          %v4052 = vunpack.c.h.b16 %v3205
          %v4053 = vunpack.c.l.b16 %v3206
          %v4054 = vunpack.c.h.b16 %v3206
          %v4055 = vunpack.c.l.b16 %v3207
          %v4056 = vunpack.c.h.b16 %v3207
          %v4057 = vunpack.c.l.b16 %v3208
          %v4058 = vunpack.c.h.b16 %v3208
          %v4059 = vunpack.c.l.b16 %v3209
          %v4060 = vunpack.c.h.b16 %v3209
          %v4061 = vunpack.c.l.b16 %v3210
          %v4062 = vunpack.c.h.b16 %v3210
          %v4063 = vunpack.c.l.b16 %v3211
          %v4064 = vunpack.c.h.b16 %v3211
          %v4065 = vunpack.c.l.b16 %v3212
          %v4066 = vunpack.c.h.b16 %v3212
          %v4067 = vunpack.c.l.b16 %v3213
          %v4068 = vunpack.c.h.b16 %v3213
          %v4069 = vunpack.c.l.b16 %v3214
          %v4070 = vunpack.c.h.b16 %v3214
          %v4071 = vunpack.c.l.b16 %v3215
          %v4072 = vunpack.c.h.b16 %v3215
          %v4073 = vunpack.c.l.b16 %v3216
          %v4074 = vunpack.c.h.b16 %v3216
          %v4075 = vunpack.c.l.b16 %v3217
          %v4076 = vunpack.c.h.b16 %v3217
          %v4077 = vunpack.c.l.b16 %v3218
          %v4078 = vunpack.c.h.b16 %v3218
          %v4079 = vunpack.c.l.b16 %v3219
          %v4080 = vunpack.c.h.b16 %v3219
          %v4081 = vunpack.c.l.b16 %v3220
          %v4082 = vunpack.c.h.b16 %v3220
          %v4083 = vunpack.c.l.b16 %v3221
          %v4084 = vunpack.c.h.b16 %v3221
          %v4085 = vunpack.c.l.b16 %v3222
          %v4086 = vunpack.c.h.b16 %v3222
          %v4087 = vunpack.c.l.b16 %v3223
          %v4088 = vunpack.c.h.b16 %v3223
          %v4089 = vunpack.c.l.b16 %v3224
          %v4090 = vunpack.c.h.b16 %v3224
          %v4091 = vunpack.c.l.b16 %v3225
          %v4092 = vunpack.c.h.b16 %v3225
          %v4093 = vunpack.c.l.b16 %v3226
          %v4094 = vunpack.c.h.b16 %v3226
          %v4095 = vunpack.c.l.b16 %v3227
          %v4096 = vunpack.c.h.b16 %v3227
          %v4097 = vunpack.c.l.b16 %v3228
          %v4098 = vunpack.c.h.b16 %v3228
          %v4099 = vunpack.c.l.b16 %v3229
          %v4100 = vunpack.c.h.b16 %v3229
          %v4101 = vunpack.c.l.b16 %v3230
          %v4102 = vunpack.c.h.b16 %v3230
          %v4103 = vunpack.c.l.b16 %v3231
          %v4104 = vunpack.c.h.b16 %v3231
          %v4105 = vunpack.c.l.b16 %v3232
          %v4106 = vunpack.c.h.b16 %v3232
          %v4107 = vunpack.c.l.b16 %v3233
          %v4108 = vunpack.c.h.b16 %v3233
          %v4109 = vunpack.c.l.b16 %v3234
          %v4110 = vunpack.c.h.b16 %v3234
          %v4111 = vunpack.c.l.b16 %v3235
          %v4112 = vunpack.c.h.b16 %v3235
          %v4113 = vunpack.c.l.b16 %v3236
          %v4114 = vunpack.c.h.b16 %v3236
          %v4115 = vunpack.c.l.b16 %v3237
          %v4116 = vunpack.c.h.b16 %v3237
          %v4117 = vunpack.c.l.b16 %v3238
          %v4118 = vunpack.c.h.b16 %v3238
          %v4119 = vunpack.c.l.b16 %v3239
          %v4120 = vunpack.c.h.b16 %v3239
          %v4121 = vunpack.c.l.b16 %v3240
          %v4122 = vunpack.c.h.b16 %v3240
          %v4123 = vunpack.c.l.b16 %v3241
          %v4124 = vunpack.c.h.b16 %v3241
          %v4125 = vunpack.c.l.b16 %v3242
          %v4126 = vunpack.c.h.b16 %v3242
          %v4127 = vunpack.c.l.b16 %v3243
          %v4128 = vunpack.c.h.b16 %v3243
          %v4129 = vunpack.c.l.b16 %v3244
          %v4130 = vunpack.c.h.b16 %v3244
          %v4131 = vunpack.c.l.b16 %v3245
          %v4132 = vunpack.c.h.b16 %v3245
          %v4133 = vunpack.c.l.b16 %v3246
          %v4134 = vunpack.c.h.b16 %v3246
          %v4135 = vunpack.c.l.b16 %v3247
          %v4136 = vunpack.c.h.b16 %v3247
          %v4137 = vunpack.c.l.b16 %v3248
          %v4138 = vunpack.c.h.b16 %v3248
          %v4139 = vunpack.c.l.b16 %v3249
          %v4140 = vunpack.c.h.b16 %v3249
          %v4141 = vunpack.c.l.b16 %v3250
          %v4142 = vunpack.c.h.b16 %v3250
          %v4143 = vunpack.c.l.b16 %v3251
          %v4144 = vunpack.c.h.b16 %v3251
          %v4145 = vunpack.c.l.b16 %v3252
          %v4146 = vunpack.c.h.b16 %v3252
          %v4147 = vunpack.c.l.b16 %v3253
          %v4148 = vunpack.c.h.b16 %v3253
          %v4149 = vunpack.c.l.b16 %v3254
          %v4150 = vunpack.c.h.b16 %v3254
          %v4151 = vunpack.c.l.b16 %v3255
          %v4152 = vunpack.c.h.b16 %v3255
          %v4153 = vunpack.c.l.b16 %v3256
          %v4154 = vunpack.c.h.b16 %v3256
          %v4155 = vunpack.c.l.b16 %v3257
          %v4156 = vunpack.c.h.b16 %v3257
          %v4157 = vunpack.c.l.b16 %v3258
          %v4158 = vunpack.c.h.b16 %v3258
          %v4159 = vunpack.c.l.b16 %v3259
          %v4160 = vunpack.c.h.b16 %v3259
          %v4161 = vunpack.c.l.b16 %v3260
          %v4162 = vunpack.c.h.b16 %v3260
          %v4163 = vunpack.c.l.b16 %v3261
          %v4164 = vunpack.c.h.b16 %v3261
          %v4165 = vunpack.c.l.b16 %v3262
          %v4166 = vunpack.c.h.b16 %v3262
          %v4167 = vunpack.c.l.b16 %v3263
          %v4168 = vunpack.c.h.b16 %v3263
          %v4169 = vunpack.c.l.b16 %v3264
          %v4170 = vunpack.c.h.b16 %v3264
          %v4171 = vunpack.c.l.b16 %v3265
          %v4172 = vunpack.c.h.b16 %v3265
          %v4173 = vunpack.c.l.b16 %v3266
          %v4174 = vunpack.c.h.b16 %v3266
          %v4175 = vunpack.c.l.b16 %v3267
          %v4176 = vunpack.c.h.b16 %v3267
          %v4177 = vunpack.c.l.b16 %v3268
          %v4178 = vunpack.c.h.b16 %v3268
          %v4179 = vunpack.c.l.b16 %v3269
          %v4180 = vunpack.c.h.b16 %v3269
          %v4181 = vunpack.c.l.b16 %v3270
          %v4182 = vunpack.c.h.b16 %v3270
          %v4183 = vunpack.c.l.b16 %v3271
          %v4184 = vunpack.c.h.b16 %v3271
          %v4185 = vunpack.c.l.b16 %v3272
          %v4186 = vunpack.c.h.b16 %v3272
          %v4187 = vunpack.c.l.b16 %v3273
          %v4188 = vunpack.c.h.b16 %v3273
          %v4189 = vunpack.c.l.b16 %v3274
          %v4190 = vunpack.c.h.b16 %v3274
          %v4191 = vunpack.c.l.b16 %v3275
          %v4192 = vunpack.c.h.b16 %v3275
          %v4193 = vunpack.c.l.b16 %v3276
          %v4194 = vunpack.c.h.b16 %v3276
          %v4195 = vunpack.c.l.b16 %v3277
          %v4196 = vunpack.c.h.b16 %v3277
          %v4197 = vunpack.c.l.b16 %v3278
          %v4198 = vunpack.c.h.b16 %v3278
          %v4199 = vunpack.c.l.b16 %v3279
          %v4200 = vunpack.c.h.b16 %v3279
          %v4201 = vunpack.c.l.b16 %v3280
          %v4202 = vunpack.c.h.b16 %v3280
          %v4203 = vunpack.c.l.b16 %v3281
          %v4204 = vunpack.c.h.b16 %v3281
          %v4205 = vunpack.c.l.b16 %v3282
          %v4206 = vunpack.c.h.b16 %v3282
          %v4207 = vunpack.c.l.b16 %v3283
          %v4208 = vunpack.c.h.b16 %v3283
          %v4209 = vunpack.c.l.b16 %v3284
          %v4210 = vunpack.c.h.b16 %v3284
          %v4211 = vunpack.c.l.b16 %v3285
          %v4212 = vunpack.c.h.b16 %v3285
          %v4213 = vunpack.c.l.b16 %v3286
          %v4214 = vunpack.c.h.b16 %v3286
          %v4215 = vunpack.c.l.b16 %v3287
          %v4216 = vunpack.c.h.b16 %v3287
          %v4217 = vunpack.c.l.b16 %v3288
          %v4218 = vunpack.c.h.b16 %v3288
          %v4219 = vunpack.c.l.b16 %v3289
          %v4220 = vunpack.c.h.b16 %v3289
          %v4221 = vunpack.c.l.b16 %v3290
          %v4222 = vunpack.c.h.b16 %v3290
          %v4223 = vunpack.c.l.b16 %v3291
          %v4224 = vunpack.c.h.b16 %v3291
          %v4225 = vunpack.c.l.b16 %v3292
          %v4226 = vunpack.c.h.b16 %v3292
          %v4227 = vunpack.c.l.b16 %v3293
          %v4228 = vunpack.c.h.b16 %v3293
          %v4229 = vunpack.c.l.b16 %v3294
          %v4230 = vunpack.c.h.b16 %v3294
          %v4231 = vunpack.c.l.b16 %v3295
          %v4232 = vunpack.c.h.b16 %v3295
          %v4233 = vunpack.c.l.b16 %v3296
          %v4234 = vunpack.c.h.b16 %v3296
          %v4235 = vunpack.c.l.b16 %v3297
          %v4236 = vunpack.c.h.b16 %v3297
          %v4237 = vunpack.c.l.b16 %v3298
          %v4238 = vunpack.c.h.b16 %v3298
          %v4239 = vunpack.c.l.b16 %v3299
          %v4240 = vunpack.c.h.b16 %v3299
          %v4241 = vunpack.c.l.b16 %v3300
          %v4242 = vunpack.c.h.b16 %v3300
          %v4243 = vunpack.c.l.b16 %v3301
          %v4244 = vunpack.c.h.b16 %v3301
          %v4245 = vunpack.c.l.b16 %v3302
          %v4246 = vunpack.c.h.b16 %v3302
          %v4247 = vunpack.c.l.b16 %v3303
          %v4248 = vunpack.c.h.b16 %v3303
          %v4249 = vunpack.c.l.b16 %v3304
          %v4250 = vunpack.c.h.b16 %v3304
          %v4251 = vunpack.c.l.b16 %v3305
          %v4252 = vunpack.c.h.b16 %v3305
          %v4253 = vunpack.c.l.b16 %v3306
          %v4254 = vunpack.c.h.b16 %v3306
          %v4255 = vunpack.c.l.b16 %v3307
          %v4256 = vunpack.c.h.b16 %v3307
          %v4257 = vunpack.c.l.b16 %v3308
          %v4258 = vunpack.c.h.b16 %v3308
          %v4259 = vunpack.c.l.b16 %v3309
          %v4260 = vunpack.c.h.b16 %v3309
          %v4261 = vunpack.c.l.b16 %v3310
          %v4262 = vunpack.c.h.b16 %v3310
          %v4263 = vunpack.c.l.b16 %v3311
          %v4264 = vunpack.c.h.b16 %v3311
          %v4265 = vunpack.c.l.b16 %v3312
          %v4266 = vunpack.c.h.b16 %v3312
          %v4267 = vunpack.c.l.b16 %v3313
          %v4268 = vunpack.c.h.b16 %v3313
          %v4269 = vunpack.c.l.b16 %v3314
          %v4270 = vunpack.c.h.b16 %v3314
          %v4271 = vunpack.c.l.b16 %v3315
          %v4272 = vunpack.c.h.b16 %v3315
          %v4273 = vunpack.c.l.b16 %v3316
          %v4274 = vunpack.c.h.b16 %v3316
          %v4275 = vunpack.c.l.b16 %v3317
          %v4276 = vunpack.c.h.b16 %v3317
          %v4277 = vunpack.c.l.b16 %v3318
          %v4278 = vunpack.c.h.b16 %v3318
          %v4279 = vunpack.c.l.b16 %v3319
          %v4280 = vunpack.c.h.b16 %v3319
          %v4281 = vpack.c.b16 %v3645, %v3641
          %v4282 = vpack.c.b16 %v3646, %v3642
          %v4283 = vpack.c.b16 %v3647, %v3643
          %v4284 = vpack.c.b16 %v3648, %v3644
          %v4285 = vpack.c.b16 %v3653, %v3649
          %v4286 = vpack.c.b16 %v3654, %v3650
          %v4287 = vpack.c.b16 %v3655, %v3651
          %v4288 = vpack.c.b16 %v3656, %v3652
          %v4289 = vpack.c.b16 %v3661, %v3657
          %v4290 = vpack.c.b16 %v3662, %v3658
          %v4291 = vpack.c.b16 %v3663, %v3659
          %v4292 = vpack.c.b16 %v3664, %v3660
          %v4293 = vpack.c.b16 %v3669, %v3665
          %v4294 = vpack.c.b16 %v3670, %v3666
          %v4295 = vpack.c.b16 %v3671, %v3667
          %v4296 = vpack.c.b16 %v3672, %v3668
          %v4297 = vpack.c.b16 %v3677, %v3673
          %v4298 = vpack.c.b16 %v3678, %v3674
          %v4299 = vpack.c.b16 %v3679, %v3675
          %v4300 = vpack.c.b16 %v3680, %v3676
          %v4301 = vpack.c.b16 %v3685, %v3681
          %v4302 = vpack.c.b16 %v3686, %v3682
          %v4303 = vpack.c.b16 %v3687, %v3683
          %v4304 = vpack.c.b16 %v3688, %v3684
          %v4305 = vpack.c.b16 %v3693, %v3689
          %v4306 = vpack.c.b16 %v3694, %v3690
          %v4307 = vpack.c.b16 %v3695, %v3691
          %v4308 = vpack.c.b16 %v3696, %v3692
          %v4309 = vpack.c.b16 %v3701, %v3697
          %v4310 = vpack.c.b16 %v3702, %v3698
          %v4311 = vpack.c.b16 %v3703, %v3699
          %v4312 = vpack.c.b16 %v3704, %v3700
          %v4313 = vpack.c.b16 %v3709, %v3705
          %v4314 = vpack.c.b16 %v3710, %v3706
          %v4315 = vpack.c.b16 %v3711, %v3707
          %v4316 = vpack.c.b16 %v3712, %v3708
          %v4317 = vpack.c.b16 %v3717, %v3713
          %v4318 = vpack.c.b16 %v3718, %v3714
          %v4319 = vpack.c.b16 %v3719, %v3715
          %v4320 = vpack.c.b16 %v3720, %v3716
          %v4321 = vpack.c.b16 %v3725, %v3721
          %v4322 = vpack.c.b16 %v3726, %v3722
          %v4323 = vpack.c.b16 %v3727, %v3723
          %v4324 = vpack.c.b16 %v3728, %v3724
          %v4325 = vpack.c.b16 %v3733, %v3729
          %v4326 = vpack.c.b16 %v3734, %v3730
          %v4327 = vpack.c.b16 %v3735, %v3731
          %v4328 = vpack.c.b16 %v3736, %v3732
          %v4329 = vpack.c.b16 %v3741, %v3737
          %v4330 = vpack.c.b16 %v3742, %v3738
          %v4331 = vpack.c.b16 %v3743, %v3739
          %v4332 = vpack.c.b16 %v3744, %v3740
          %v4333 = vpack.c.b16 %v3749, %v3745
          %v4334 = vpack.c.b16 %v3750, %v3746
          %v4335 = vpack.c.b16 %v3751, %v3747
          %v4336 = vpack.c.b16 %v3752, %v3748
          %v4337 = vpack.c.b16 %v3757, %v3753
          %v4338 = vpack.c.b16 %v3758, %v3754
          %v4339 = vpack.c.b16 %v3759, %v3755
          %v4340 = vpack.c.b16 %v3760, %v3756
          %v4341 = vpack.c.b16 %v3765, %v3761
          %v4342 = vpack.c.b16 %v3766, %v3762
          %v4343 = vpack.c.b16 %v3767, %v3763
          %v4344 = vpack.c.b16 %v3768, %v3764
          %v4345 = vpack.c.b16 %v3773, %v3769
          %v4346 = vpack.c.b16 %v3774, %v3770
          %v4347 = vpack.c.b16 %v3775, %v3771
          %v4348 = vpack.c.b16 %v3776, %v3772
          %v4349 = vpack.c.b16 %v3781, %v3777
          %v4350 = vpack.c.b16 %v3782, %v3778
          %v4351 = vpack.c.b16 %v3783, %v3779
          %v4352 = vpack.c.b16 %v3784, %v3780
          %v4353 = vpack.c.b16 %v3789, %v3785
          %v4354 = vpack.c.b16 %v3790, %v3786
          %v4355 = vpack.c.b16 %v3791, %v3787
          %v4356 = vpack.c.b16 %v3792, %v3788
          %v4357 = vpack.c.b16 %v3797, %v3793
          %v4358 = vpack.c.b16 %v3798, %v3794
          %v4359 = vpack.c.b16 %v3799, %v3795
          %v4360 = vpack.c.b16 %v3800, %v3796
          %v4361 = vpack.c.b16 %v3805, %v3801
          %v4362 = vpack.c.b16 %v3806, %v3802
          %v4363 = vpack.c.b16 %v3807, %v3803
          %v4364 = vpack.c.b16 %v3808, %v3804
          %v4365 = vpack.c.b16 %v3813, %v3809
          %v4366 = vpack.c.b16 %v3814, %v3810
          %v4367 = vpack.c.b16 %v3815, %v3811
          %v4368 = vpack.c.b16 %v3816, %v3812
          %v4369 = vpack.c.b16 %v3821, %v3817
          %v4370 = vpack.c.b16 %v3822, %v3818
          %v4371 = vpack.c.b16 %v3823, %v3819
          %v4372 = vpack.c.b16 %v3824, %v3820
          %v4373 = vpack.c.b16 %v3829, %v3825
          %v4374 = vpack.c.b16 %v3830, %v3826
          %v4375 = vpack.c.b16 %v3831, %v3827
          %v4376 = vpack.c.b16 %v3832, %v3828
          %v4377 = vpack.c.b16 %v3837, %v3833
          %v4378 = vpack.c.b16 %v3838, %v3834
          %v4379 = vpack.c.b16 %v3839, %v3835
          %v4380 = vpack.c.b16 %v3840, %v3836
          %v4381 = vpack.c.b16 %v3845, %v3841
          %v4382 = vpack.c.b16 %v3846, %v3842
          %v4383 = vpack.c.b16 %v3847, %v3843
          %v4384 = vpack.c.b16 %v3848, %v3844
          %v4385 = vpack.c.b16 %v3853, %v3849
          %v4386 = vpack.c.b16 %v3854, %v3850
          %v4387 = vpack.c.b16 %v3855, %v3851
          %v4388 = vpack.c.b16 %v3856, %v3852
          %v4389 = vpack.c.b16 %v3861, %v3857
          %v4390 = vpack.c.b16 %v3862, %v3858
          %v4391 = vpack.c.b16 %v3863, %v3859
          %v4392 = vpack.c.b16 %v3864, %v3860
          %v4393 = vpack.c.b16 %v3869, %v3865
          %v4394 = vpack.c.b16 %v3870, %v3866
          %v4395 = vpack.c.b16 %v3871, %v3867
          %v4396 = vpack.c.b16 %v3872, %v3868
          %v4397 = vpack.c.b16 %v3877, %v3873
          %v4398 = vpack.c.b16 %v3878, %v3874
          %v4399 = vpack.c.b16 %v3879, %v3875
          %v4400 = vpack.c.b16 %v3880, %v3876
          %v4401 = vpack.c.b16 %v3885, %v3881
          %v4402 = vpack.c.b16 %v3886, %v3882
          %v4403 = vpack.c.b16 %v3887, %v3883
          %v4404 = vpack.c.b16 %v3888, %v3884
          %v4405 = vpack.c.b16 %v3893, %v3889
          %v4406 = vpack.c.b16 %v3894, %v3890
          %v4407 = vpack.c.b16 %v3895, %v3891
          %v4408 = vpack.c.b16 %v3896, %v3892
          %v4409 = vpack.c.b16 %v3901, %v3897
          %v4410 = vpack.c.b16 %v3902, %v3898
          %v4411 = vpack.c.b16 %v3903, %v3899
          %v4412 = vpack.c.b16 %v3904, %v3900
          %v4413 = vpack.c.b16 %v3909, %v3905
          %v4414 = vpack.c.b16 %v3910, %v3906
          %v4415 = vpack.c.b16 %v3911, %v3907
          %v4416 = vpack.c.b16 %v3912, %v3908
          %v4417 = vpack.c.b16 %v3917, %v3913
          %v4418 = vpack.c.b16 %v3918, %v3914
          %v4419 = vpack.c.b16 %v3919, %v3915
          %v4420 = vpack.c.b16 %v3920, %v3916
          %v4421 = vpack.c.b16 %v3925, %v3921
          %v4422 = vpack.c.b16 %v3926, %v3922
          %v4423 = vpack.c.b16 %v3927, %v3923
          %v4424 = vpack.c.b16 %v3928, %v3924
          %v4425 = vpack.c.b16 %v3933, %v3929
          %v4426 = vpack.c.b16 %v3934, %v3930
          %v4427 = vpack.c.b16 %v3935, %v3931
          %v4428 = vpack.c.b16 %v3936, %v3932
          %v4429 = vpack.c.b16 %v3941, %v3937
          %v4430 = vpack.c.b16 %v3942, %v3938
          %v4431 = vpack.c.b16 %v3943, %v3939
          %v4432 = vpack.c.b16 %v3944, %v3940
          %v4433 = vpack.c.b16 %v3949, %v3945
          %v4434 = vpack.c.b16 %v3950, %v3946
          %v4435 = vpack.c.b16 %v3951, %v3947
          %v4436 = vpack.c.b16 %v3952, %v3948
          %v4437 = vpack.c.b16 %v3957, %v3953
          %v4438 = vpack.c.b16 %v3958, %v3954
          %v4439 = vpack.c.b16 %v3959, %v3955
          %v4440 = vpack.c.b16 %v3960, %v3956
          %v4441 = vpack.c.b16 %v3965, %v3961
          %v4442 = vpack.c.b16 %v3966, %v3962
          %v4443 = vpack.c.b16 %v3967, %v3963
          %v4444 = vpack.c.b16 %v3968, %v3964
          %v4445 = vpack.c.b16 %v3973, %v3969
          %v4446 = vpack.c.b16 %v3974, %v3970
          %v4447 = vpack.c.b16 %v3975, %v3971
          %v4448 = vpack.c.b16 %v3976, %v3972
          %v4449 = vpack.c.b16 %v3981, %v3977
          %v4450 = vpack.c.b16 %v3982, %v3978
          %v4451 = vpack.c.b16 %v3983, %v3979
          %v4452 = vpack.c.b16 %v3984, %v3980
          %v4453 = vpack.c.b16 %v3989, %v3985
          %v4454 = vpack.c.b16 %v3990, %v3986
          %v4455 = vpack.c.b16 %v3991, %v3987
          %v4456 = vpack.c.b16 %v3992, %v3988
          %v4457 = vpack.c.b16 %v3997, %v3993
          %v4458 = vpack.c.b16 %v3998, %v3994
          %v4459 = vpack.c.b16 %v3999, %v3995
          %v4460 = vpack.c.b16 %v4000, %v3996
          %v4461 = vpack.c.b16 %v4005, %v4001
          %v4462 = vpack.c.b16 %v4006, %v4002
          %v4463 = vpack.c.b16 %v4007, %v4003
          %v4464 = vpack.c.b16 %v4008, %v4004
          %v4465 = vpack.c.b16 %v4013, %v4009
          %v4466 = vpack.c.b16 %v4014, %v4010
          %v4467 = vpack.c.b16 %v4015, %v4011
          %v4468 = vpack.c.b16 %v4016, %v4012
          %v4469 = vpack.c.b16 %v4021, %v4017
          %v4470 = vpack.c.b16 %v4022, %v4018
          %v4471 = vpack.c.b16 %v4023, %v4019
          %v4472 = vpack.c.b16 %v4024, %v4020
          %v4473 = vpack.c.b16 %v4029, %v4025
          %v4474 = vpack.c.b16 %v4030, %v4026
          %v4475 = vpack.c.b16 %v4031, %v4027
          %v4476 = vpack.c.b16 %v4032, %v4028
          %v4477 = vpack.c.b16 %v4037, %v4033
          %v4478 = vpack.c.b16 %v4038, %v4034
          %v4479 = vpack.c.b16 %v4039, %v4035
          %v4480 = vpack.c.b16 %v4040, %v4036
          %v4481 = vpack.c.b16 %v4045, %v4041
          %v4482 = vpack.c.b16 %v4046, %v4042
          %v4483 = vpack.c.b16 %v4047, %v4043
          %v4484 = vpack.c.b16 %v4048, %v4044
          %v4485 = vpack.c.b16 %v4053, %v4049
          %v4486 = vpack.c.b16 %v4054, %v4050
          %v4487 = vpack.c.b16 %v4055, %v4051
          %v4488 = vpack.c.b16 %v4056, %v4052
          %v4489 = vpack.c.b16 %v4061, %v4057
          %v4490 = vpack.c.b16 %v4062, %v4058
          %v4491 = vpack.c.b16 %v4063, %v4059
          %v4492 = vpack.c.b16 %v4064, %v4060
          %v4493 = vpack.c.b16 %v4069, %v4065
          %v4494 = vpack.c.b16 %v4070, %v4066
          %v4495 = vpack.c.b16 %v4071, %v4067
          %v4496 = vpack.c.b16 %v4072, %v4068
          %v4497 = vpack.c.b16 %v4077, %v4073
          %v4498 = vpack.c.b16 %v4078, %v4074
          %v4499 = vpack.c.b16 %v4079, %v4075
          %v4500 = vpack.c.b16 %v4080, %v4076
          %v4501 = vpack.c.b16 %v4085, %v4081
          %v4502 = vpack.c.b16 %v4086, %v4082
          %v4503 = vpack.c.b16 %v4087, %v4083
          %v4504 = vpack.c.b16 %v4088, %v4084
          %v4505 = vpack.c.b16 %v4093, %v4089
          %v4506 = vpack.c.b16 %v4094, %v4090
          %v4507 = vpack.c.b16 %v4095, %v4091
          %v4508 = vpack.c.b16 %v4096, %v4092
          %v4509 = vpack.c.b16 %v4101, %v4097
          %v4510 = vpack.c.b16 %v4102, %v4098
          %v4511 = vpack.c.b16 %v4103, %v4099
          %v4512 = vpack.c.b16 %v4104, %v4100
          %v4513 = vpack.c.b16 %v4109, %v4105
          %v4514 = vpack.c.b16 %v4110, %v4106
          %v4515 = vpack.c.b16 %v4111, %v4107
          %v4516 = vpack.c.b16 %v4112, %v4108
          %v4517 = vpack.c.b16 %v4117, %v4113
          %v4518 = vpack.c.b16 %v4118, %v4114
          %v4519 = vpack.c.b16 %v4119, %v4115
          %v4520 = vpack.c.b16 %v4120, %v4116
          %v4521 = vpack.c.b16 %v4125, %v4121
          %v4522 = vpack.c.b16 %v4126, %v4122
          %v4523 = vpack.c.b16 %v4127, %v4123
          %v4524 = vpack.c.b16 %v4128, %v4124
          %v4525 = vpack.c.b16 %v4133, %v4129
          %v4526 = vpack.c.b16 %v4134, %v4130
          %v4527 = vpack.c.b16 %v4135, %v4131
          %v4528 = vpack.c.b16 %v4136, %v4132
          %v4529 = vpack.c.b16 %v4141, %v4137
          %v4530 = vpack.c.b16 %v4142, %v4138
          %v4531 = vpack.c.b16 %v4143, %v4139
          %v4532 = vpack.c.b16 %v4144, %v4140
          %v4533 = vpack.c.b16 %v4149, %v4145
          %v4534 = vpack.c.b16 %v4150, %v4146
          %v4535 = vpack.c.b16 %v4151, %v4147
          %v4536 = vpack.c.b16 %v4152, %v4148
          %v4537 = vpack.c.b16 %v4157, %v4153
          %v4538 = vpack.c.b16 %v4158, %v4154
          %v4539 = vpack.c.b16 %v4159, %v4155
          %v4540 = vpack.c.b16 %v4160, %v4156
          %v4541 = vpack.c.b16 %v4165, %v4161
          %v4542 = vpack.c.b16 %v4166, %v4162
          %v4543 = vpack.c.b16 %v4167, %v4163
          %v4544 = vpack.c.b16 %v4168, %v4164
          %v4545 = vpack.c.b16 %v4173, %v4169
          %v4546 = vpack.c.b16 %v4174, %v4170
          %v4547 = vpack.c.b16 %v4175, %v4171
          %v4548 = vpack.c.b16 %v4176, %v4172
          %v4549 = vpack.c.b16 %v4181, %v4177
          %v4550 = vpack.c.b16 %v4182, %v4178
          %v4551 = vpack.c.b16 %v4183, %v4179
          %v4552 = vpack.c.b16 %v4184, %v4180
          %v4553 = vpack.c.b16 %v4189, %v4185
          %v4554 = vpack.c.b16 %v4190, %v4186
          %v4555 = vpack.c.b16 %v4191, %v4187
          %v4556 = vpack.c.b16 %v4192, %v4188
          %v4557 = vpack.c.b16 %v4197, %v4193
          %v4558 = vpack.c.b16 %v4198, %v4194
          %v4559 = vpack.c.b16 %v4199, %v4195
          %v4560 = vpack.c.b16 %v4200, %v4196
          %v4561 = vpack.c.b16 %v4205, %v4201
          %v4562 = vpack.c.b16 %v4206, %v4202
          %v4563 = vpack.c.b16 %v4207, %v4203
          %v4564 = vpack.c.b16 %v4208, %v4204
          %v4565 = vpack.c.b16 %v4213, %v4209
          %v4566 = vpack.c.b16 %v4214, %v4210
          %v4567 = vpack.c.b16 %v4215, %v4211
          %v4568 = vpack.c.b16 %v4216, %v4212
          %v4569 = vpack.c.b16 %v4221, %v4217
          %v4570 = vpack.c.b16 %v4222, %v4218
          %v4571 = vpack.c.b16 %v4223, %v4219
          %v4572 = vpack.c.b16 %v4224, %v4220
          %v4573 = vpack.c.b16 %v4229, %v4225
          %v4574 = vpack.c.b16 %v4230, %v4226
          %v4575 = vpack.c.b16 %v4231, %v4227
          %v4576 = vpack.c.b16 %v4232, %v4228
          %v4577 = vpack.c.b16 %v4237, %v4233
          %v4578 = vpack.c.b16 %v4238, %v4234
          %v4579 = vpack.c.b16 %v4239, %v4235
          %v4580 = vpack.c.b16 %v4240, %v4236
          %v4581 = vpack.c.b16 %v4245, %v4241
          %v4582 = vpack.c.b16 %v4246, %v4242
          %v4583 = vpack.c.b16 %v4247, %v4243
          %v4584 = vpack.c.b16 %v4248, %v4244
          %v4585 = vpack.c.b16 %v4253, %v4249
          %v4586 = vpack.c.b16 %v4254, %v4250
          %v4587 = vpack.c.b16 %v4255, %v4251
          %v4588 = vpack.c.b16 %v4256, %v4252
          %v4589 = vpack.c.b16 %v4261, %v4257
          %v4590 = vpack.c.b16 %v4262, %v4258
          %v4591 = vpack.c.b16 %v4263, %v4259
          %v4592 = vpack.c.b16 %v4264, %v4260
          %v4593 = vpack.c.b16 %v4269, %v4265
          %v4594 = vpack.c.b16 %v4270, %v4266
          %v4595 = vpack.c.b16 %v4271, %v4267
          %v4596 = vpack.c.b16 %v4272, %v4268
          %v4597 = vpack.c.b16 %v4277, %v4273
          %v4598 = vpack.c.b16 %v4278, %v4274
          %v4599 = vpack.c.b16 %v4279, %v4275
          %v4600 = vpack.c.b16 %v4280, %v4276
          %v4922 = vlaneseq
          %v4923 = vshrl.u32 %v4922, 7
          %v4924 = vsub.s32 0, %v4923
          %v4925 = vrot.slane %v3320, %v4924
          %v4926 = vlaneseq
          %v4927 = vshrl.u32 %v4926, 7
          %v4928 = vsub.s32 1, %v4927
          %v4929 = vrot.slane %v3320, %v4928
          %v4930 = vlaneseq
          %v4931 = vshrl.u32 %v4930, 7
          %v4932 = vsub.s32 2, %v4931
          %v4933 = vrot.slane %v3320, %v4932
          %v4934 = vlaneseq
          %v4935 = vshrl.u32 %v4934, 7
          %v4936 = vsub.s32 3, %v4935
          %v4937 = vrot.slane %v3320, %v4936
          %4942 = vmatprep.subr.bf16.mxu0 %v4282
          %4943 = vmatpush1.bf16.msra.mxu0 %v4281
          %4944 = vmatprep.subr.bf16.mxu0 %v4286
          %4945 = vmatpush1.bf16.msra.mxu0 %v4285
          %4946 = vmatprep.subr.bf16.mxu0 %v4290
          %4947 = vmatpush1.bf16.msra.mxu0 %v4289
          %4948 = vmatprep.subr.bf16.mxu0 %v4294
          %4949 = vmatpush1.bf16.msra.mxu0 %v4293
          %4950 = vmatprep.subr.bf16.mxu0 %v4298
          %4951 = vmatpush1.bf16.msra.mxu0 %v4297
          %4952 = vmatprep.subr.bf16.mxu0 %v4302
          %4953 = vmatpush1.bf16.msra.mxu0 %v4301
          %4954 = vmatprep.subr.bf16.mxu0 %v4306
          %4955 = vmatpush1.bf16.msra.mxu0 %v4305
          %4956 = vmatprep.subr.bf16.mxu0 %v4310
          %4957 = vmatpush1.bf16.msra.mxu0 %v4309
          %4958 = vmatprep.subr.bf16.mxu0 %v4314
          %4959 = vmatpush1.bf16.msra.mxu0 %v4313
          %4960 = vmatprep.subr.bf16.mxu0 %v4318
          %4961 = vmatpush1.bf16.msra.mxu0 %v4317
          %4962 = vmatprep.subr.bf16.mxu0 %v4322
          %4963 = vmatpush1.bf16.msra.mxu0 %v4321
          %4964 = vmatprep.subr.bf16.mxu0 %v4326
          %4965 = vmatpush1.bf16.msra.mxu0 %v4325
          %4966 = vmatprep.subr.bf16.mxu0 %v4330
          %4967 = vmatpush1.bf16.msra.mxu0 %v4329
          %4968 = vmatprep.subr.bf16.mxu0 %v4334
          %4969 = vmatpush1.bf16.msra.mxu0 %v4333
          %4970 = vmatprep.subr.bf16.mxu0 %v4338
          %4971 = vmatpush1.bf16.msra.mxu0 %v4337
          %4972 = vmatprep.subr.bf16.mxu0 %v4342
          %4973 = vmatpush1.bf16.msra.mxu0 %v4341
          %4974 = vmatprep.mubr.bf16.mxu0 %v2991
          %4975 = vmatmul.mubr.bf16.gmra.mrb[0].mxu0 %v2990
          %v4976 = vpop.f32.mrb[0].mxu0
          %v4977 = vadd.f32 %v4925, %v4976
          %v4978 = vpop.f32.mrb[0].mxu0
          %v4979 = vadd.f32 %v4929, %v4978
          %v4980 = vpop.f32.mrb[0].mxu0
          %v4981 = vpop.f32.mrb[0].mxu0
          %4982 = vdwg.mxu0
          %4983 = vmatprep.subr.bf16.mxu0 %v4346
          %4984 = vmatpush1.bf16.msra.mxu0 %v4345
          %4985 = vmatprep.subr.bf16.mxu0 %v4350
          %4986 = vmatpush1.bf16.msra.mxu0 %v4349
          %4987 = vmatprep.subr.bf16.mxu0 %v4354
          %4988 = vmatpush1.bf16.msra.mxu0 %v4353
          %4989 = vmatprep.subr.bf16.mxu0 %v4358
          %4990 = vmatpush1.bf16.msra.mxu0 %v4357
          %4991 = vmatprep.subr.bf16.mxu0 %v4362
          %4992 = vmatpush1.bf16.msra.mxu0 %v4361
          %4993 = vmatprep.subr.bf16.mxu0 %v4366
          %4994 = vmatpush1.bf16.msra.mxu0 %v4365
          %4995 = vmatprep.subr.bf16.mxu0 %v4370
          %4996 = vmatpush1.bf16.msra.mxu0 %v4369
          %4997 = vmatprep.subr.bf16.mxu0 %v4374
          %4998 = vmatpush1.bf16.msra.mxu0 %v4373
          %4999 = vmatprep.subr.bf16.mxu0 %v4378
          %5000 = vmatpush1.bf16.msra.mxu0 %v4377
          %5001 = vmatprep.subr.bf16.mxu0 %v4382
          %5002 = vmatpush1.bf16.msra.mxu0 %v4381
          %5003 = vmatprep.subr.bf16.mxu0 %v4386
          %5004 = vmatpush1.bf16.msra.mxu0 %v4385
          %5005 = vmatprep.subr.bf16.mxu0 %v4390
          %5006 = vmatpush1.bf16.msra.mxu0 %v4389
          %5007 = vmatprep.subr.bf16.mxu0 %v4394
          %5008 = vmatpush1.bf16.msra.mxu0 %v4393
          %5009 = vmatprep.subr.bf16.mxu0 %v4398
          %5010 = vmatpush1.bf16.msra.mxu0 %v4397
          %5011 = vmatprep.subr.bf16.mxu0 %v4402
          %5012 = vmatpush1.bf16.msra.mxu0 %v4401
          %5013 = vmatprep.subr.bf16.mxu0 %v4406
          %5014 = vmatpush1.bf16.msra.mxu0 %v4405
          %5015 = vmatprep.mubr.bf16.mxu0 %v2993
          %5016 = vmatmul.mubr.bf16.gmra.mrb[0].mxu0 %v2992
          %v5017 = vpop.f32.mrb[0].mxu0
          %v5018 = vadd.f32 %v4977, %v5017
          %v5019 = vpop.f32.mrb[0].mxu0
          %v5020 = vadd.f32 %v4979, %v5019
          %v5021 = vpop.f32.mrb[0].mxu0
          %v5022 = vpop.f32.mrb[0].mxu0
          %5023 = vdwg.mxu0
          %5024 = vmatprep.subr.bf16.mxu0 %v4410
          %5025 = vmatpush1.bf16.msra.mxu0 %v4409
          %5026 = vmatprep.subr.bf16.mxu0 %v4414
          %5027 = vmatpush1.bf16.msra.mxu0 %v4413
          %5028 = vmatprep.subr.bf16.mxu0 %v4418
          %5029 = vmatpush1.bf16.msra.mxu0 %v4417
          %5030 = vmatprep.subr.bf16.mxu0 %v4422
          %5031 = vmatpush1.bf16.msra.mxu0 %v4421
          %5032 = vmatprep.subr.bf16.mxu0 %v4426
          %5033 = vmatpush1.bf16.msra.mxu0 %v4425
          %5034 = vmatprep.subr.bf16.mxu0 %v4430
          %5035 = vmatpush1.bf16.msra.mxu0 %v4429
          %5036 = vmatprep.subr.bf16.mxu0 %v4434
          %5037 = vmatpush1.bf16.msra.mxu0 %v4433
          %5038 = vmatprep.subr.bf16.mxu0 %v4438
          %5039 = vmatpush1.bf16.msra.mxu0 %v4437
          %5040 = vmatprep.subr.bf16.mxu0 %v4442
          %5041 = vmatpush1.bf16.msra.mxu0 %v4441
          %5042 = vmatprep.subr.bf16.mxu0 %v4446
          %5043 = vmatpush1.bf16.msra.mxu0 %v4445
          %5044 = vmatprep.subr.bf16.mxu0 %v4450
          %5045 = vmatpush1.bf16.msra.mxu0 %v4449
          %5046 = vmatprep.subr.bf16.mxu0 %v4454
          %5047 = vmatpush1.bf16.msra.mxu0 %v4453
          %5048 = vmatprep.subr.bf16.mxu0 %v4458
          %5049 = vmatpush1.bf16.msra.mxu0 %v4457
          %5050 = vmatprep.subr.bf16.mxu0 %v4462
          %5051 = vmatpush1.bf16.msra.mxu0 %v4461
          %5052 = vmatprep.subr.bf16.mxu0 %v4466
          %5053 = vmatpush1.bf16.msra.mxu0 %v4465
          %5054 = vmatprep.subr.bf16.mxu0 %v4470
          %5055 = vmatpush1.bf16.msra.mxu0 %v4469
          %5056 = vmatprep.mubr.bf16.mxu0 %v2995
          %5057 = vmatmul.mubr.bf16.gmra.mrb[0].mxu0 %v2994
          %v5058 = vpop.f32.mrb[0].mxu0
          %v5059 = vadd.f32 %v5018, %v5058
          %v5060 = vpop.f32.mrb[0].mxu0
          %v5061 = vadd.f32 %v5020, %v5060
          %v5062 = vpop.f32.mrb[0].mxu0
          %v5063 = vpop.f32.mrb[0].mxu0
          %5064 = vdwg.mxu0
          %5065 = vmatprep.subr.bf16.mxu0 %v4474
          %5066 = vmatpush1.bf16.msra.mxu0 %v4473
          %5067 = vmatprep.subr.bf16.mxu0 %v4478
          %5068 = vmatpush1.bf16.msra.mxu0 %v4477
          %5069 = vmatprep.subr.bf16.mxu0 %v4482
          %5070 = vmatpush1.bf16.msra.mxu0 %v4481
          %5071 = vmatprep.subr.bf16.mxu0 %v4486
          %5072 = vmatpush1.bf16.msra.mxu0 %v4485
          %5073 = vmatprep.subr.bf16.mxu0 %v4490
          %5074 = vmatpush1.bf16.msra.mxu0 %v4489
          %5075 = vmatprep.subr.bf16.mxu0 %v4494
          %5076 = vmatpush1.bf16.msra.mxu0 %v4493
          %5077 = vmatprep.subr.bf16.mxu0 %v4498
          %5078 = vmatpush1.bf16.msra.mxu0 %v4497
          %5079 = vmatprep.subr.bf16.mxu0 %v4502
          %5080 = vmatpush1.bf16.msra.mxu0 %v4501
          %5081 = vmatprep.subr.bf16.mxu0 %v4506
          %5082 = vmatpush1.bf16.msra.mxu0 %v4505
          %5083 = vmatprep.subr.bf16.mxu0 %v4510
          %5084 = vmatpush1.bf16.msra.mxu0 %v4509
          %5085 = vmatprep.subr.bf16.mxu0 %v4514
          %5086 = vmatpush1.bf16.msra.mxu0 %v4513
          %5087 = vmatprep.subr.bf16.mxu0 %v4518
          %5088 = vmatpush1.bf16.msra.mxu0 %v4517
          %5089 = vmatprep.subr.bf16.mxu0 %v4522
          %5090 = vmatpush1.bf16.msra.mxu0 %v4521
          %5091 = vmatprep.subr.bf16.mxu0 %v4526
          %5092 = vmatpush1.bf16.msra.mxu0 %v4525
          %5093 = vmatprep.subr.bf16.mxu0 %v4530
          %5094 = vmatpush1.bf16.msra.mxu0 %v4529
          %5095 = vmatprep.subr.bf16.mxu0 %v4534
          %5096 = vmatpush1.bf16.msra.mxu0 %v4533
          %5097 = vmatprep.mubr.bf16.mxu0 %v2997
          %5098 = vmatmul.mubr.bf16.gmra.mrb[0].mxu0 %v2996
          %v5099 = vpop.f32.mrb[0].mxu0
          %v5100 = vadd.f32 %v5059, %v5099
          %v5101 = vpop.f32.mrb[0].mxu0
          %v5102 = vadd.f32 %v5061, %v5101
          %v5103 = vpop.f32.mrb[0].mxu0
          %v5104 = vpop.f32.mrb[0].mxu0
          %5105 = vdwg.mxu0
          %5106 = vmatprep.subr.bf16.mxu0 %v4538
          %5107 = vmatpush1.bf16.msra.mxu0 %v4537
          %5108 = vmatprep.subr.bf16.mxu0 %v4542
          %5109 = vmatpush1.bf16.msra.mxu0 %v4541
          %5110 = vmatprep.subr.bf16.mxu0 %v4546
          %5111 = vmatpush1.bf16.msra.mxu0 %v4545
          %5112 = vmatprep.subr.bf16.mxu0 %v4550
          %5113 = vmatpush1.bf16.msra.mxu0 %v4549
          %5114 = vmatprep.subr.bf16.mxu0 %v4554
          %5115 = vmatpush1.bf16.msra.mxu0 %v4553
          %5116 = vmatprep.subr.bf16.mxu0 %v4558
          %5117 = vmatpush1.bf16.msra.mxu0 %v4557
          %5118 = vmatprep.subr.bf16.mxu0 %v4562
          %5119 = vmatpush1.bf16.msra.mxu0 %v4561
          %5120 = vmatprep.subr.bf16.mxu0 %v4566
          %5121 = vmatpush1.bf16.msra.mxu0 %v4565
          %5122 = vmatprep.subr.bf16.mxu0 %v4570
          %5123 = vmatpush1.bf16.msra.mxu0 %v4569
          %5124 = vmatprep.subr.bf16.mxu0 %v4574
          %5125 = vmatpush1.bf16.msra.mxu0 %v4573
          %5126 = vmatprep.subr.bf16.mxu0 %v4578
          %5127 = vmatpush1.bf16.msra.mxu0 %v4577
          %5128 = vmatprep.subr.bf16.mxu0 %v4582
          %5129 = vmatpush1.bf16.msra.mxu0 %v4581
          %5130 = vmatprep.subr.bf16.mxu0 %v4586
          %5131 = vmatpush1.bf16.msra.mxu0 %v4585
          %5132 = vmatprep.subr.bf16.mxu0 %v4590
          %5133 = vmatpush1.bf16.msra.mxu0 %v4589
          %5134 = vmatprep.subr.bf16.mxu0 %v4594
          %5135 = vmatpush1.bf16.msra.mxu0 %v4593
          %5136 = vmatprep.subr.bf16.mxu0 %v4598
          %5137 = vmatpush1.bf16.msra.mxu0 %v4597
          %5138 = vmatprep.mubr.bf16.mxu0 %v2999
          %5139 = vmatmul.mubr.bf16.gmra.mrb[0].mxu0 %v2998
          %v5140 = vpop.f32.mrb[0].mxu0
          %v5141 = vadd.f32 %v5100, %v5140
          %v5142 = vpop.f32.mrb[0].mxu0
          %v5143 = vadd.f32 %v5102, %v5142
          %v5144 = vpop.f32.mrb[0].mxu0
          %v5145 = vpop.f32.mrb[0].mxu0
          %5146 = vdwg.mxu0
          %5147 = vmatprep.subr.bf16.mxu0 %v4284
          %5148 = vmatpush1.bf16.msra.mxu0 %v4283
          %5149 = vmatprep.subr.bf16.mxu0 %v4288
          %5150 = vmatpush1.bf16.msra.mxu0 %v4287
          %5151 = vmatprep.subr.bf16.mxu0 %v4292
          %5152 = vmatpush1.bf16.msra.mxu0 %v4291
          %5153 = vmatprep.subr.bf16.mxu0 %v4296
          %5154 = vmatpush1.bf16.msra.mxu0 %v4295
          %5155 = vmatprep.subr.bf16.mxu0 %v4300
          %5156 = vmatpush1.bf16.msra.mxu0 %v4299
          %5157 = vmatprep.subr.bf16.mxu0 %v4304
          %5158 = vmatpush1.bf16.msra.mxu0 %v4303
          %5159 = vmatprep.subr.bf16.mxu0 %v4308
          %5160 = vmatpush1.bf16.msra.mxu0 %v4307
          %5161 = vmatprep.subr.bf16.mxu0 %v4312
          %5162 = vmatpush1.bf16.msra.mxu0 %v4311
          %5163 = vmatprep.subr.bf16.mxu0 %v4316
          %5164 = vmatpush1.bf16.msra.mxu0 %v4315
          %5165 = vmatprep.subr.bf16.mxu0 %v4320
          %5166 = vmatpush1.bf16.msra.mxu0 %v4319
          %5167 = vmatprep.subr.bf16.mxu0 %v4324
          %5168 = vmatpush1.bf16.msra.mxu0 %v4323
          %5169 = vmatprep.subr.bf16.mxu0 %v4328
          %5170 = vmatpush1.bf16.msra.mxu0 %v4327
          %5171 = vmatprep.subr.bf16.mxu0 %v4332
          %5172 = vmatpush1.bf16.msra.mxu0 %v4331
          %5173 = vmatprep.subr.bf16.mxu0 %v4336
          %5174 = vmatpush1.bf16.msra.mxu0 %v4335
          %5175 = vmatprep.subr.bf16.mxu0 %v4340
          %5176 = vmatpush1.bf16.msra.mxu0 %v4339
          %5177 = vmatprep.subr.bf16.mxu0 %v4344
          %5178 = vmatpush1.bf16.msra.mxu0 %v4343
          %5179 = vmatprep.mubr.bf16.mxu0 %v2991
          %5180 = vmatmul.mubr.bf16.gmra.mrb[0].mxu0 %v2990
          %v5181 = vpop.f32.mrb[0].mxu0
          %v5182 = vadd.f32 %v4933, %v5181
          %v5183 = vpop.f32.mrb[0].mxu0
          %v5184 = vadd.f32 %v4937, %v5183
          %v5185 = vpop.f32.mrb[0].mxu0
          %v5186 = vpop.f32.mrb[0].mxu0
          %5187 = vdwg.mxu0
          %5188 = vmatprep.subr.bf16.mxu0 %v4348
          %5189 = vmatpush1.bf16.msra.mxu0 %v4347
          %5190 = vmatprep.subr.bf16.mxu0 %v4352
          %5191 = vmatpush1.bf16.msra.mxu0 %v4351
          %5192 = vmatprep.subr.bf16.mxu0 %v4356
          %5193 = vmatpush1.bf16.msra.mxu0 %v4355
          %5194 = vmatprep.subr.bf16.mxu0 %v4360
          %5195 = vmatpush1.bf16.msra.mxu0 %v4359
          %5196 = vmatprep.subr.bf16.mxu0 %v4364
          %5197 = vmatpush1.bf16.msra.mxu0 %v4363
          %5198 = vmatprep.subr.bf16.mxu0 %v4368
          %5199 = vmatpush1.bf16.msra.mxu0 %v4367
          %5200 = vmatprep.subr.bf16.mxu0 %v4372
          %5201 = vmatpush1.bf16.msra.mxu0 %v4371
          %5202 = vmatprep.subr.bf16.mxu0 %v4376
          %5203 = vmatpush1.bf16.msra.mxu0 %v4375
          %5204 = vmatprep.subr.bf16.mxu0 %v4380
          %5205 = vmatpush1.bf16.msra.mxu0 %v4379
          %5206 = vmatprep.subr.bf16.mxu0 %v4384
          %5207 = vmatpush1.bf16.msra.mxu0 %v4383
          %5208 = vmatprep.subr.bf16.mxu0 %v4388
          %5209 = vmatpush1.bf16.msra.mxu0 %v4387
          %5210 = vmatprep.subr.bf16.mxu0 %v4392
          %5211 = vmatpush1.bf16.msra.mxu0 %v4391
          %5212 = vmatprep.subr.bf16.mxu0 %v4396
          %5213 = vmatpush1.bf16.msra.mxu0 %v4395
          %5214 = vmatprep.subr.bf16.mxu0 %v4400
          %5215 = vmatpush1.bf16.msra.mxu0 %v4399
          %5216 = vmatprep.subr.bf16.mxu0 %v4404
          %5217 = vmatpush1.bf16.msra.mxu0 %v4403
          %5218 = vmatprep.subr.bf16.mxu0 %v4408
          %5219 = vmatpush1.bf16.msra.mxu0 %v4407
          %5220 = vmatprep.mubr.bf16.mxu0 %v2993
          %5221 = vmatmul.mubr.bf16.gmra.mrb[0].mxu0 %v2992
          %v5222 = vpop.f32.mrb[0].mxu0
          %v5223 = vadd.f32 %v5182, %v5222
          %v5224 = vpop.f32.mrb[0].mxu0
          %v5225 = vadd.f32 %v5184, %v5224
          %v5226 = vpop.f32.mrb[0].mxu0
          %v5227 = vpop.f32.mrb[0].mxu0
          %5228 = vdwg.mxu0
          %5229 = vmatprep.subr.bf16.mxu0 %v4412
          %5230 = vmatpush1.bf16.msra.mxu0 %v4411
          %5231 = vmatprep.subr.bf16.mxu0 %v4416
          %5232 = vmatpush1.bf16.msra.mxu0 %v4415
          %5233 = vmatprep.subr.bf16.mxu0 %v4420
          %5234 = vmatpush1.bf16.msra.mxu0 %v4419
          %5235 = vmatprep.subr.bf16.mxu0 %v4424
          %5236 = vmatpush1.bf16.msra.mxu0 %v4423
          %5237 = vmatprep.subr.bf16.mxu0 %v4428
          %5238 = vmatpush1.bf16.msra.mxu0 %v4427
          %5239 = vmatprep.subr.bf16.mxu0 %v4432
          %5240 = vmatpush1.bf16.msra.mxu0 %v4431
          %5241 = vmatprep.subr.bf16.mxu0 %v4436
          %5242 = vmatpush1.bf16.msra.mxu0 %v4435
          %5243 = vmatprep.subr.bf16.mxu0 %v4440
          %5244 = vmatpush1.bf16.msra.mxu0 %v4439
          %5245 = vmatprep.subr.bf16.mxu0 %v4444
          %5246 = vmatpush1.bf16.msra.mxu0 %v4443
          %5247 = vmatprep.subr.bf16.mxu0 %v4448
          %5248 = vmatpush1.bf16.msra.mxu0 %v4447
          %5249 = vmatprep.subr.bf16.mxu0 %v4452
          %5250 = vmatpush1.bf16.msra.mxu0 %v4451
          %5251 = vmatprep.subr.bf16.mxu0 %v4456
          %5252 = vmatpush1.bf16.msra.mxu0 %v4455
          %5253 = vmatprep.subr.bf16.mxu0 %v4460
          %5254 = vmatpush1.bf16.msra.mxu0 %v4459
          %5255 = vmatprep.subr.bf16.mxu0 %v4464
          %5256 = vmatpush1.bf16.msra.mxu0 %v4463
          %5257 = vmatprep.subr.bf16.mxu0 %v4468
          %5258 = vmatpush1.bf16.msra.mxu0 %v4467
          %5259 = vmatprep.subr.bf16.mxu0 %v4472
          %5260 = vmatpush1.bf16.msra.mxu0 %v4471
          %5261 = vmatprep.mubr.bf16.mxu0 %v2995
          %5262 = vmatmul.mubr.bf16.gmra.mrb[0].mxu0 %v2994
          %v5263 = vpop.f32.mrb[0].mxu0
          %v5264 = vadd.f32 %v5223, %v5263
          %v5265 = vpop.f32.mrb[0].mxu0
          %v5266 = vadd.f32 %v5225, %v5265
          %v5267 = vpop.f32.mrb[0].mxu0
          %v5268 = vpop.f32.mrb[0].mxu0
          %5269 = vdwg.mxu0
          %5270 = vmatprep.subr.bf16.mxu0 %v4476
          %5271 = vmatpush1.bf16.msra.mxu0 %v4475
          %5272 = vmatprep.subr.bf16.mxu0 %v4480
          %5273 = vmatpush1.bf16.msra.mxu0 %v4479
          %5274 = vmatprep.subr.bf16.mxu0 %v4484
          %5275 = vmatpush1.bf16.msra.mxu0 %v4483
          %5276 = vmatprep.subr.bf16.mxu0 %v4488
          %5277 = vmatpush1.bf16.msra.mxu0 %v4487
          %5278 = vmatprep.subr.bf16.mxu0 %v4492
          %5279 = vmatpush1.bf16.msra.mxu0 %v4491
          %5280 = vmatprep.subr.bf16.mxu0 %v4496
          %5281 = vmatpush1.bf16.msra.mxu0 %v4495
          %5282 = vmatprep.subr.bf16.mxu0 %v4500
          %5283 = vmatpush1.bf16.msra.mxu0 %v4499
          %5284 = vmatprep.subr.bf16.mxu0 %v4504
          %5285 = vmatpush1.bf16.msra.mxu0 %v4503
          %5286 = vmatprep.subr.bf16.mxu0 %v4508
          %5287 = vmatpush1.bf16.msra.mxu0 %v4507
          %5288 = vmatprep.subr.bf16.mxu0 %v4512
          %5289 = vmatpush1.bf16.msra.mxu0 %v4511
          %5290 = vmatprep.subr.bf16.mxu0 %v4516
          %5291 = vmatpush1.bf16.msra.mxu0 %v4515
          %5292 = vmatprep.subr.bf16.mxu0 %v4520
          %5293 = vmatpush1.bf16.msra.mxu0 %v4519
          %5294 = vmatprep.subr.bf16.mxu0 %v4524
          %5295 = vmatpush1.bf16.msra.mxu0 %v4523
          %5296 = vmatprep.subr.bf16.mxu0 %v4528
          %5297 = vmatpush1.bf16.msra.mxu0 %v4527
          %5298 = vmatprep.subr.bf16.mxu0 %v4532
          %5299 = vmatpush1.bf16.msra.mxu0 %v4531
          %5300 = vmatprep.subr.bf16.mxu0 %v4536
          %5301 = vmatpush1.bf16.msra.mxu0 %v4535
          %5302 = vmatprep.mubr.bf16.mxu0 %v2997
          %5303 = vmatmul.mubr.bf16.gmra.mrb[0].mxu0 %v2996
          %v5304 = vpop.f32.mrb[0].mxu0
          %v5305 = vadd.f32 %v5264, %v5304
          %v5306 = vpop.f32.mrb[0].mxu0
          %v5307 = vadd.f32 %v5266, %v5306
          %v5308 = vpop.f32.mrb[0].mxu0
          %v5309 = vpop.f32.mrb[0].mxu0
          %5310 = vdwg.mxu0
          %5311 = vmatprep.subr.bf16.mxu0 %v4540
          %5312 = vmatpush1.bf16.msra.mxu0 %v4539
          %5313 = vmatprep.subr.bf16.mxu0 %v4544
          %5314 = vmatpush1.bf16.msra.mxu0 %v4543
          %5315 = vmatprep.subr.bf16.mxu0 %v4548
          %5316 = vmatpush1.bf16.msra.mxu0 %v4547
          %5317 = vmatprep.subr.bf16.mxu0 %v4552
          %5318 = vmatpush1.bf16.msra.mxu0 %v4551
          %5319 = vmatprep.subr.bf16.mxu0 %v4556
          %5320 = vmatpush1.bf16.msra.mxu0 %v4555
          %5321 = vmatprep.subr.bf16.mxu0 %v4560
          %5322 = vmatpush1.bf16.msra.mxu0 %v4559
          %5323 = vmatprep.subr.bf16.mxu0 %v4564
          %5324 = vmatpush1.bf16.msra.mxu0 %v4563
          %5325 = vmatprep.subr.bf16.mxu0 %v4568
          %5326 = vmatpush1.bf16.msra.mxu0 %v4567
          %5327 = vmatprep.subr.bf16.mxu0 %v4572
          %5328 = vmatpush1.bf16.msra.mxu0 %v4571
          %5329 = vmatprep.subr.bf16.mxu0 %v4576
          %5330 = vmatpush1.bf16.msra.mxu0 %v4575
          %5331 = vmatprep.subr.bf16.mxu0 %v4580
          %5332 = vmatpush1.bf16.msra.mxu0 %v4579
          %5333 = vmatprep.subr.bf16.mxu0 %v4584
          %5334 = vmatpush1.bf16.msra.mxu0 %v4583
          %5335 = vmatprep.subr.bf16.mxu0 %v4588
          %5336 = vmatpush1.bf16.msra.mxu0 %v4587
          %5337 = vmatprep.subr.bf16.mxu0 %v4592
          %5338 = vmatpush1.bf16.msra.mxu0 %v4591
          %5339 = vmatprep.subr.bf16.mxu0 %v4596
          %5340 = vmatpush1.bf16.msra.mxu0 %v4595
          %5341 = vmatprep.subr.bf16.mxu0 %v4600
          %5342 = vmatpush1.bf16.msra.mxu0 %v4599
          %5343 = vmatprep.mubr.bf16.mxu0 %v2999
          %5344 = vmatmul.mubr.bf16.gmra.mrb[0].mxu0 %v2998
          %v5345 = vpop.f32.mrb[0].mxu0
          %v5346 = vadd.f32 %v5305, %v5345
          %v5347 = vpop.f32.mrb[0].mxu0
          %v5348 = vadd.f32 %v5307, %v5347
          %v5349 = vpop.f32.mrb[0].mxu0
          %v5350 = vpop.f32.mrb[0].mxu0
          %5351 = vdwg.mxu0
          %v5352 = vmul.f32 %v5141, 0.5
          %v5353 = vmul.f32 %v5143, 0.5
          %v5354 = vmul.f32 %v5346, 0.5
          %v5355 = vmul.f32 %v5348, 0.5
          %v5356 = vmul.f32 %v5141, 0.70710677
          %v5357 = vmul.f32 %v5143, 0.70710677
          %v5358 = vmul.f32 %v5346, 0.70710677
          %v5359 = vmul.f32 %v5348, 0.70710677
          %v5360 = verf.f32.pop %v5356
          %v5361 = verf.f32.pop %v5357
          %v5362 = verf.f32.pop %v5358
          %v5363 = verf.f32.pop %v5359
          %v5364 = vadd.f32 %v5360, 1.0
          %v5365 = vadd.f32 %v5361, 1.0
          %v5366 = vadd.f32 %v5362, 1.0
          %v5367 = vadd.f32 %v5363, 1.0
          %v5368 = vmul.f32 %v5352, %v5364
          %v5369 = vmul.f32 %v5353, %v5365
          %v5370 = vmul.f32 %v5354, %v5366
          %v5371 = vmul.f32 %v5355, %v5367
          %vm5372 = vcmask 1040384
          %v5373 = vsel %vm5372, %v5368, 0.0
          %v5374 = vsel %vm5372, %v5369, 0.0
          %v5375 = vadd.f32 %v5373, %v5374
          %v5376 = vsel %vm5372, %v5370, 0.0
          %v5377 = vadd.f32 %v5375, %v5376
          %v5378 = vsel %vm5372, %v5371, 0.0
          %v5379 = vadd.f32 %v5377, %v5378
          %5380 = vadd.xlane.f32.xlu0 %v5379
          %v5381 = vpop.xlane.xlu0 %5380
          %v5382 = vrcp.pop 512.0
          %v5383 = vmul.f32 %v5381, %v5382
          %v5384 = vsub.f32 %v5368, %v5383
          %v5385 = vsub.f32 %v5369, %v5383
          %v5386 = vsub.f32 %v5370, %v5383
          %v5387 = vsub.f32 %v5371, %v5383
          %v5388 = vmul.f32 %v5384, %v5384
          %v5389 = vmul.f32 %v5385, %v5385
          %v5390 = vmul.f32 %v5386, %v5386
          %v5391 = vmul.f32 %v5387, %v5387
          %v5392 = vsel %vm5372, %v5388, 0.0
          %v5393 = vsel %vm5372, %v5389, 0.0
          %v5394 = vadd.f32 %v5392, %v5393
          %v5395 = vsel %vm5372, %v5390, 0.0
          %v5396 = vadd.f32 %v5394, %v5395
          %v5397 = vsel %vm5372, %v5391, 0.0
          %v5398 = vadd.f32 %v5396, %v5397
          %5399 = vadd.xlane.f32.xlu0 %v5398
          %v5400 = vpop.xlane.xlu0 %5399
          %v5401 = vmul.f32 %v5400, %v5382
          %v5402 = vadd.f32 %v5401, 1e-05
          %v5403 = vrsqrt.pop %v5402
          %v5404 = vmul.f32 %v5384, %v5403
          %v5405 = vmul.f32 %v5385, %v5403
          %v5406 = vmul.f32 %v5386, %v5403
          %v5407 = vmul.f32 %v5387, %v5403
          %v5408 = vld [vmem:[%s7] sm:$0xf]
          %v5410 = vlaneseq
          %v5411 = vshrl.u32 %v5410, 7
          %v5412 = vsub.s32 0, %v5411
          %v5413 = vrot.slane %v5408, %v5412
          %v5414 = vlaneseq
          %v5415 = vshrl.u32 %v5414, 7
          %v5416 = vsub.s32 1, %v5415
          %v5417 = vrot.slane %v5408, %v5416
          %v5418 = vlaneseq
          %v5419 = vshrl.u32 %v5418, 7
          %v5420 = vsub.s32 2, %v5419
          %v5421 = vrot.slane %v5408, %v5420
          %v5422 = vlaneseq
          %v5423 = vshrl.u32 %v5422, 7
          %v5424 = vsub.s32 3, %v5423
          %v5425 = vrot.slane %v5408, %v5424
          %v5430 = vmul.f32 %v5404, %v5413
          %v5431 = vmul.f32 %v5405, %v5417
          %v5432 = vmul.f32 %v5406, %v5421
          %v5433 = vmul.f32 %v5407, %v5425
          %v5434 = vld [vmem:[%s8] sm:$0xf]
          %v5436 = vlaneseq
          %v5437 = vshrl.u32 %v5436, 7
          %v5438 = vsub.s32 0, %v5437
          %v5439 = vrot.slane %v5434, %v5438
          %v5440 = vlaneseq
          %v5441 = vshrl.u32 %v5440, 7
          %v5442 = vsub.s32 1, %v5441
          %v5443 = vrot.slane %v5434, %v5442
          %v5444 = vlaneseq
          %v5445 = vshrl.u32 %v5444, 7
          %v5446 = vsub.s32 2, %v5445
          %v5447 = vrot.slane %v5434, %v5446
          %v5448 = vlaneseq
          %v5449 = vshrl.u32 %v5448, 7
          %v5450 = vsub.s32 3, %v5449
          %v5451 = vrot.slane %v5434, %v5450
          %v5456 = vadd.f32 %v5430, %v5439
          %v5457 = vadd.f32 %v5431, %v5443
          %v5458 = vadd.f32 %v5432, %v5447
          %v5459 = vadd.f32 %v5433, %v5451
          %v5460 = vld [vmem:[%s9] sm:$0xff]
          %v5461 = vld [vmem:[%s9 + $0x8] sm:$0xff]
          %v5462 = vld [vmem:[%s9 + $0x10] sm:$0xff]
          %v5463 = vld [vmem:[%s9 + $0x18] sm:$0xff]
          %v5464 = vld [vmem:[%s9 + $0x20] sm:$0xff]
          %v5465 = vld [vmem:[%s9 + $0x28] sm:$0xff]
          %v5466 = vld [vmem:[%s9 + $0x30] sm:$0xff]
          %v5467 = vld [vmem:[%s9 + $0x38] sm:$0xff]
          %v5468 = vld [vmem:[%s9 + $0x40] sm:$0xff]
          %v5469 = vld [vmem:[%s9 + $0x48] sm:$0xff]
          %v5470 = vld [vmem:[%s9 + $0x50] sm:$0xff]
          %v5471 = vld [vmem:[%s9 + $0x58] sm:$0xff]
          %v5472 = vld [vmem:[%s9 + $0x60] sm:$0xff]
          %v5473 = vld [vmem:[%s9 + $0x68] sm:$0xff]
          %v5474 = vld [vmem:[%s9 + $0x70] sm:$0xff]
          %v5475 = vld [vmem:[%s9 + $0x78] sm:$0xff]
          %v5476 = vld [vmem:[%s9 + $0x80] sm:$0xff]
          %v5477 = vld [vmem:[%s9 + $0x88] sm:$0xff]
          %v5478 = vld [vmem:[%s9 + $0x90] sm:$0xff]
          %v5479 = vld [vmem:[%s9 + $0x98] sm:$0xff]
          %v5480 = vld [vmem:[%s9 + $0xa0] sm:$0xff]
          %v5481 = vld [vmem:[%s9 + $0xa8] sm:$0xff]
          %v5482 = vld [vmem:[%s9 + $0xb0] sm:$0xff]
          %v5483 = vld [vmem:[%s9 + $0xb8] sm:$0xff]
          %v5484 = vld [vmem:[%s9 + $0xc0] sm:$0xff]
          %v5485 = vld [vmem:[%s9 + $0xc8] sm:$0xff]
          %v5486 = vld [vmem:[%s9 + $0xd0] sm:$0xff]
          %v5487 = vld [vmem:[%s9 + $0xd8] sm:$0xff]
          %v5488 = vld [vmem:[%s9 + $0xe0] sm:$0xff]
          %v5489 = vld [vmem:[%s9 + $0xe8] sm:$0xff]
          %v5490 = vld [vmem:[%s9 + $0xf0] sm:$0xff]
          %v5491 = vld [vmem:[%s9 + $0xf8] sm:$0xff]
          %v5492 = vld [vmem:[%s9 + $0x100] sm:$0xff]
          %v5493 = vld [vmem:[%s9 + $0x108] sm:$0xff]
          %v5494 = vld [vmem:[%s9 + $0x110] sm:$0xff]
          %v5495 = vld [vmem:[%s9 + $0x118] sm:$0xff]
          %v5496 = vld [vmem:[%s9 + $0x120] sm:$0xff]
          %v5497 = vld [vmem:[%s9 + $0x128] sm:$0xff]
          %v5498 = vld [vmem:[%s9 + $0x130] sm:$0xff]
          %v5499 = vld [vmem:[%s9 + $0x138] sm:$0xff]
          %v5500 = vld [vmem:[%s9 + $0x140] sm:$0xff]
          %v5501 = vld [vmem:[%s9 + $0x148] sm:$0xff]
          %v5502 = vld [vmem:[%s9 + $0x150] sm:$0xff]
          %v5503 = vld [vmem:[%s9 + $0x158] sm:$0xff]
          %v5504 = vld [vmem:[%s9 + $0x160] sm:$0xff]
          %v5505 = vld [vmem:[%s9 + $0x168] sm:$0xff]
          %v5506 = vld [vmem:[%s9 + $0x170] sm:$0xff]
          %v5507 = vld [vmem:[%s9 + $0x178] sm:$0xff]
          %v5508 = vld [vmem:[%s9 + $0x180] sm:$0xff]
          %v5509 = vld [vmem:[%s9 + $0x188] sm:$0xff]
          %v5510 = vld [vmem:[%s9 + $0x190] sm:$0xff]
          %v5511 = vld [vmem:[%s9 + $0x198] sm:$0xff]
          %v5512 = vld [vmem:[%s9 + $0x1a0] sm:$0xff]
          %v5513 = vld [vmem:[%s9 + $0x1a8] sm:$0xff]
          %v5514 = vld [vmem:[%s9 + $0x1b0] sm:$0xff]
          %v5515 = vld [vmem:[%s9 + $0x1b8] sm:$0xff]
          %v5516 = vld [vmem:[%s9 + $0x1c0] sm:$0xff]
          %v5517 = vld [vmem:[%s9 + $0x1c8] sm:$0xff]
          %v5518 = vld [vmem:[%s9 + $0x1d0] sm:$0xff]
          %v5519 = vld [vmem:[%s9 + $0x1d8] sm:$0xff]
          %v5520 = vld [vmem:[%s9 + $0x1e0] sm:$0xff]
          %v5521 = vld [vmem:[%s9 + $0x1e8] sm:$0xff]
          %v5522 = vld [vmem:[%s9 + $0x1f0] sm:$0xff]
          %v5523 = vld [vmem:[%s9 + $0x1f8] sm:$0xff]
          %v5524 = vld [vmem:[%s10] sm:$0x1]
          %5525 = vmatprep.subr.mxu0 0.0
          %5526 = vmatpush1.msra.mxu0 %v5460
          %5527 = vmatprep.subr.mxu0 0.0
          %5528 = vmatpush1.msra.mxu0 %v5461
          %5529 = vmatprep.subr.mxu0 0.0
          %5530 = vmatpush1.msra.mxu0 %v5462
          %5531 = vmatprep.subr.mxu0 0.0
          %5532 = vmatpush1.msra.mxu0 %v5463
          %5533 = vmatprep.subr.mxu0 0.0
          %5534 = vmatpush1.msra.mxu0 %v5464
          %5535 = vmatprep.subr.mxu0 0.0
          %5536 = vmatpush1.msra.mxu0 %v5465
          %5537 = vmatprep.subr.mxu0 0.0
          %5538 = vmatpush1.msra.mxu0 %v5466
          %5539 = vmatprep.subr.mxu0 0.0
          %5540 = vmatpush1.msra.mxu0 %v5467
          %5541 = vmatprep.subr.mxu0 0.0
          %5542 = vmatpush1.msra.mxu0 %v5468
          %5543 = vmatprep.subr.mxu0 0.0
          %5544 = vmatpush1.msra.mxu0 %v5469
          %5545 = vmatprep.subr.mxu0 0.0
          %5546 = vmatpush1.msra.mxu0 %v5470
          %5547 = vmatprep.subr.mxu0 0.0
          %5548 = vmatpush1.msra.mxu0 %v5471
          %5549 = vmatprep.subr.mxu0 0.0
          %5550 = vmatpush1.msra.mxu0 %v5472
          %5551 = vmatprep.subr.mxu0 0.0
          %5552 = vmatpush1.msra.mxu0 %v5473
          %5553 = vmatprep.subr.mxu0 0.0
          %5554 = vmatpush1.msra.mxu0 %v5474
          %5555 = vmatprep.subr.mxu0 0.0
          %5556 = vmatpush1.msra.mxu0 %v5475
          %5557 = vmatprep.subr.mxu0 0.0
          %5558 = vmatpush1.msra.mxu0 %v5476
          %5559 = vmatprep.subr.mxu0 0.0
          %5560 = vmatpush1.msra.mxu0 %v5477
          %5561 = vmatprep.subr.mxu0 0.0
          %5562 = vmatpush1.msra.mxu0 %v5478
          %5563 = vmatprep.subr.mxu0 0.0
          %5564 = vmatpush1.msra.mxu0 %v5479
          %5565 = vmatprep.subr.mxu0 0.0
          %5566 = vmatpush1.msra.mxu0 %v5480
          %5567 = vmatprep.subr.mxu0 0.0
          %5568 = vmatpush1.msra.mxu0 %v5481
          %5569 = vmatprep.subr.mxu0 0.0
          %5570 = vmatpush1.msra.mxu0 %v5482
          %5571 = vmatprep.subr.mxu0 0.0
          %5572 = vmatpush1.msra.mxu0 %v5483
          %5573 = vmatprep.subr.mxu0 0.0
          %5574 = vmatpush1.msra.mxu0 %v5484
          %5575 = vmatprep.subr.mxu0 0.0
          %5576 = vmatpush1.msra.mxu0 %v5485
          %5577 = vmatprep.subr.mxu0 0.0
          %5578 = vmatpush1.msra.mxu0 %v5486
          %5579 = vmatprep.subr.mxu0 0.0
          %5580 = vmatpush1.msra.mxu0 %v5487
          %5581 = vmatprep.subr.mxu0 0.0
          %5582 = vmatpush1.msra.mxu0 %v5488
          %5583 = vmatprep.subr.mxu0 0.0
          %5584 = vmatpush1.msra.mxu0 %v5489
          %5585 = vmatprep.subr.mxu0 0.0
          %5586 = vmatpush1.msra.mxu0 %v5490
          %5587 = vmatprep.subr.mxu0 0.0
          %5588 = vmatpush1.msra.mxu0 %v5491
          %5589 = vmatprep.mubr.f32.mxu0 %v5457
          %5590 = vmatmul.mubr.f32.gmra.mrb[0].mxu0 %v5456
          %v5591 = vpop.f32.mrb[0].mxu0
          %v5592 = vadd.f32 %v5524, %v5591
          %v5593 = vpop.f32.mrb[0].mxu0
          %5594 = vdwg.mxu0
          %5595 = vmatprep.subr.mxu0 0.0
          %5596 = vmatpush1.msra.mxu0 %v5492
          %5597 = vmatprep.subr.mxu0 0.0
          %5598 = vmatpush1.msra.mxu0 %v5493
          %5599 = vmatprep.subr.mxu0 0.0
          %5600 = vmatpush1.msra.mxu0 %v5494
          %5601 = vmatprep.subr.mxu0 0.0
          %5602 = vmatpush1.msra.mxu0 %v5495
          %5603 = vmatprep.subr.mxu0 0.0
          %5604 = vmatpush1.msra.mxu0 %v5496
          %5605 = vmatprep.subr.mxu0 0.0
          %5606 = vmatpush1.msra.mxu0 %v5497
          %5607 = vmatprep.subr.mxu0 0.0
          %5608 = vmatpush1.msra.mxu0 %v5498
          %5609 = vmatprep.subr.mxu0 0.0
          %5610 = vmatpush1.msra.mxu0 %v5499
          %5611 = vmatprep.subr.mxu0 0.0
          %5612 = vmatpush1.msra.mxu0 %v5500
          %5613 = vmatprep.subr.mxu0 0.0
          %5614 = vmatpush1.msra.mxu0 %v5501
          %5615 = vmatprep.subr.mxu0 0.0
          %5616 = vmatpush1.msra.mxu0 %v5502
          %5617 = vmatprep.subr.mxu0 0.0
          %5618 = vmatpush1.msra.mxu0 %v5503
          %5619 = vmatprep.subr.mxu0 0.0
          %5620 = vmatpush1.msra.mxu0 %v5504
          %5621 = vmatprep.subr.mxu0 0.0
          %5622 = vmatpush1.msra.mxu0 %v5505
          %5623 = vmatprep.subr.mxu0 0.0
          %5624 = vmatpush1.msra.mxu0 %v5506
          %5625 = vmatprep.subr.mxu0 0.0
          %5626 = vmatpush1.msra.mxu0 %v5507
          %5627 = vmatprep.subr.mxu0 0.0
          %5628 = vmatpush1.msra.mxu0 %v5508
          %5629 = vmatprep.subr.mxu0 0.0
          %5630 = vmatpush1.msra.mxu0 %v5509
          %5631 = vmatprep.subr.mxu0 0.0
          %5632 = vmatpush1.msra.mxu0 %v5510
          %5633 = vmatprep.subr.mxu0 0.0
          %5634 = vmatpush1.msra.mxu0 %v5511
          %5635 = vmatprep.subr.mxu0 0.0
          %5636 = vmatpush1.msra.mxu0 %v5512
          %5637 = vmatprep.subr.mxu0 0.0
          %5638 = vmatpush1.msra.mxu0 %v5513
          %5639 = vmatprep.subr.mxu0 0.0
          %5640 = vmatpush1.msra.mxu0 %v5514
          %5641 = vmatprep.subr.mxu0 0.0
          %5642 = vmatpush1.msra.mxu0 %v5515
          %5643 = vmatprep.subr.mxu0 0.0
          %5644 = vmatpush1.msra.mxu0 %v5516
          %5645 = vmatprep.subr.mxu0 0.0
          %5646 = vmatpush1.msra.mxu0 %v5517
          %5647 = vmatprep.subr.mxu0 0.0
          %5648 = vmatpush1.msra.mxu0 %v5518
          %5649 = vmatprep.subr.mxu0 0.0
          %5650 = vmatpush1.msra.mxu0 %v5519
          %5651 = vmatprep.subr.mxu0 0.0
          %5652 = vmatpush1.msra.mxu0 %v5520
          %5653 = vmatprep.subr.mxu0 0.0
          %5654 = vmatpush1.msra.mxu0 %v5521
          %5655 = vmatprep.subr.mxu0 0.0
          %5656 = vmatpush1.msra.mxu0 %v5522
          %5657 = vmatprep.subr.mxu0 0.0
          %5658 = vmatpush1.msra.mxu0 %v5523
          %5659 = vmatprep.mubr.f32.mxu0 %v5459
          %5660 = vmatmul.mubr.f32.gmra.mrb[0].mxu0 %v5458
          %v5661 = vpop.f32.mrb[0].mxu0
          %v5662 = vadd.f32 %v5592, %v5661
          %v5663 = vpop.f32.mrb[0].mxu0
          %5664 = vdwg.mxu0
          %vm5665 = vcmask 49152
          %5666 = vst.msk [vmem:[%s401] sm:$0x1] %vm5665, %v5662
        $region72: #{enhanced_fernet_forward.1} parent=63 // pred_fallthru
          _
        %s5667 = sand.u32 %s283, 1
        %s5668 = scalar_lea.sflag [#allocation4], %s5667
        %s5669 = sand.u32 %s283, 1
        %s5670 = scalar_lea.vmem [#allocation3], %s5669
        // Predicated region
        $region73: #{enhanced_fernet_forward.1} parent=63 // pred_check
          %p5671 = pneg %p293
        $region74: #{enhanced_fernet_forward.1} parent=63 // pred_check_branch
          %5673 = sbr.rel (%p5671) target = $region76
        $region75: #{enhanced_fernet_forward.1} parent=63 // pred_region
          %s5675 = ssub.s32 16, 16
          %5676 = vsyncadd %s5668, %s5675
          %s5677 = smul.addr %s29, 16
          %s5678 = scalar_lea.hbm %s11, %s5677
          %s5680 = sshll.u32 %s5670, 4
          %s5681 = int_to_ptr.vmem [resolvable:$true] %s5680
          %5683 = dma.vmem_to_hbm [thread:$0]  %s5681, 16, %s5678, %s5668
        $region76: #{enhanced_fernet_forward.1} parent=63 // pred_fallthru
          _
      $region64: #{enhanced_fernet_forward.1} parent=5 // pred_fallthru
        _
      %p5684 = scmp.le.s32.totalorder 2, %s20
      // Predicated region
      $region77: #{enhanced_fernet_forward.1} parent=5 // pred_check
        %p5685 = pneg %p5684
      $region78: #{enhanced_fernet_forward.1} parent=5 // pred_check_branch
        %5687 = sbr.rel (%p5685) target = $region80
      $region79: #{enhanced_fernet_forward.1} parent=5 // pred_region
        %s5688 = ssub.s32 %s20, 2
        // Predicated region
        $region81: #{enhanced_fernet_forward.1} parent=79 // pred_check
          %p5689 = pneg %p299
        $region82: #{enhanced_fernet_forward.1} parent=79 // pred_check_branch
          %5691 = sbr.rel (%p5689) target = $region84
        $region83: #{enhanced_fernet_forward.1} parent=79 // pred_region
          %s5692 = sand.u32 %s284, 1
          %s5693 = scalar_lea.sflag [#allocation4], %s5692
          %s5694 = sand.u32 %s284, 1
          %s5695 = scalar_lea.vmem [#allocation3], %s5694
          %5696 = dma.done %s5693, 16
        $region84: #{enhanced_fernet_forward.1} parent=79 // pred_fallthru
          _
      $region80: #{enhanced_fernet_forward.1} parent=5 // pred_fallthru
        _
    $region6: #{enhanced_fernet_forward.1} parent=1 // loop_footer
      %s24 = sadd.s32 1, %s20
    $region7: #{enhanced_fernet_forward.1} parent=1 // loop_footer_branch
      %19 = sbr.rel target = $region3
    $region8: #{enhanced_fernet_forward.1} parent=1 // loop_exit
      _
    %5697 = vsyncpa [#allocation4], 1
    %s5698 = scalar_lea.sflag [#allocation4], 1
    %5699 = vsyncpa %s5698, 1

</llo_original>
